<compile_context>
chip_gen: v7x
topology: tpu7x:2x2x1
jax: 0.10.0
libtpu: 0.0.40
codegen_flags: <defaults>
</compile_context>

<pallas_src>
import functools

import jax
import jax.numpy as jnp
from jax.experimental import pallas as pl
from jax.experimental.pallas import tpu as pltpu

# ----------------------------- configuration --------------------------------
B = 2            # batch
C_IN = 3         # image channels
H_ORI = 14       # original image height (not a multiple of patch -> exercises padding)
W_ORI = 14
PATCH = 4        # encoder.patch_size
D = 32           # embedding dim
HEADS = 2
DH = D // HEADS  # head dim
DEPTH = 2        # transformer blocks
D_MLP = 64       # MLP hidden dim
N_CLS = 5        # number of classes

H_PAD = H_ORI + (PATCH - H_ORI % PATCH) % PATCH   # 16
W_PAD = W_ORI + (PATCH - W_ORI % PATCH) % PATCH   # 16
GS_H, GS_W = H_PAD // PATCH, W_PAD // PATCH        # 4, 4
N_TOK = GS_H * GS_W                                # 16
SEQ = N_TOK + 1                                    # 17 (with cls token)
LN_EPS = 1e-6

# --------------------------- in-kernel helpers --------------------------------


def _ln(x, g, b, eps=LN_EPS):
    """LayerNorm over the last (lane) axis, f32."""
    mean = jnp.mean(x, axis=-1, keepdims=True)
    var = jnp.mean(jnp.square(x - mean), axis=-1, keepdims=True)
    return (x - mean) * jax.lax.rsqrt(var + eps) * g + b


def _erf_approx(x):
    # TODO(synk): PyTorch nn.GELU() uses exact erf; Mosaic has no native erf lowering,
    # so we use Abramowitz & Stegun 7.1.26 (max abs error ~1.5e-7, ~f32 precision).
    a1, a2, a3, a4, a5 = 0.254829592, -0.284496736, 1.421413741, -1.453152027, 1.061405429
    p = 0.3275911
    sgn = jnp.where(x >= 0.0, 1.0, -1.0)
    ax = jnp.abs(x)
    t = 1.0 / (1.0 + p * ax)
    poly = ((((a5 * t + a4) * t + a3) * t + a2) * t + a1) * t
    return sgn * (1.0 - poly * jnp.exp(-ax * ax))


def _gelu(x):
    return 0.5 * x * (1.0 + _erf_approx(x * 0.7071067811865476))


def _full_spec(a):
    """BlockSpec that presents the whole (small) array as one resident block."""
    nd = a.ndim
    return pl.BlockSpec(a.shape, lambda i, nd=nd: (0,) * nd)


# ------------------------------ Pallas kernels --------------------------------


def _embed_kernel(patch_ref, pw_ref, base_ref, o_ref):
    """Per-batch: tokens = patches @ W  +  base, where base already holds
    cls_token+pos[0] in row 0 and pos[1:]+patch_bias in rows 1..N (patch row 0 is zero)."""
    p = patch_ref[0].astype(jnp.bfloat16)                       # (SEQ, C*P*P)
    o_ref[0] = (jnp.dot(p, pw_ref[...], preferred_element_type=jnp.float32)
                + base_ref[...])


def _block_kernel(x_ref, n1g_ref, n1b_ref, qkvw_ref, qkvb_ref, projw_ref, projb_ref,
                  n2g_ref, n2b_ref, f1w_ref, f1b_ref, f2w_ref, f2b_ref, o_ref):
    """Fused pre-norm transformer block for one batch element (grid=(B,), parallel)."""
    x = x_ref[0]                                                # (SEQ, D) f32
    hn = _ln(x, n1g_ref[...], n1b_ref[...])
    hn_b = hn.astype(jnp.bfloat16)
    scale = DH ** -0.5

    attn = jnp.zeros(x.shape, jnp.float32)
    for hd in range(HEADS):                                     # unrolled, no grid steps
        q = jnp.dot(hn_b, qkvw_ref[0 * HEADS + hd],
                    preferred_element_type=jnp.float32) + qkvb_ref[0 * HEADS + hd]
        k = jnp.dot(hn_b, qkvw_ref[1 * HEADS + hd],
                    preferred_element_type=jnp.float32) + qkvb_ref[1 * HEADS + hd]
        v = jnp.dot(hn_b, qkvw_ref[2 * HEADS + hd],
                    preferred_element_type=jnp.float32) + qkvb_ref[2 * HEADS + hd]
        # scores = q @ k^T  (contract head dim)
        s = jax.lax.dot_general(q.astype(jnp.bfloat16), k.astype(jnp.bfloat16),
                                (((1,), (1,)), ((), ())),
                                preferred_element_type=jnp.float32) * scale
        s = s - jnp.max(s, axis=-1, keepdims=True)
        p = jnp.exp(s)
        p = p * pl.reciprocal(jnp.sum(p, axis=-1, keepdims=True), approx=True)
        o_h = jnp.dot(p.astype(jnp.bfloat16), v.astype(jnp.bfloat16),
                      preferred_element_type=jnp.float32)
        # proj is linear: sum per-head slices of proj_w instead of concatenating heads
        attn = attn + jnp.dot(o_h.astype(jnp.bfloat16), projw_ref[hd],
                              preferred_element_type=jnp.float32)
    x = x + attn + projb_ref[...]

    hn2 = _ln(x, n2g_ref[...], n2b_ref[...])
    m = jnp.dot(hn2.astype(jnp.bfloat16), f1w_ref[...],
                preferred_element_type=jnp.float32) + f1b_ref[...]
    m = _gelu(m)
    m = jnp.dot(m.astype(jnp.bfloat16), f2w_ref[...],
                preferred_element_type=jnp.float32) + f2b_ref[...]
    o_ref[0] = x + m


def _decoder_kernel(x_ref, ng_ref, nb_ref, hw_ref, hb_ref, t_ref, o_ref):
    """Final LN + linear head + bilinear upsample fused.
    t_ref is the (H*W, SEQ) token->pixel interpolation matrix (cls column = 0,
    rows sum to 1, so the head bias is preserved exactly through it)."""
    xn = _ln(x_ref[0], ng_ref[...], nb_ref[...])                        # (SEQ, D)
    logits = jnp.dot(xn, hw_ref[...],
                     preferred_element_type=jnp.float32) + hb_ref[...]  # (SEQ, N_CLS)
    o_ref[0] = jnp.dot(t_ref[...], logits,
                       preferred_element_type=jnp.float32)              # (H*W, N_CLS)


# ------------------------------ kernel wrappers --------------------------------


def patch_embed(patches, patch_w_bf16, base):
    b, s, cpp = patches.shape
    d = base.shape[-1]
    return pl.pallas_call(
        _embed_kernel,
        grid=(b,),
        in_specs=[pl.BlockSpec((1, s, cpp), lambda i: (i, 0, 0)),
                  _full_spec(patch_w_bf16),
                  _full_spec(base)],
        out_specs=pl.BlockSpec((1, s, d), lambda i: (i, 0, 0)),
        out_shape=jax.ShapeDtypeStruct((b, s, d), jnp.float32),
        compiler_params=pltpu.CompilerParams(dimension_semantics=("parallel",)),
    )(patches.astype(jnp.float32), patch_w_bf16, base.astype(jnp.float32))


def transformer_block(x, n1g, n1b, qkv_w, qkv_b, proj_w, proj_b,
                      n2g, n2b, fc1_w, fc1_b, fc2_w, fc2_b):
    b, s, d = x.shape
    row = lambda v: v.reshape(1, -1).astype(jnp.float32)
    args = (x, row(n1g), row(n1b), qkv_w, qkv_b.astype(jnp.float32),
            proj_w, row(proj_b), row(n2g), row(n2b),
            fc1_w, row(fc1_b), fc2_w, row(fc2_b))
    x_spec = pl.BlockSpec((1, s, d), lambda i: (i, 0, 0))
    in_specs = [x_spec] + [_full_spec(a) for a in args[1:]]
    return pl.pallas_call(
        _block_kernel,
        grid=(b,),
        in_specs=in_specs,
        out_specs=x_spec,
        out_shape=jax.ShapeDtypeStruct((b, s, d), jnp.float32),
        compiler_params=pltpu.CompilerParams(dimension_semantics=("parallel",)),
    )(*args)


def decode(x, norm_g, norm_b, head_w, head_b, t_full):
    b, s, d = x.shape
    hw = t_full.shape[0]
    n_cls = head_w.shape[1]
    row = lambda v: v.reshape(1, -1).astype(jnp.float32)
    args = (x, row(norm_g), row(norm_b), head_w.astype(jnp.float32),
            row(head_b), t_full.astype(jnp.float32))
    in_specs = [pl.BlockSpec((1, s, d), lambda i: (i, 0, 0))] + \
               [_full_spec(a) for a in args[1:]]
    return pl.pallas_call(
        _decoder_kernel,
        grid=(b,),
        in_specs=in_specs,
        out_specs=pl.BlockSpec((1, hw, n_cls), lambda i: (i, 0, 0)),
        out_shape=jax.ShapeDtypeStruct((b, hw, n_cls), jnp.float32),
        compiler_params=pltpu.CompilerParams(dimension_semantics=("parallel",)),
    )(*args)


# ----------------------- bilinear interpolate (as a matrix) -------------------


def _bilinear_matrix(in_size, out_size):
    """Row-stochastic matrix reproducing F.interpolate(mode='bilinear', align_corners=False)."""
    scale = in_size / out_size
    i = jnp.arange(out_size, dtype=jnp.float32)
    src = (i + 0.5) * scale - 0.5
    src = jnp.maximum(src, 0.0)
    x0 = jnp.floor(src)
    lam1 = src - x0
    lam0 = 1.0 - lam1
    x0i = x0.astype(jnp.int32)
    x1i = jnp.minimum(x0i + 1, in_size - 1)
    a = jnp.zeros((out_size, in_size), jnp.float32)
    rows = jnp.arange(out_size)
    a = a.at[rows, x0i].add(lam0)
    a = a.at[rows, x1i].add(lam1)
    return a


# ------------------------------ model forward --------------------------------


def segmenter_forward(params, im):
    """im: (B, C, H_ori, W_ori) float32, NCHW (PyTorch convention)."""
    b, c, h_ori, w_ori = im.shape
    p = PATCH
    pad_h = (p - h_ori % p) % p
    pad_w = (p - w_ori % p) % p
    im_p = jnp.pad(im, ((0, 0), (0, 0), (0, pad_h), (0, pad_w)))   # padding()
    h, w = h_ori + pad_h, w_ori + pad_w
    gs_h, gs_w = h // p, w // p
    n_tok = gs_h * gs_w

    # ---- patch extraction (layout-only glue, tiny) ----
    patches = im_p.reshape(b, c, gs_h, p, gs_w, p)
    patches = patches.transpose(0, 2, 4, 1, 3, 5).reshape(b, n_tok, c * p * p)
    patches = jnp.pad(patches, ((0, 0), (1, 0), (0, 0)))   # zero row -> cls-token slot

    # ---- cls token / pos embed / patch bias folded into one "base" matrix ----
    pos = params['pos_embed'][0]                                   # (SEQ, D)
    base = jnp.concatenate(
        [params['cls_token'].reshape(1, D) + pos[:1],
         pos[1:] + params['patch_b'].reshape(1, D)], axis=0)       # (SEQ, D)

    # ---- encoder: fused patch-embed + cls + pos ----
    x = patch_embed(patches, params['patch_w'].astype(jnp.bfloat16), base)   # (B, SEQ, D)

    # ---- transformer blocks: one fused kernel per block ----
    for blk in params['blocks']:
        qkv_w = (blk['qkv_w'].reshape(D, 3, HEADS, DH).transpose(1, 2, 0, 3)
                 .reshape(3 * HEADS, D, DH).astype(jnp.bfloat16))
        qkv_b = blk['qkv_b'].reshape(3 * HEADS, 1, DH)
        proj_w = blk['proj_w'].reshape(HEADS, DH, D).astype(jnp.bfloat16)
        x = transformer_block(
            x, blk['norm1_g'], blk['norm1_b'], qkv_w, qkv_b, proj_w, blk['proj_b'],
            blk['norm2_g'], blk['norm2_b'],
            blk['fc1_w'].astype(jnp.bfloat16), blk['fc1_b'],
            blk['fc2_w'].astype(jnp.bfloat16), blk['fc2_b'])

    # ---- fused final-LN + decoder head + bilinear upsample ----
    a_h = _bilinear_matrix(gs_h, h)                                # (h, gs_h)
    a_w = _bilinear_matrix(gs_w, w)                                # (w, gs_w)
    t_tok = jnp.einsum('ip,jq->ijpq', a_h, a_w).reshape(h * w, n_tok)
    # zero column for the cls token (num_extra_tokens = 1, not distilled)
    t_full = jnp.concatenate([jnp.zeros((h * w, 1), jnp.float32), t_tok], axis=1)

    out = decode(x, params['norm_g'], params['norm_b'],
                 params['head_w'], params['head_b'], t_full)       # (B, h*w, N_CLS)

    # tiny relayout + unpadding() crop (10 KB tensor) left to XLA
    out = out.reshape(b, h, w, N_CLS).transpose(0, 3, 1, 2)        # (B, n_cls, h, w)
    return out[:, :, :h_ori, :w_ori]


# ------------------------------ parameter init -------------------------------


def init_params(key):
    keys = iter(jax.random.split(key, 64))

    def nrm(shape, std=0.02):
        return std * jax.random.normal(next(keys), shape, jnp.float32)

    params = {
        'patch_w': nrm((C_IN * PATCH * PATCH, D)),
        'patch_b': jnp.zeros((D,), jnp.float32),
        'cls_token': nrm((1, 1, D)),
        'pos_embed': nrm((1, SEQ, D)),
        'norm_g': jnp.ones((D,), jnp.float32),
        'norm_b': jnp.zeros((D,), jnp.float32),
        'head_w': nrm((D, N_CLS)),
        'head_b': jnp.zeros((N_CLS,), jnp.float32),
        'blocks': [],
    }
    for _ in range(DEPTH):
        params['blocks'].append({
            'norm1_g': jnp.ones((D,), jnp.float32),
            'norm1_b': jnp.zeros((D,), jnp.float32),
            'qkv_w': nrm((D, 3 * D)),
            'qkv_b': jnp.zeros((3 * D,), jnp.float32),
            'proj_w': nrm((D, D)),
            'proj_b': jnp.zeros((D,), jnp.float32),
            'norm2_g': jnp.ones((D,), jnp.float32),
            'norm2_b': jnp.zeros((D,), jnp.float32),
            'fc1_w': nrm((D, D_MLP)),
            'fc1_b': jnp.zeros((D_MLP,), jnp.float32),
            'fc2_w': nrm((D_MLP, D)),
            'fc2_b': jnp.zeros((D,), jnp.float32),
        })
    return params


# ----------------------------------- main ------------------------------------

if __name__ == "__main__":
    root = jax.random.PRNGKey(0)
    pkey, xkey = jax.random.split(root)
    params = init_params(pkey)
    im = jax.random.normal(xkey, (B, C_IN, H_ORI, W_ORI), jnp.float32)

    fwd = jax.jit(segmenter_forward)
    out = fwd(params, im)
    out = jax.block_until_ready(out)

    assert out.shape == (B, N_CLS, H_ORI, W_ORI), out.shape
    assert jnp.all(jnp.isfinite(out))
    print("KERNEL_OK")
</pallas_src>

<mosaic_0001>
module attributes {stable_mosaic.version = 11 : i64} {
  func.func private @main(%arg0: i32) attributes {dimension_semantics = [#tpu.dimension_semantics<core_parallel>], iteration_bounds = array<i64: 2>, tpu.core_type = #tpu.core_type<sc_scalar_subcore>, window_params = []} {
    return
  }
}

module attributes {stable_mosaic.version = 11 : i64} {
  func.func private @main(%arg0: i32) attributes {dimension_semantics = [#tpu.dimension_semantics<core_parallel>], iteration_bounds = array<i64: 2>, tpu.core_type = #tpu.core_type<sc_scalar_subcore>, window_params = []} {
    return
  }
}

module attributes {stable_mosaic.version = 11 : i64} {
  func.func @_embed_kernel(%arg0: i32, %arg1: memref<1x17x48xf32, #tpu.memory_space<vmem>>, %arg2: memref<48x32xbf16, #tpu.memory_space<vmem>>, %arg3: memref<17x32xf32, #tpu.memory_space<vmem>>, %arg4: memref<1x17x32xf32, #tpu.memory_space<vmem>>) attributes {dimension_semantics = [#tpu.dimension_semantics<parallel>], iteration_bounds = array<i64: 2>, scalar_prefetch = 0 : i64, scratch_operands = 0 : i64, tpu.core_type = #tpu.core_type<tc>, window_params = [{transform_indices = @transform_0, window_bounds = array<i64: 1, 17, 48>}, {pipeline_mode = #tpu.pipeline_mode<synchronous>, transform_indices = @transform_1, window_bounds = array<i64: 48, 32>}, {pipeline_mode = #tpu.pipeline_mode<synchronous>, transform_indices = @transform_2, window_bounds = array<i64: 17, 32>}, {transform_indices = @transform_3, window_bounds = array<i64: 1, 17, 32>}]} {
    %c0 = arith.constant 0 : index
    %c0_0 = arith.constant 0 : index
    %c0_1 = arith.constant 0 : index
    %0 = vector.load %arg1[%c0, %c0_0, %c0_1] : memref<1x17x48xf32, #tpu.memory_space<vmem>>, vector<1x17x48xf32>
    %1 = vector.shape_cast %0 : vector<1x17x48xf32> to vector<17x48xf32>
    %2 = arith.truncf %1 : vector<17x48xf32> to vector<17x48xbf16>
    %c0_2 = arith.constant 0 : index
    %c0_3 = arith.constant 0 : index
    %3 = vector.load %arg2[%c0_2, %c0_3] : memref<48x32xbf16, #tpu.memory_space<vmem>>, vector<48x32xbf16>
    %cst = arith.constant dense<0.000000e+00> : vector<17x32xf32>
    %4 = tpu.matmul %2, %3, %cst {dimension_numbers = #tpu.dot_dimension_numbers<[1], [0], [0], [1], [0, 0, 1, 1], [], []>} : vector<17x48xbf16>, vector<48x32xbf16>, vector<17x32xf32> -> vector<17x32xf32>
    %c0_4 = arith.constant 0 : index
    %c0_5 = arith.constant 0 : index
    %5 = vector.load %arg3[%c0_4, %c0_5] : memref<17x32xf32, #tpu.memory_space<vmem>>, vector<17x32xf32>
    %6 = arith.addf %4, %5 : vector<17x32xf32>
    %c0_6 = arith.constant 0 : index
    %c0_7 = arith.constant 0 : index
    %c0_8 = arith.constant 0 : index
    %7 = vector.load %arg4[%c0_6, %c0_7, %c0_8] : memref<1x17x32xf32, #tpu.memory_space<vmem>>, vector<1x17x32xf32>
    %8 = vector.shape_cast %7 : vector<1x17x32xf32> to vector<17x32xf32>
    %9 = vector.shape_cast %6 : vector<17x32xf32> to vector<1x17x32xf32>
    tpu.vector_store %arg4[%c0_6, %c0_7, %c0_8], %9 {strides = array<i32>} : memref<1x17x32xf32, #tpu.memory_space<vmem>>, vector<1x17x32xf32>,
    return
  }
  func.func @transform_0(%arg0: i32) -> (i32, i32, i32) {
    %c0_i32 = arith.constant 0 : i32
    %c0_i32_0 = arith.constant 0 : i32
    %c0_i32_1 = arith.constant 0 : i32
    return %arg0, %c0_i32, %c0_i32_0 : i32, i32, i32
  }
  func.func @transform_1(%arg0: i32) -> (i32, i32) {
    %c0_i32 = arith.constant 0 : i32
    %c0_i32_0 = arith.constant 0 : i32
    %c0_i32_1 = arith.constant 0 : i32
    return %c0_i32, %c0_i32_0 : i32, i32
  }
  func.func @transform_2(%arg0: i32) -> (i32, i32) {
    %c0_i32 = arith.constant 0 : i32
    %c0_i32_0 = arith.constant 0 : i32
    %c0_i32_1 = arith.constant 0 : i32
    return %c0_i32, %c0_i32_0 : i32, i32
  }
  func.func @transform_3(%arg0: i32) -> (i32, i32, i32) {
    %c0_i32 = arith.constant 0 : i32
    %c0_i32_0 = arith.constant 0 : i32
    %c0_i32_1 = arith.constant 0 : i32
    return %arg0, %c0_i32, %c0_i32_0 : i32, i32, i32
  }
}

module attributes {stable_mosaic.version = 11 : i64} {
  func.func @_block_kernel(%arg0: i32, %arg1: memref<1x17x32xf32, #tpu.memory_space<vmem>>, %arg2: memref<1x32xf32, #tpu.memory_space<vmem>>, %arg3: memref<1x32xf32, #tpu.memory_space<vmem>>, %arg4: memref<6x32x16xbf16, #tpu.memory_space<vmem>>, %arg5: memref<6x1x16xf32, #tpu.memory_space<vmem>>, %arg6: memref<2x16x32xbf16, #tpu.memory_space<vmem>>, %arg7: memref<1x32xf32, #tpu.memory_space<vmem>>, %arg8: memref<1x32xf32, #tpu.memory_space<vmem>>, %arg9: memref<1x32xf32, #tpu.memory_space<vmem>>, %arg10: memref<32x64xbf16, #tpu.memory_space<vmem>>, %arg11: memref<1x64xf32, #tpu.memory_space<vmem>>, %arg12: memref<64x32xbf16, #tpu.memory_space<vmem>>, %arg13: memref<1x32xf32, #tpu.memory_space<vmem>>, %arg14: memref<1x17x32xf32, #tpu.memory_space<vmem>>) attributes {dimension_semantics = [#tpu.dimension_semantics<parallel>], iteration_bounds = array<i64: 2>, scalar_prefetch = 0 : i64, scratch_operands = 0 : i64, tpu.core_type = #tpu.core_type<tc>, window_params = [{transform_indices = @transform_0, window_bounds = array<i64: 1, 17, 32>}, {pipeline_mode = #tpu.pipeline_mode<synchronous>, transform_indices = @transform_1, window_bounds = array<i64: 1, 32>}, {pipeline_mode = #tpu.pipeline_mode<synchronous>, transform_indices = @transform_2, window_bounds = array<i64: 1, 32>}, {pipeline_mode = #tpu.pipeline_mode<synchronous>, transform_indices = @transform_3, window_bounds = array<i64: 6, 32, 16>}, {pipeline_mode = #tpu.pipeline_mode<synchronous>, transform_indices = @transform_4, window_bounds = array<i64: 6, 1, 16>}, {pipeline_mode = #tpu.pipeline_mode<synchronous>, transform_indices = @transform_5, window_bounds = array<i64: 2, 16, 32>}, {pipeline_mode = #tpu.pipeline_mode<synchronous>, transform_indices = @transform_6, window_bounds = array<i64: 1, 32>}, {pipeline_mode = #tpu.pipeline_mode<synchronous>, transform_indices = @transform_7, window_bounds = array<i64: 1, 32>}, {pipeline_mode = #tpu.pipeline_mode<synchronous>, transform_indices = @transform_8, window_bounds = array<i64: 1, 32>}, {pipeline_mode = #tpu.pipeline_mode<synchronous>, transform_indices = @transform_9, window_bounds = array<i64: 32, 64>}, {pipeline_mode = #tpu.pipeline_mode<synchronous>, transform_indices = @transform_10, window_bounds = array<i64: 1, 64>}, {pipeline_mode = #tpu.pipeline_mode<synchronous>, transform_indices = @transform_11, window_bounds = array<i64: 64, 32>}, {pipeline_mode = #tpu.pipeline_mode<synchronous>, transform_indices = @transform_12, window_bounds = array<i64: 1, 32>}, {transform_indices = @transform_13, window_bounds = array<i64: 1, 17, 32>}]} {
    %c0 = arith.constant 0 : index
    %c0_0 = arith.constant 0 : index
    %c0_1 = arith.constant 0 : index
    %0 = vector.load %arg1[%c0, %c0_0, %c0_1] : memref<1x17x32xf32, #tpu.memory_space<vmem>>, vector<1x17x32xf32>
    %1 = vector.shape_cast %0 : vector<1x17x32xf32> to vector<17x32xf32>
    %c0_2 = arith.constant 0 : index
    %c0_3 = arith.constant 0 : index
    %2 = vector.load %arg2[%c0_2, %c0_3] : memref<1x32xf32, #tpu.memory_space<vmem>>, vector<1x32xf32>
    %c0_4 = arith.constant 0 : index
    %c0_5 = arith.constant 0 : index
    %3 = vector.load %arg3[%c0_4, %c0_5] : memref<1x32xf32, #tpu.memory_space<vmem>>, vector<1x32xf32>
    %cst = arith.constant dense<0.000000e+00> : vector<17xf32>
    %4 = vector.multi_reduction <add>, %1, %cst [1] : vector<17x32xf32> to vector<17xf32>
    %5 = vector.shape_cast %4 : vector<17xf32> to vector<17x1xf32>
    %cst_6 = arith.constant 3.200000e+01 : f32
    %6 = vector.broadcast %cst_6 : f32 to vector<17x1xf32>
    %7 = arith.divf %5, %6 : vector<17x1xf32>
    %8 = vector.broadcast %7 : vector<17x1xf32> to vector<17x32xf32>
    %9 = arith.subf %1, %8 : vector<17x32xf32>
    %10 = arith.mulf %9, %9 : vector<17x32xf32>
    %cst_7 = arith.constant dense<0.000000e+00> : vector<17xf32>
    %11 = vector.multi_reduction <add>, %10, %cst_7 [1] : vector<17x32xf32> to vector<17xf32>
    %12 = vector.shape_cast %11 : vector<17xf32> to vector<17x1xf32>
    %cst_8 = arith.constant 3.200000e+01 : f32
    %13 = vector.broadcast %cst_8 : f32 to vector<17x1xf32>
    %14 = arith.divf %12, %13 : vector<17x1xf32>
    %15 = vector.broadcast %7 : vector<17x1xf32> to vector<17x32xf32>
    %16 = arith.subf %1, %15 : vector<17x32xf32>
    %cst_9 = arith.constant 9.99999997E-7 : f32
    %17 = vector.broadcast %cst_9 : f32 to vector<17x1xf32>
    %18 = arith.addf %14, %17 : vector<17x1xf32>
    %19 = math.rsqrt %18 : vector<17x1xf32>
    %20 = vector.broadcast %19 : vector<17x1xf32> to vector<17x32xf32>
    %21 = arith.mulf %16, %20 : vector<17x32xf32>
    %22 = vector.broadcast %2 : vector<1x32xf32> to vector<17x32xf32>
    %23 = arith.mulf %21, %22 : vector<17x32xf32>
    %24 = vector.broadcast %3 : vector<1x32xf32> to vector<17x32xf32>
    %25 = arith.addf %23, %24 : vector<17x32xf32>
    %26 = arith.truncf %25 : vector<17x32xf32> to vector<17x32xbf16>
    %cst_10 = arith.constant 0.000000e+00 : f32
    %27 = vector.broadcast %cst_10 : f32 to vector<17x32xf32>
    %c0_11 = arith.constant 0 : index
    %c0_12 = arith.constant 0 : index
    %c0_13 = arith.constant 0 : index
    %28 = vector.load %arg4[%c0_11, %c0_12, %c0_13] : memref<6x32x16xbf16, #tpu.memory_space<vmem>>, vector<1x32x16xbf16>
    %29 = vector.shape_cast %28 : vector<1x32x16xbf16> to vector<32x16xbf16>
    %cst_14 = arith.constant dense<0.000000e+00> : vector<17x16xf32>
    %30 = tpu.matmul %26, %29, %cst_14 {dimension_numbers = #tpu.dot_dimension_numbers<[1], [0], [0], [1], [0, 0, 1, 1], [], []>} : vector<17x32xbf16>, vector<32x16xbf16>, vector<17x16xf32> -> vector<17x16xf32>
    %c0_15 = arith.constant 0 : index
    %c0_16 = arith.constant 0 : index
    %c0_17 = arith.constant 0 : index
    %31 = vector.load %arg5[%c0_15, %c0_16, %c0_17] : memref<6x1x16xf32, #tpu.memory_space<vmem>>, vector<1x1x16xf32>
    %32 = vector.shape_cast %31 : vector<1x1x16xf32> to vector<1x16xf32>
    %33 = vector.broadcast %32 : vector<1x16xf32> to vector<17x16xf32>
    %34 = arith.addf %30, %33 : vector<17x16xf32>
    %c2 = arith.constant 2 : index
    %c0_18 = arith.constant 0 : index
    %c0_19 = arith.constant 0 : index
    %35 = vector.load %arg4[%c2, %c0_18, %c0_19] : memref<6x32x16xbf16, #tpu.memory_space<vmem>>, vector<1x32x16xbf16>
    %36 = vector.shape_cast %35 : vector<1x32x16xbf16> to vector<32x16xbf16>
    %cst_20 = arith.constant dense<0.000000e+00> : vector<17x16xf32>
    %37 = tpu.matmul %26, %36, %cst_20 {dimension_numbers = #tpu.dot_dimension_numbers<[1], [0], [0], [1], [0, 0, 1, 1], [], []>} : vector<17x32xbf16>, vector<32x16xbf16>, vector<17x16xf32> -> vector<17x16xf32>
    %c2_21 = arith.constant 2 : index
    %c0_22 = arith.constant 0 : index
    %c0_23 = arith.constant 0 : index
    %38 = vector.load %arg5[%c2_21, %c0_22, %c0_23] : memref<6x1x16xf32, #tpu.memory_space<vmem>>, vector<1x1x16xf32>
    %39 = vector.shape_cast %38 : vector<1x1x16xf32> to vector<1x16xf32>
    %40 = vector.broadcast %39 : vector<1x16xf32> to vector<17x16xf32>
    %41 = arith.addf %37, %40 : vector<17x16xf32>
    %c4 = arith.constant 4 : index
    %c0_24 = arith.constant 0 : index
    %c0_25 = arith.constant 0 : index
    %42 = vector.load %arg4[%c4, %c0_24, %c0_25] : memref<6x32x16xbf16, #tpu.memory_space<vmem>>, vector<1x32x16xbf16>
    %43 = vector.shape_cast %42 : vector<1x32x16xbf16> to vector<32x16xbf16>
    %cst_26 = arith.constant dense<0.000000e+00> : vector<17x16xf32>
    %44 = tpu.matmul %26, %43, %cst_26 {dimension_numbers = #tpu.dot_dimension_numbers<[1], [0], [0], [1], [0, 0, 1, 1], [], []>} : vector<17x32xbf16>, vector<32x16xbf16>, vector<17x16xf32> -> vector<17x16xf32>
    %c4_27 = arith.constant 4 : index
    %c0_28 = arith.constant 0 : index
    %c0_29 = arith.constant 0 : index
    %45 = vector.load %arg5[%c4_27, %c0_28, %c0_29] : memref<6x1x16xf32, #tpu.memory_space<vmem>>, vector<1x1x16xf32>
    %46 = vector.shape_cast %45 : vector<1x1x16xf32> to vector<1x16xf32>
    %47 = vector.broadcast %46 : vector<1x16xf32> to vector<17x16xf32>
    %48 = arith.addf %44, %47 : vector<17x16xf32>
    %49 = arith.truncf %34 : vector<17x16xf32> to vector<17x16xbf16>
    %50 = arith.truncf %41 : vector<17x16xf32> to vector<17x16xbf16>
    %cst_30 = arith.constant dense<0.000000e+00> : vector<17x17xf32>
    %51 = tpu.matmul %49, %50, %cst_30 {dimension_numbers = #tpu.dot_dimension_numbers<[1], [1], [0], [0], [0, 0, 1, 0], [], []>} : vector<17x16xbf16>, vector<17x16xbf16>, vector<17x17xf32> -> vector<17x17xf32>
    %cst_31 = arith.constant 2.500000e-01 : f32
    %52 = vector.broadcast %cst_31 : f32 to vector<17x17xf32>
    %53 = arith.mulf %51, %52 : vector<17x17xf32>
    %cst_32 = arith.constant dense<0xFF800000> : vector<17xf32>
    %54 = vector.multi_reduction <maximumf>, %53, %cst_32 [1] : vector<17x17xf32> to vector<17xf32>
    %55 = vector.shape_cast %54 : vector<17xf32> to vector<17x1xf32>
    %56 = vector.broadcast %55 : vector<17x1xf32> to vector<17x17xf32>
    %57 = arith.subf %53, %56 : vector<17x17xf32>
    %58 = math.exp %57 : vector<17x17xf32>
    %cst_33 = arith.constant dense<0.000000e+00> : vector<17xf32>
    %59 = vector.multi_reduction <add>, %58, %cst_33 [1] : vector<17x17xf32> to vector<17xf32>
    %60 = vector.shape_cast %59 : vector<17xf32> to vector<17x1xf32>
    %61 = tpu.reciprocal %60 {approx = true} : vector<17x1xf32> -> vector<17x1xf32>
    %62 = vector.broadcast %61 : vector<17x1xf32> to vector<17x17xf32>
    %63 = arith.mulf %58, %62 : vector<17x17xf32>
    %64 = arith.truncf %63 : vector<17x17xf32> to vector<17x17xbf16>
    %65 = arith.truncf %48 : vector<17x16xf32> to vector<17x16xbf16>
    %cst_34 = arith.constant dense<0.000000e+00> : vector<17x16xf32>
    %66 = tpu.matmul %64, %65, %cst_34 {dimension_numbers = #tpu.dot_dimension_numbers<[1], [0], [0], [1], [0, 0, 1, 1], [], []>} : vector<17x17xbf16>, vector<17x16xbf16>, vector<17x16xf32> -> vector<17x16xf32>
    %67 = arith.truncf %66 : vector<17x16xf32> to vector<17x16xbf16>
    %c0_35 = arith.constant 0 : index
    %c0_36 = arith.constant 0 : index
    %c0_37 = arith.constant 0 : index
    %68 = vector.load %arg6[%c0_35, %c0_36, %c0_37] : memref<2x16x32xbf16, #tpu.memory_space<vmem>>, vector<1x16x32xbf16>
    %69 = vector.shape_cast %68 : vector<1x16x32xbf16> to vector<16x32xbf16>
    %cst_38 = arith.constant dense<0.000000e+00> : vector<17x32xf32>
    %70 = tpu.matmul %67, %69, %cst_38 {dimension_numbers = #tpu.dot_dimension_numbers<[1], [0], [0], [1], [0, 0, 1, 1], [], []>} : vector<17x16xbf16>, vector<16x32xbf16>, vector<17x32xf32> -> vector<17x32xf32>
    %71 = arith.addf %27, %70 : vector<17x32xf32>
    %c1 = arith.constant 1 : index
    %c0_39 = arith.constant 0 : index
    %c0_40 = arith.constant 0 : index
    %72 = vector.load %arg4[%c1, %c0_39, %c0_40] : memref<6x32x16xbf16, #tpu.memory_space<vmem>>, vector<1x32x16xbf16>
    %73 = vector.shape_cast %72 : vector<1x32x16xbf16> to vector<32x16xbf16>
    %cst_41 = arith.constant dense<0.000000e+00> : vector<17x16xf32>
    %74 = tpu.matmul %26, %73, %cst_41 {dimension_numbers = #tpu.dot_dimension_numbers<[1], [0], [0], [1], [0, 0, 1, 1], [], []>} : vector<17x32xbf16>, vector<32x16xbf16>, vector<17x16xf32> -> vector<17x16xf32>
    %c1_42 = arith.constant 1 : index
    %c0_43 = arith.constant 0 : index
    %c0_44 = arith.constant 0 : index
    %75 = vector.load %arg5[%c1_42, %c0_43, %c0_44] : memref<6x1x16xf32, #tpu.memory_space<vmem>>, vector<1x1x16xf32>
    %76 = vector.shape_cast %75 : vector<1x1x16xf32> to vector<1x16xf32>
    %77 = vector.broadcast %76 : vector<1x16xf32> to vector<17x16xf32>
    %78 = arith.addf %74, %77 : vector<17x16xf32>
    %c3 = arith.constant 3 : index
    %c0_45 = arith.constant 0 : index
    %c0_46 = arith.constant 0 : index
    %79 = vector.load %arg4[%c3, %c0_45, %c0_46] : memref<6x32x16xbf16, #tpu.memory_space<vmem>>, vector<1x32x16xbf16>
    %80 = vector.shape_cast %79 : vector<1x32x16xbf16> to vector<32x16xbf16>
    %cst_47 = arith.constant dense<0.000000e+00> : vector<17x16xf32>
    %81 = tpu.matmul %26, %80, %cst_47 {dimension_numbers = #tpu.dot_dimension_numbers<[1], [0], [0], [1], [0, 0, 1, 1], [], []>} : vector<17x32xbf16>, vector<32x16xbf16>, vector<17x16xf32> -> vector<17x16xf32>
    %c3_48 = arith.constant 3 : index
    %c0_49 = arith.constant 0 : index
    %c0_50 = arith.constant 0 : index
    %82 = vector.load %arg5[%c3_48, %c0_49, %c0_50] : memref<6x1x16xf32, #tpu.memory_space<vmem>>, vector<1x1x16xf32>
    %83 = vector.shape_cast %82 : vector<1x1x16xf32> to vector<1x16xf32>
    %84 = vector.broadcast %83 : vector<1x16xf32> to vector<17x16xf32>
    %85 = arith.addf %81, %84 : vector<17x16xf32>
    %c5 = arith.constant 5 : index
    %c0_51 = arith.constant 0 : index
    %c0_52 = arith.constant 0 : index
    %86 = vector.load %arg4[%c5, %c0_51, %c0_52] : memref<6x32x16xbf16, #tpu.memory_space<vmem>>, vector<1x32x16xbf16>
    %87 = vector.shape_cast %86 : vector<1x32x16xbf16> to vector<32x16xbf16>
    %cst_53 = arith.constant dense<0.000000e+00> : vector<17x16xf32>
    %88 = tpu.matmul %26, %87, %cst_53 {dimension_numbers = #tpu.dot_dimension_numbers<[1], [0], [0], [1], [0, 0, 1, 1], [], []>} : vector<17x32xbf16>, vector<32x16xbf16>, vector<17x16xf32> -> vector<17x16xf32>
    %c5_54 = arith.constant 5 : index
    %c0_55 = arith.constant 0 : index
    %c0_56 = arith.constant 0 : index
    %89 = vector.load %arg5[%c5_54, %c0_55, %c0_56] : memref<6x1x16xf32, #tpu.memory_space<vmem>>, vector<1x1x16xf32>
    %90 = vector.shape_cast %89 : vector<1x1x16xf32> to vector<1x16xf32>
    %91 = vector.broadcast %90 : vector<1x16xf32> to vector<17x16xf32>
    %92 = arith.addf %88, %91 : vector<17x16xf32>
    %93 = arith.truncf %78 : vector<17x16xf32> to vector<17x16xbf16>
    %94 = arith.truncf %85 : vector<17x16xf32> to vector<17x16xbf16>
    %cst_57 = arith.constant dense<0.000000e+00> : vector<17x17xf32>
    %95 = tpu.matmul %93, %94, %cst_57 {dimension_numbers = #tpu.dot_dimension_numbers<[1], [1], [0], [0], [0, 0, 1, 0], [], []>} : vector<17x16xbf16>, vector<17x16xbf16>, vector<17x17xf32> -> vector<17x17xf32>
    %cst_58 = arith.constant 2.500000e-01 : f32
    %96 = vector.broadcast %cst_58 : f32 to vector<17x17xf32>
    %97 = arith.mulf %95, %96 : vector<17x17xf32>
    %cst_59 = arith.constant dense<0xFF800000> : vector<17xf32>
    %98 = vector.multi_reduction <maximumf>, %97, %cst_59 [1] : vector<17x17xf32> to vector<17xf32>
    %99 = vector.shape_cast %98 : vector<17xf32> to vector<17x1xf32>
    %100 = vector.broadcast %99 : vector<17x1xf32> to vector<17x17xf32>
    %101 = arith.subf %97, %100 : vector<17x17xf32>
    %102 = math.exp %101 : vector<17x17xf32>
    %cst_60 = arith.constant dense<0.000000e+00> : vector<17xf32>
    %103 = vector.multi_reduction <add>, %102, %cst_60 [1] : vector<17x17xf32> to vector<17xf32>
    %104 = vector.shape_cast %103 : vector<17xf32> to vector<17x1xf32>
    %105 = tpu.reciprocal %104 {approx = true} : vector<17x1xf32> -> vector<17x1xf32>
    %106 = vector.broadcast %105 : vector<17x1xf32> to vector<17x17xf32>
    %107 = arith.mulf %102, %106 : vector<17x17xf32>
    %108 = arith.truncf %107 : vector<17x17xf32> to vector<17x17xbf16>
    %109 = arith.truncf %92 : vector<17x16xf32> to vector<17x16xbf16>
    %cst_61 = arith.constant dense<0.000000e+00> : vector<17x16xf32>
    %110 = tpu.matmul %108, %109, %cst_61 {dimension_numbers = #tpu.dot_dimension_numbers<[1], [0], [0], [1], [0, 0, 1, 1], [], []>} : vector<17x17xbf16>, vector<17x16xbf16>, vector<17x16xf32> -> vector<17x16xf32>
    %111 = arith.truncf %110 : vector<17x16xf32> to vector<17x16xbf16>
    %c1_62 = arith.constant 1 : index
    %c0_63 = arith.constant 0 : index
    %c0_64 = arith.constant 0 : index
    %112 = vector.load %arg6[%c1_62, %c0_63, %c0_64] : memref<2x16x32xbf16, #tpu.memory_space<vmem>>, vector<1x16x32xbf16>
    %113 = vector.shape_cast %112 : vector<1x16x32xbf16> to vector<16x32xbf16>
    %cst_65 = arith.constant dense<0.000000e+00> : vector<17x32xf32>
    %114 = tpu.matmul %111, %113, %cst_65 {dimension_numbers = #tpu.dot_dimension_numbers<[1], [0], [0], [1], [0, 0, 1, 1], [], []>} : vector<17x16xbf16>, vector<16x32xbf16>, vector<17x32xf32> -> vector<17x32xf32>
    %115 = arith.addf %71, %114 : vector<17x32xf32>
    %116 = arith.addf %1, %115 : vector<17x32xf32>
    %c0_66 = arith.constant 0 : index
    %c0_67 = arith.constant 0 : index
    %117 = vector.load %arg7[%c0_66, %c0_67] : memref<1x32xf32, #tpu.memory_space<vmem>>, vector<1x32xf32>
    %118 = vector.broadcast %117 : vector<1x32xf32> to vector<17x32xf32>
    %119 = arith.addf %116, %118 : vector<17x32xf32>
    %c0_68 = arith.constant 0 : index
    %c0_69 = arith.constant 0 : index
    %120 = vector.load %arg8[%c0_68, %c0_69] : memref<1x32xf32, #tpu.memory_space<vmem>>, vector<1x32xf32>
    %c0_70 = arith.constant 0 : index
    %c0_71 = arith.constant 0 : index
    %121 = vector.load %arg9[%c0_70, %c0_71] : memref<1x32xf32, #tpu.memory_space<vmem>>, vector<1x32xf32>
    %cst_72 = arith.constant dense<0.000000e+00> : vector<17xf32>
    %122 = vector.multi_reduction <add>, %119, %cst_72 [1] : vector<17x32xf32> to vector<17xf32>
    %123 = vector.shape_cast %122 : vector<17xf32> to vector<17x1xf32>
    %cst_73 = arith.constant 3.200000e+01 : f32
    %124 = vector.broadcast %cst_73 : f32 to vector<17x1xf32>
    %125 = arith.divf %123, %124 : vector<17x1xf32>
    %126 = vector.broadcast %125 : vector<17x1xf32> to vector<17x32xf32>
    %127 = arith.subf %119, %126 : vector<17x32xf32>
    %128 = arith.mulf %127, %127 : vector<17x32xf32>
    %cst_74 = arith.constant dense<0.000000e+00> : vector<17xf32>
    %129 = vector.multi_reduction <add>, %128, %cst_74 [1] : vector<17x32xf32> to vector<17xf32>
    %130 = vector.shape_cast %129 : vector<17xf32> to vector<17x1xf32>
    %cst_75 = arith.constant 3.200000e+01 : f32
    %131 = vector.broadcast %cst_75 : f32 to vector<17x1xf32>
    %132 = arith.divf %130, %131 : vector<17x1xf32>
    %133 = vector.broadcast %125 : vector<17x1xf32> to vector<17x32xf32>
    %134 = arith.subf %119, %133 : vector<17x32xf32>
    %cst_76 = arith.constant 9.99999997E-7 : f32
    %135 = vector.broadcast %cst_76 : f32 to vector<17x1xf32>
    %136 = arith.addf %132, %135 : vector<17x1xf32>
    %137 = math.rsqrt %136 : vector<17x1xf32>
    %138 = vector.broadcast %137 : vector<17x1xf32> to vector<17x32xf32>
    %139 = arith.mulf %134, %138 : vector<17x32xf32>
    %140 = vector.broadcast %120 : vector<1x32xf32> to vector<17x32xf32>
    %141 = arith.mulf %139, %140 : vector<17x32xf32>
    %142 = vector.broadcast %121 : vector<1x32xf32> to vector<17x32xf32>
    %143 = arith.addf %141, %142 : vector<17x32xf32>
    %144 = arith.truncf %143 : vector<17x32xf32> to vector<17x32xbf16>
    %c0_77 = arith.constant 0 : index
    %c0_78 = arith.constant 0 : index
    %145 = vector.load %arg10[%c0_77, %c0_78] : memref<32x64xbf16, #tpu.memory_space<vmem>>, vector<32x64xbf16>
    %cst_79 = arith.constant dense<0.000000e+00> : vector<17x64xf32>
    %146 = tpu.matmul %144, %145, %cst_79 {dimension_numbers = #tpu.dot_dimension_numbers<[1], [0], [0], [1], [0, 0, 1, 1], [], []>} : vector<17x32xbf16>, vector<32x64xbf16>, vector<17x64xf32> -> vector<17x64xf32>
    %c0_80 = arith.constant 0 : index
    %c0_81 = arith.constant 0 : index
    %147 = vector.load %arg11[%c0_80, %c0_81] : memref<1x64xf32, #tpu.memory_space<vmem>>, vector<1x64xf32>
    %148 = vector.broadcast %147 : vector<1x64xf32> to vector<17x64xf32>
    %149 = arith.addf %146, %148 : vector<17x64xf32>
    %cst_82 = arith.constant 5.000000e-01 : f32
    %150 = vector.broadcast %cst_82 : f32 to vector<17x64xf32>
    %151 = arith.mulf %150, %149 : vector<17x64xf32>
    %cst_83 = arith.constant 0.707106769 : f32
    %152 = vector.broadcast %cst_83 : f32 to vector<17x64xf32>
    %153 = arith.mulf %149, %152 : vector<17x64xf32>
    %cst_84 = arith.constant 0.000000e+00 : f32
    %154 = vector.broadcast %cst_84 : f32 to vector<17x64xf32>
    %155 = arith.cmpf oge, %153, %154 : vector<17x64xf32>
    %cst_85 = arith.constant 1.000000e+00 : f32
    %cst_86 = arith.constant -1.000000e+00 : f32
    %156 = vector.broadcast %cst_85 : f32 to vector<17x64xf32>
    %157 = vector.broadcast %cst_86 : f32 to vector<17x64xf32>
    %158 = arith.select %155, %156, %157 : vector<17x64xi1>, vector<17x64xf32>
    %159 = math.absf %153 : vector<17x64xf32>
    %cst_87 = arith.constant 0.327591091 : f32
    %160 = vector.broadcast %cst_87 : f32 to vector<17x64xf32>
    %161 = arith.mulf %160, %159 : vector<17x64xf32>
    %cst_88 = arith.constant 1.000000e+00 : f32
    %162 = vector.broadcast %cst_88 : f32 to vector<17x64xf32>
    %163 = arith.addf %162, %161 : vector<17x64xf32>
    %cst_89 = arith.constant 1.000000e+00 : f32
    %164 = vector.broadcast %cst_89 : f32 to vector<17x64xf32>
    %165 = arith.divf %164, %163 : vector<17x64xf32>
    %cst_90 = arith.constant 1.06140542 : f32
    %166 = vector.broadcast %cst_90 : f32 to vector<17x64xf32>
    %167 = arith.mulf %166, %165 : vector<17x64xf32>
    %cst_91 = arith.constant -1.45315206 : f32
    %168 = vector.broadcast %cst_91 : f32 to vector<17x64xf32>
    %169 = arith.addf %167, %168 : vector<17x64xf32>
    %170 = arith.mulf %169, %165 : vector<17x64xf32>
    %cst_92 = arith.constant 1.42141378 : f32
    %171 = vector.broadcast %cst_92 : f32 to vector<17x64xf32>
    %172 = arith.addf %170, %171 : vector<17x64xf32>
    %173 = arith.mulf %172, %165 : vector<17x64xf32>
    %cst_93 = arith.constant -0.284496725 : f32
    %174 = vector.broadcast %cst_93 : f32 to vector<17x64xf32>
    %175 = arith.addf %173, %174 : vector<17x64xf32>
    %176 = arith.mulf %175, %165 : vector<17x64xf32>
    %cst_94 = arith.constant 0.254829586 : f32
    %177 = vector.broadcast %cst_94 : f32 to vector<17x64xf32>
    %178 = arith.addf %176, %177 : vector<17x64xf32>
    %179 = arith.mulf %178, %165 : vector<17x64xf32>
    %cst_95 = arith.constant 0.000000e+00 : f32
    %180 = vector.broadcast %cst_95 : f32 to vector<17x64xf32>
    %181 = arith.subf %180, %159 : vector<17x64xf32>
    %182 = arith.mulf %181, %159 : vector<17x64xf32>
    %183 = math.exp %182 : vector<17x64xf32>
    %184 = arith.mulf %179, %183 : vector<17x64xf32>
    %cst_96 = arith.constant 1.000000e+00 : f32
    %185 = vector.broadcast %cst_96 : f32 to vector<17x64xf32>
    %186 = arith.subf %185, %184 : vector<17x64xf32>
    %187 = arith.mulf %158, %186 : vector<17x64xf32>
    %cst_97 = arith.constant 1.000000e+00 : f32
    %188 = vector.broadcast %cst_97 : f32 to vector<17x64xf32>
    %189 = arith.addf %188, %187 : vector<17x64xf32>
    %190 = arith.mulf %151, %189 : vector<17x64xf32>
    %191 = arith.truncf %190 : vector<17x64xf32> to vector<17x64xbf16>
    %c0_98 = arith.constant 0 : index
    %c0_99 = arith.constant 0 : index
    %192 = vector.load %arg12[%c0_98, %c0_99] : memref<64x32xbf16, #tpu.memory_space<vmem>>, vector<64x32xbf16>
    %cst_100 = arith.constant dense<0.000000e+00> : vector<17x32xf32>
    %193 = tpu.matmul %191, %192, %cst_100 {dimension_numbers = #tpu.dot_dimension_numbers<[1], [0], [0], [1], [0, 0, 1, 1], [], []>} : vector<17x64xbf16>, vector<64x32xbf16>, vector<17x32xf32> -> vector<17x32xf32>
    %c0_101 = arith.constant 0 : index
    %c0_102 = arith.constant 0 : index
    %194 = vector.load %arg13[%c0_101, %c0_102] : memref<1x32xf32, #tpu.memory_space<vmem>>, vector<1x32xf32>
    %195 = vector.broadcast %194 : vector<1x32xf32> to vector<17x32xf32>
    %196 = arith.addf %193, %195 : vector<17x32xf32>
    %197 = arith.addf %119, %196 : vector<17x32xf32>
    %c0_103 = arith.constant 0 : index
    %c0_104 = arith.constant 0 : index
    %c0_105 = arith.constant 0 : index
    %198 = vector.load %arg14[%c0_103, %c0_104, %c0_105] : memref<1x17x32xf32, #tpu.memory_space<vmem>>, vector<1x17x32xf32>
    %199 = vector.shape_cast %198 : vector<1x17x32xf32> to vector<17x32xf32>
    %200 = vector.shape_cast %197 : vector<17x32xf32> to vector<1x17x32xf32>
    tpu.vector_store %arg14[%c0_103, %c0_104, %c0_105], %200 {strides = array<i32>} : memref<1x17x32xf32, #tpu.memory_space<vmem>>, vector<1x17x32xf32>,
    return
  }
  func.func @transform_0(%arg0: i32) -> (i32, i32, i32) {
    %c0_i32 = arith.constant 0 : i32
    %c0_i32_0 = arith.constant 0 : i32
    %c0_i32_1 = arith.constant 0 : i32
    return %arg0, %c0_i32, %c0_i32_0 : i32, i32, i32
  }
  func.func @transform_1(%arg0: i32) -> (i32, i32) {
    %c0_i32 = arith.constant 0 : i32
    %c0_i32_0 = arith.constant 0 : i32
    %c0_i32_1 = arith.constant 0 : i32
    return %c0_i32, %c0_i32_0 : i32, i32
  }
  func.func @transform_2(%arg0: i32) -> (i32, i32) {
    %c0_i32 = arith.constant 0 : i32
    %c0_i32_0 = arith.constant 0 : i32
    %c0_i32_1 = arith.constant 0 : i32
    return %c0_i32, %c0_i32_0 : i32, i32
  }
  func.func @transform_3(%arg0: i32) -> (i32, i32, i32) {
    %c0_i32 = arith.constant 0 : i32
    %c0_i32_0 = arith.constant 0 : i32
    %c0_i32_1 = arith.constant 0 : i32
    %c0_i32_2 = arith.constant 0 : i32
    return %c0_i32, %c0_i32_0, %c0_i32_1 : i32, i32, i32
  }
  func.func @transform_4(%arg0: i32) -> (i32, i32, i32) {
    %c0_i32 = arith.constant 0 : i32
    %c0_i32_0 = arith.constant 0 : i32
    %c0_i32_1 = arith.constant 0 : i32
    %c0_i32_2 = arith.constant 0 : i32
    return %c0_i32, %c0_i32_0, %c0_i32_1 : i32, i32, i32
  }
  func.func @transform_5(%arg0: i32) -> (i32, i32, i32) {
    %c0_i32 = arith.constant 0 : i32
    %c0_i32_0 = arith.constant 0 : i32
    %c0_i32_1 = arith.constant 0 : i32
    %c0_i32_2 = arith.constant 0 : i32
    return %c0_i32, %c0_i32_0, %c0_i32_1 : i32, i32, i32
  }
  func.func @transform_6(%arg0: i32) -> (i32, i32) {
    %c0_i32 = arith.constant 0 : i32
    %c0_i32_0 = arith.constant 0 : i32
    %c0_i32_1 = arith.constant 0 : i32
    return %c0_i32, %c0_i32_0 : i32, i32
  }
  func.func @transform_7(%arg0: i32) -> (i32, i32) {
    %c0_i32 = arith.constant 0 : i32
    %c0_i32_0 = arith.constant 0 : i32
    %c0_i32_1 = arith.constant 0 : i32
    return %c0_i32, %c0_i32_0 : i32, i32
  }
  func.func @transform_8(%arg0: i32) -> (i32, i32) {
    %c0_i32 = arith.constant 0 : i32
    %c0_i32_0 = arith.constant 0 : i32
    %c0_i32_1 = arith.constant 0 : i32
    return %c0_i32, %c0_i32_0 : i32, i32
  }
  func.func @transform_9(%arg0: i32) -> (i32, i32) {
    %c0_i32 = arith.constant 0 : i32
    %c0_i32_0 = arith.constant 0 : i32
    %c0_i32_1 = arith.constant 0 : i32
    return %c0_i32, %c0_i32_0 : i32, i32
  }
  func.func @transform_10(%arg0: i32) -> (i32, i32) {
    %c0_i32 = arith.constant 0 : i32
    %c0_i32_0 = arith.constant 0 : i32
    %c0_i32_1 = arith.constant 0 : i32
    return %c0_i32, %c0_i32_0 : i32, i32
  }
  func.func @transform_11(%arg0: i32) -> (i32, i32) {
    %c0_i32 = arith.constant 0 : i32
    %c0_i32_0 = arith.constant 0 : i32
    %c0_i32_1 = arith.constant 0 : i32
    return %c0_i32, %c0_i32_0 : i32, i32
  }
  func.func @transform_12(%arg0: i32) -> (i32, i32) {
    %c0_i32 = arith.constant 0 : i32
    %c0_i32_0 = arith.constant 0 : i32
    %c0_i32_1 = arith.constant 0 : i32
    return %c0_i32, %c0_i32_0 : i32, i32
  }
  func.func @transform_13(%arg0: i32) -> (i32, i32, i32) {
    %c0_i32 = arith.constant 0 : i32
    %c0_i32_0 = arith.constant 0 : i32
    %c0_i32_1 = arith.constant 0 : i32
    return %arg0, %c0_i32, %c0_i32_0 : i32, i32, i32
  }
}

module attributes {stable_mosaic.version = 11 : i64} {
  func.func @_decoder_kernel(%arg0: i32, %arg1: memref<1x17x32xf32, #tpu.memory_space<vmem>>, %arg2: memref<1x32xf32, #tpu.memory_space<vmem>>, %arg3: memref<1x32xf32, #tpu.memory_space<vmem>>, %arg4: memref<32x5xf32, #tpu.memory_space<vmem>>, %arg5: memref<1x5xf32, #tpu.memory_space<vmem>>, %arg6: memref<256x17xf32, #tpu.memory_space<vmem>>, %arg7: memref<1x256x5xf32, #tpu.memory_space<vmem>>) attributes {dimension_semantics = [#tpu.dimension_semantics<parallel>], iteration_bounds = array<i64: 2>, scalar_prefetch = 0 : i64, scratch_operands = 0 : i64, tpu.core_type = #tpu.core_type<tc>, window_params = [{transform_indices = @transform_0, window_bounds = array<i64: 1, 17, 32>}, {pipeline_mode = #tpu.pipeline_mode<synchronous>, transform_indices = @transform_1, window_bounds = array<i64: 1, 32>}, {pipeline_mode = #tpu.pipeline_mode<synchronous>, transform_indices = @transform_2, window_bounds = array<i64: 1, 32>}, {pipeline_mode = #tpu.pipeline_mode<synchronous>, transform_indices = @transform_3, window_bounds = array<i64: 32, 5>}, {pipeline_mode = #tpu.pipeline_mode<synchronous>, transform_indices = @transform_4, window_bounds = array<i64: 1, 5>}, {pipeline_mode = #tpu.pipeline_mode<synchronous>, transform_indices = @transform_5, window_bounds = array<i64: 256, 17>}, {transform_indices = @transform_6, window_bounds = array<i64: 1, 256, 5>}]} {
    %c0 = arith.constant 0 : index
    %c0_0 = arith.constant 0 : index
    %c0_1 = arith.constant 0 : index
    %0 = vector.load %arg1[%c0, %c0_0, %c0_1] : memref<1x17x32xf32, #tpu.memory_space<vmem>>, vector<1x17x32xf32>
    %1 = vector.shape_cast %0 : vector<1x17x32xf32> to vector<17x32xf32>
    %c0_2 = arith.constant 0 : index
    %c0_3 = arith.constant 0 : index
    %2 = vector.load %arg2[%c0_2, %c0_3] : memref<1x32xf32, #tpu.memory_space<vmem>>, vector<1x32xf32>
    %c0_4 = arith.constant 0 : index
    %c0_5 = arith.constant 0 : index
    %3 = vector.load %arg3[%c0_4, %c0_5] : memref<1x32xf32, #tpu.memory_space<vmem>>, vector<1x32xf32>
    %cst = arith.constant dense<0.000000e+00> : vector<17xf32>
    %4 = vector.multi_reduction <add>, %1, %cst [1] : vector<17x32xf32> to vector<17xf32>
    %5 = vector.shape_cast %4 : vector<17xf32> to vector<17x1xf32>
    %cst_6 = arith.constant 3.200000e+01 : f32
    %6 = vector.broadcast %cst_6 : f32 to vector<17x1xf32>
    %7 = arith.divf %5, %6 : vector<17x1xf32>
    %8 = vector.broadcast %7 : vector<17x1xf32> to vector<17x32xf32>
    %9 = arith.subf %1, %8 : vector<17x32xf32>
    %10 = arith.mulf %9, %9 : vector<17x32xf32>
    %cst_7 = arith.constant dense<0.000000e+00> : vector<17xf32>
    %11 = vector.multi_reduction <add>, %10, %cst_7 [1] : vector<17x32xf32> to vector<17xf32>
    %12 = vector.shape_cast %11 : vector<17xf32> to vector<17x1xf32>
    %cst_8 = arith.constant 3.200000e+01 : f32
    %13 = vector.broadcast %cst_8 : f32 to vector<17x1xf32>
    %14 = arith.divf %12, %13 : vector<17x1xf32>
    %15 = vector.broadcast %7 : vector<17x1xf32> to vector<17x32xf32>
    %16 = arith.subf %1, %15 : vector<17x32xf32>
    %cst_9 = arith.constant 9.99999997E-7 : f32
    %17 = vector.broadcast %cst_9 : f32 to vector<17x1xf32>
    %18 = arith.addf %14, %17 : vector<17x1xf32>
    %19 = math.rsqrt %18 : vector<17x1xf32>
    %20 = vector.broadcast %19 : vector<17x1xf32> to vector<17x32xf32>
    %21 = arith.mulf %16, %20 : vector<17x32xf32>
    %22 = vector.broadcast %2 : vector<1x32xf32> to vector<17x32xf32>
    %23 = arith.mulf %21, %22 : vector<17x32xf32>
    %24 = vector.broadcast %3 : vector<1x32xf32> to vector<17x32xf32>
    %25 = arith.addf %23, %24 : vector<17x32xf32>
    %c0_10 = arith.constant 0 : index
    %c0_11 = arith.constant 0 : index
    %26 = vector.load %arg4[%c0_10, %c0_11] : memref<32x5xf32, #tpu.memory_space<vmem>>, vector<32x5xf32>
    %cst_12 = arith.constant dense<0.000000e+00> : vector<17x5xf32>
    %27 = tpu.matmul %25, %26, %cst_12 {dimension_numbers = #tpu.dot_dimension_numbers<[1], [0], [0], [1], [0, 0, 1, 1], [], []>} : vector<17x32xf32>, vector<32x5xf32>, vector<17x5xf32> -> vector<17x5xf32>
    %c0_13 = arith.constant 0 : index
    %c0_14 = arith.constant 0 : index
    %28 = vector.load %arg5[%c0_13, %c0_14] : memref<1x5xf32, #tpu.memory_space<vmem>>, vector<1x5xf32>
    %29 = vector.broadcast %28 : vector<1x5xf32> to vector<17x5xf32>
    %30 = arith.addf %27, %29 : vector<17x5xf32>
    %c0_15 = arith.constant 0 : index
    %c0_16 = arith.constant 0 : index
    %31 = vector.load %arg6[%c0_15, %c0_16] : memref<256x17xf32, #tpu.memory_space<vmem>>, vector<256x17xf32>
    %cst_17 = arith.constant dense<0.000000e+00> : vector<256x5xf32>
    %32 = tpu.matmul %31, %30, %cst_17 {dimension_numbers = #tpu.dot_dimension_numbers<[1], [0], [0], [1], [0, 0, 1, 1], [], []>} : vector<256x17xf32>, vector<17x5xf32>, vector<256x5xf32> -> vector<256x5xf32>
    %c0_18 = arith.constant 0 : index
    %c0_19 = arith.constant 0 : index
    %c0_20 = arith.constant 0 : index
    %33 = vector.load %arg7[%c0_18, %c0_19, %c0_20] : memref<1x256x5xf32, #tpu.memory_space<vmem>>, vector<1x256x5xf32>
    %34 = vector.shape_cast %33 : vector<1x256x5xf32> to vector<256x5xf32>
    %35 = vector.shape_cast %32 : vector<256x5xf32> to vector<1x256x5xf32>
    tpu.vector_store %arg7[%c0_18, %c0_19, %c0_20], %35 {strides = array<i32>} : memref<1x256x5xf32, #tpu.memory_space<vmem>>, vector<1x256x5xf32>,
    return
  }
  func.func @transform_0(%arg0: i32) -> (i32, i32, i32) {
    %c0_i32 = arith.constant 0 : i32
    %c0_i32_0 = arith.constant 0 : i32
    %c0_i32_1 = arith.constant 0 : i32
    return %arg0, %c0_i32, %c0_i32_0 : i32, i32, i32
  }
  func.func @transform_1(%arg0: i32) -> (i32, i32) {
    %c0_i32 = arith.constant 0 : i32
    %c0_i32_0 = arith.constant 0 : i32
    %c0_i32_1 = arith.constant 0 : i32
    return %c0_i32, %c0_i32_0 : i32, i32
  }
  func.func @transform_2(%arg0: i32) -> (i32, i32) {
    %c0_i32 = arith.constant 0 : i32
    %c0_i32_0 = arith.constant 0 : i32
    %c0_i32_1 = arith.constant 0 : i32
    return %c0_i32, %c0_i32_0 : i32, i32
  }
  func.func @transform_3(%arg0: i32) -> (i32, i32) {
    %c0_i32 = arith.constant 0 : i32
    %c0_i32_0 = arith.constant 0 : i32
    %c0_i32_1 = arith.constant 0 : i32
    return %c0_i32, %c0_i32_0 : i32, i32
  }
  func.func @transform_4(%arg0: i32) -> (i32, i32) {
    %c0_i32 = arith.constant 0 : i32
    %c0_i32_0 = arith.constant 0 : i32
    %c0_i32_1 = arith.constant 0 : i32
    return %c0_i32, %c0_i32_0 : i32, i32
  }
  func.func @transform_5(%arg0: i32) -> (i32, i32) {
    %c0_i32 = arith.constant 0 : i32
    %c0_i32_0 = arith.constant 0 : i32
    %c0_i32_1 = arith.constant 0 : i32
    return %c0_i32, %c0_i32_0 : i32, i32
  }
  func.func @transform_6(%arg0: i32) -> (i32, i32, i32) {
    %c0_i32 = arith.constant 0 : i32
    %c0_i32_0 = arith.constant 0 : i32
    %c0_i32_1 = arith.constant 0 : i32
    return %arg0, %c0_i32, %c0_i32_0 : i32, i32, i32
  }
}

</mosaic_0001>

<llo_original>
// kernel: segmenter_forward.4
$region0: #{segmenter_forward.4}
  #allocation0 [shape = 'u32[]', space=smem, size = 0x4, offset = 0x4, fixed_abs, tag = 'smem constant byte address 0x4 - core index']
  #allocation1 [shape = 'u32[144,128]{1,0:T(1,128)}', space=vmem, size = 0x12000, scoped, tag = 'internal scratch']
  %s0 = inlined_call_operand.vmem [shape: f32[2,17,48], index: 0, kind: input, shape index: {}]
  %s1 = inlined_call_operand.vmem [shape: bf16[48,32], index: 1, kind: input, shape index: {}]
  %s2 = inlined_call_operand.vmem [shape: f32[17,32], index: 2, kind: input, shape index: {}]
  %s3 = inlined_call_operand.vmem [shape: f32[2,17,32], index: 3, kind: output, shape index: {}]
  %s4 = sld [smem:[#allocation0]]
  $region45: #{segmenter_forward.4} parent=0
    _
  %s6 = ssub.s32 1, %s4
  %s7 = scalar_select 0, %s6, %s4
  loop: start=0, step=1, limit=4
  $region2: #{segmenter_forward.4} parent=0 // loop_pre_header
    _
  $region3: #{segmenter_forward.4} parent=0 // loop_header
    %s9 = sphi 0, %s13
    %p10 = scmp.ge.s32.totalorder %s9, 4
    %s19 = sphi 0, %s21
    %s22 = sphi 0, %s19
    %s23 = sphi 0, %s22
    %s39 = sphi 0, %s23
    %s43 = sphi 0, %s43
    %s45 = sphi 0, %s43
    %s46 = sphi 0, %s45
    %s60 = sphi 0, %s46
    %s64 = sphi 0, %s64
    %s66 = sphi 0, %s64
    %s67 = sphi 0, %s66
    %s81 = sphi 0, %s67
    %s87 = sphi 0, %s89
    %s90 = sphi 0, %s87
    %s91 = sphi 0, %s90
    %s107 = sphi 0, %s91
  $region4: #{segmenter_forward.4} parent=0 // loop_header_branch
    %12 = sbr.rel (%p10) target = $region8
  $region5: #{segmenter_forward.4} parent=0 // loop_body
    %s14 = ssub.s32 %s9, 1
    %s15 = ssub.s32 %s9, 2
    %s16 = sadd.s32 %s9, 1
    %s17 = ssub.s32 %s9, %s16
    %p18 = scmp.eq.s32.totalorder %s17, 0
    %s20 = sadd.s32 %s19, 1
    %s21 = scalar_select %p18, %s19, %s20
    %p24 = pneg %p18
    %p25 = scmp.eq.s32.totalorder %s9, 1
    %p26 = por %p24, %p25
    %p27 = scmp.ne.s32.totalorder %s19, %s22
    %p28 = scmp.eq.s32.totalorder %s9, 0
    %p29 = por %p27, %p28
    %p30 = scmp.ne.s32.totalorder %s19, %s22
    %p31 = scmp.eq.s32.totalorder %s14, 1
    %p32 = por %p30, %p31
    %p33 = scmp.ne.s32.totalorder %s22, %s23
    %p34 = scmp.eq.s32.totalorder %s14, 0
    %p35 = por %p33, %p34
    %p36 = scmp.ne.s32.totalorder %s22, %s23
    %p37 = scmp.eq.s32.totalorder %s15, 1
    %p38 = por %p36, %p37
    %p40 = scmp.ne.s32.totalorder %s23, %s39
    %p41 = scmp.eq.s32.totalorder %s15, 0
    %p42 = por %p40, %p41
    %s44 = sadd.s32 %s43, 1
    %p47 = scmp.eq.s32.totalorder %s9, 1
    %p48 = scmp.ne.s32.totalorder %s43, %s45
    %p49 = scmp.eq.s32.totalorder %s9, 0
    %p50 = por %p48, %p49
    %p51 = scmp.ne.s32.totalorder %s43, %s45
    %p52 = scmp.eq.s32.totalorder %s14, 1
    %p53 = por %p51, %p52
    %p54 = scmp.ne.s32.totalorder %s45, %s46
    %p55 = scmp.eq.s32.totalorder %s14, 0
    %p56 = por %p54, %p55
    %p57 = scmp.ne.s32.totalorder %s45, %s46
    %p58 = scmp.eq.s32.totalorder %s15, 1
    %p59 = por %p57, %p58
    %p61 = scmp.ne.s32.totalorder %s46, %s60
    %p62 = scmp.eq.s32.totalorder %s15, 0
    %p63 = por %p61, %p62
    %s65 = sadd.s32 %s64, 1
    %p68 = scmp.eq.s32.totalorder %s9, 1
    %p69 = scmp.ne.s32.totalorder %s64, %s66
    %p70 = scmp.eq.s32.totalorder %s9, 0
    %p71 = por %p69, %p70
    %p72 = scmp.ne.s32.totalorder %s64, %s66
    %p73 = scmp.eq.s32.totalorder %s14, 1
    %p74 = por %p72, %p73
    %p75 = scmp.ne.s32.totalorder %s66, %s67
    %p76 = scmp.eq.s32.totalorder %s14, 0
    %p77 = por %p75, %p76
    %p78 = scmp.ne.s32.totalorder %s66, %s67
    %p79 = scmp.eq.s32.totalorder %s15, 1
    %p80 = por %p78, %p79
    %p82 = scmp.ne.s32.totalorder %s67, %s81
    %p83 = scmp.eq.s32.totalorder %s15, 0
    %p84 = por %p82, %p83
    %s85 = ssub.s32 %s9, %s16
    %p86 = scmp.eq.s32.totalorder %s85, 0
    %s88 = sadd.s32 %s87, 1
    %s89 = scalar_select %p86, %s87, %s88
    %p92 = pneg %p86
    %p93 = scmp.eq.s32.totalorder %s9, 1
    %p94 = por %p92, %p93
    %p95 = scmp.ne.s32.totalorder %s87, %s90
    %p96 = scmp.eq.s32.totalorder %s9, 0
    %p97 = por %p95, %p96
    %p98 = scmp.ne.s32.totalorder %s87, %s90
    %p99 = scmp.eq.s32.totalorder %s14, 1
    %p100 = por %p98, %p99
    %p101 = scmp.ne.s32.totalorder %s90, %s91
    %p102 = scmp.eq.s32.totalorder %s14, 0
    %p103 = por %p101, %p102
    %p104 = scmp.ne.s32.totalorder %s90, %s91
    %p105 = scmp.eq.s32.totalorder %s15, 1
    %p106 = por %p104, %p105
    %p108 = scmp.ne.s32.totalorder %s91, %s107
    %p109 = scmp.eq.s32.totalorder %s15, 0
    %p110 = por %p108, %p109
    %p111 = scmp.le.s32.totalorder 1, %s9
    %p112 = scmp.lt.s32.totalorder %s9, 3
    %p113 = pnand %p111, %p112
    %p114 = pneg %p113
    // Predicated region
    $region9: #{segmenter_forward.4} parent=5 // pred_check
      _
    $region10: #{segmenter_forward.4} parent=5 // pred_check_branch
      %116 = sbr.rel (%p113) target = $region12
    $region11: #{segmenter_forward.4} parent=5 // pred_region
      %s117 = ssub.s32 %s9, 1
      // Predicated region
      $region13: #{segmenter_forward.4} parent=11 // pred_check
        %p118 = pneg %p56
      $region14: #{segmenter_forward.4} parent=11 // pred_check_branch
        %120 = sbr.rel (%p118) target = $region16
      $region15: #{segmenter_forward.4} parent=11 // pred_region
        _
      $region16: #{segmenter_forward.4} parent=11 // pred_fallthru
        _
      // Predicated region
      $region17: #{segmenter_forward.4} parent=11 // pred_check
        %p121 = pneg %p77
      $region18: #{segmenter_forward.4} parent=11 // pred_check_branch
        %123 = sbr.rel (%p121) target = $region20
      $region19: #{segmenter_forward.4} parent=11 // pred_region
        _
      $region20: #{segmenter_forward.4} parent=11 // pred_fallthru
        _
    $region12: #{segmenter_forward.4} parent=5 // pred_fallthru
      _
    %p124 = scmp.lt.s32.totalorder %s9, 2
    // Predicated region
    $region21: #{segmenter_forward.4} parent=5 // pred_check
      %p125 = pneg %p124
    $region22: #{segmenter_forward.4} parent=5 // pred_check_branch
      %127 = sbr.rel (%p125) target = $region24
    $region23: #{segmenter_forward.4} parent=5 // pred_region
      // Predicated region
      $region25: #{segmenter_forward.4} parent=23 // pred_check
        %p128 = pneg %p29
      $region26: #{segmenter_forward.4} parent=23 // pred_check_branch
        %130 = sbr.rel (%p128) target = $region28
      $region27: #{segmenter_forward.4} parent=23 // pred_region
        %p131 = scmp.lt.s32.totalorder %s9, 1
        %s132 = scalar_select %p131, %s9, 1
        %s133 = smul.addr %s132, 3
        %s134 = smul.addr %s133, 8
        %s135 = scalar_lea.vmem %s0, %s134
      $region28: #{segmenter_forward.4} parent=23 // pred_fallthru
        _
    $region24: #{segmenter_forward.4} parent=5 // pred_fallthru
      _
    %p136 = scmp.le.s32.totalorder 1, %s9
    %p137 = scmp.lt.s32.totalorder %s9, 3
    %p138 = pnand %p136, %p137
    %p139 = pneg %p138
    // Predicated region
    $region29: #{segmenter_forward.4} parent=5 // pred_check
      _
    $region30: #{segmenter_forward.4} parent=5 // pred_check_branch
      %141 = sbr.rel (%p138) target = $region32
    $region31: #{segmenter_forward.4} parent=5 // pred_region
      %s142 = ssub.s32 %s9, 1
      %p143 = scmp.lt.s32.totalorder %s14, 1
      %s144 = scalar_select %p143, %s14, 1
      %s145 = smul.addr %s144, 3
      %s146 = smul.addr %s145, 8
      %s147 = scalar_lea.vmem %s0, %s146
      %p148 = pneg %p35
      %p149 = pneg %p32
      %p150 = pneg %p56
      %p151 = pneg %p53
      %p152 = pneg %p77
      %p153 = pneg %p74
      %p154 = pneg %p103
      %p155 = pneg %p100
      %p156 = scmp.lt.s32.totalorder %s14, 1
      %s157 = scalar_select %p156, %s14, 1
      %s158 = smul.addr %s157, 3
      %s159 = smul.addr %s158, 8
      %s160 = scalar_lea.vmem %s3, %s159
      %p161 = scmp.lt.s32.totalorder %s14, 1
      %s162 = scalar_select %p161, %s14, 1
      %s163 = smul.addr %s162, 3
      %s164 = smul.addr %s163, 8
      %s165 = scalar_lea.vmem %s0, %s164
      %p166 = scmp.lt.s32.totalorder %s14, 1
      %s167 = scalar_select %p166, %s14, 1
      %s168 = smul.addr %s167, 3
      %s169 = smul.addr %s168, 8
      %s170 = scalar_lea.vmem %s3, %s169
      %v172 = vld [vmem:[%s165] sm:$0xff]
      %v173 = vld [vmem:[%s165 + $0x8] sm:$0xff]
      %v174 = vld [vmem:[%s165 + $0x10] sm:$0x1]
      %v175 = vpack.c.bf16 %v173, %v172
      %v176 = vpack.c.bf16 %v174, %v174
      %v177 = vld [vmem:[%s1] sm:$0xf]
      %v178 = vld [vmem:[%s1 + $0x4] sm:$0xf]
      %v179 = vld [vmem:[%s1 + $0x8] sm:$0xf]
      %v180 = vld [vmem:[%s1 + $0xc] sm:$0xf]
      %v181 = vld [vmem:[%s1 + $0x10] sm:$0xf]
      %v182 = vld [vmem:[%s1 + $0x14] sm:$0xf]
      %v183 = vld [vmem:[%s2] sm:$0xff]
      %v184 = vld [vmem:[%s2 + $0x8] sm:$0xff]
      %v185 = vld [vmem:[%s2 + $0x10] sm:$0x1]
      %v192 = vunpack.c.l.b16 %v177
      %v193 = vunpack.c.l.b16 %v178
      %v194 = vunpack.c.l.b16 %v179
      %v195 = vunpack.c.l.b16 %v180
      %v196 = vunpack.c.l.b16 %v181
      %v197 = vunpack.c.l.b16 %v182
      %v198 = vpack.c.b16 %v193, %v192
      %v199 = vpack.c.b16 %v195, %v194
      %v200 = vpack.c.b16 %v197, %v196
      %vm204 = vcmask 392192
      %v206 = vsel %vm204, %v175, 0
      %v209 = vsel %vm204, %v176, 0
      %211 = vmatprep.subr.bf16.mxu0 0
      %212 = vmatpush1.bf16.msra.mxu0 %v198
      %213 = vmatprep.subr.bf16.mxu0 0
      %214 = vmatpush1.bf16.msra.mxu0 %v199
      %215 = vmatprep.subr.bf16.mxu0 0
      %216 = vmatpush1.bf16.msra.mxu0 %v200
      %217 = vmatprep.subr.bf16.mxu0 0
      %218 = vmatpush1.bf16.msra.mxu0 0
      %219 = vmatprep.subr.bf16.mxu0 0
      %220 = vmatpush1.bf16.msra.mxu0 0
      %221 = vmatprep.subr.bf16.mxu0 0
      %222 = vmatpush1.bf16.msra.mxu0 0
      %223 = vmatprep.subr.bf16.mxu0 0
      %224 = vmatpush1.bf16.msra.mxu0 0
      %225 = vmatprep.subr.bf16.mxu0 0
      %226 = vmatpush1.bf16.msra.mxu0 0
      %227 = vmatprep.subr.bf16.mxu0 0
      %228 = vmatpush1.bf16.msra.mxu0 0
      %229 = vmatprep.subr.bf16.mxu0 0
      %230 = vmatpush1.bf16.msra.mxu0 0
      %231 = vmatprep.subr.bf16.mxu0 0
      %232 = vmatpush1.bf16.msra.mxu0 0
      %233 = vmatprep.subr.bf16.mxu0 0
      %234 = vmatpush1.bf16.msra.mxu0 0
      %235 = vmatprep.subr.bf16.mxu0 0
      %236 = vmatpush1.bf16.msra.mxu0 0
      %237 = vmatprep.subr.bf16.mxu0 0
      %238 = vmatpush1.bf16.msra.mxu0 0
      %239 = vmatprep.subr.bf16.mxu0 0
      %240 = vmatpush1.bf16.msra.mxu0 0
      %241 = vmatprep.subr.bf16.mxu0 0
      %242 = vmatpush1.bf16.msra.mxu0 0
      %243 = vmatprep.mubr.bf16.mxu0 0
      %244 = vmatmul.mubr.bf16.gmra.mrb[0].mxu0 %v206
      %v245 = vpop.f32.mrb[0].mxu0
      %v246 = vadd.f32 %v183, %v245
      %v247 = vpop.f32.mrb[0].mxu0
      %v248 = vpop.f32.mrb[0].mxu0
      %v249 = vadd.f32 %v184, %v248
      %v250 = vpop.f32.mrb[0].mxu0
      %251 = vmatprep.mubr.bf16.mxu0 0
      %252 = vmatmul.mubr.bf16.gmra.mrb[0].mxu0 %v209
      %v253 = vpop.f32.mrb[0].mxu0
      %v254 = vadd.f32 %v185, %v253
      %v255 = vpop.f32.mrb[0].mxu0
      %v256 = vpop.f32.mrb[0].mxu0
      %v257 = vpop.f32.mrb[0].mxu0
      %258 = vdwg.mxu0
      %vm259 = vcmask 261120
      %260 = vst.msk [vmem:[%s170] sm:$0xff] %vm259, %v246
      %261 = vst.msk [vmem:[%s170 + $0x8] sm:$0xff] %vm259, %v249
      %vm262 = vcmask 253952
      %263 = vst.msk [vmem:[%s170 + $0x10] sm:$0x1] %vm262, %v254
      %p264 = scmp.lt.s32.totalorder %s14, 1
      %s265 = scalar_select %p264, %s14, 1
      %s266 = smul.addr %s265, 3
      %s267 = smul.addr %s266, 8
      %s268 = scalar_lea.vmem %s3, %s267
      // Predicated region
      $region33: #{segmenter_forward.4} parent=31 // pred_check
        %p269 = pneg %p100
      $region34: #{segmenter_forward.4} parent=31 // pred_check_branch
        %271 = sbr.rel (%p269) target = $region36
      $region35: #{segmenter_forward.4} parent=31 // pred_region
        _
      $region36: #{segmenter_forward.4} parent=31 // pred_fallthru
        _
    $region32: #{segmenter_forward.4} parent=5 // pred_fallthru
      _
    %p272 = scmp.le.s32.totalorder 2, %s9
    // Predicated region
    $region37: #{segmenter_forward.4} parent=5 // pred_check
      %p273 = pneg %p272
    $region38: #{segmenter_forward.4} parent=5 // pred_check_branch
      %275 = sbr.rel (%p273) target = $region40
    $region39: #{segmenter_forward.4} parent=5 // pred_region
      %s276 = ssub.s32 %s9, 2
      // Predicated region
      $region41: #{segmenter_forward.4} parent=39 // pred_check
        %p277 = pneg %p106
      $region42: #{segmenter_forward.4} parent=39 // pred_check_branch
        %279 = sbr.rel (%p277) target = $region44
      $region43: #{segmenter_forward.4} parent=39 // pred_region
        %p280 = scmp.lt.s32.totalorder %s15, 1
        %s281 = scalar_select %p280, %s15, 1
        %s282 = smul.addr %s281, 3
        %s283 = smul.addr %s282, 8
        %s284 = scalar_lea.vmem %s3, %s283
      $region44: #{segmenter_forward.4} parent=39 // pred_fallthru
        _
    $region40: #{segmenter_forward.4} parent=5 // pred_fallthru
      _
  $region6: #{segmenter_forward.4} parent=0 // loop_footer
    %s13 = sadd.s32 1, %s9
  $region7: #{segmenter_forward.4} parent=0 // loop_footer_branch
    %8 = sbr.rel target = $region3
  $region8: #{segmenter_forward.4} parent=0 // loop_exit
    _

// kernel: segmenter_forward.7
$region0: #{segmenter_forward.7}
  #allocation0 [shape = 'u32[]', space=smem, size = 0x4, offset = 0x4, fixed_abs, tag = 'smem constant byte address 0x4 - core index']
  #allocation1 [shape = 'u32[144,128]{1,0:T(1,128)}', space=vmem, size = 0x12000, scoped, tag = 'internal scratch']
  %s0 = inlined_call_operand.vmem [shape: f32[2,17,32], index: 0, kind: input, shape index: {}]
  %s1 = inlined_call_operand.vmem [shape: f32[1,32], index: 1, kind: input, shape index: {}]
  %s2 = inlined_call_operand.vmem [shape: f32[1,32], index: 2, kind: input, shape index: {}]
  %s3 = inlined_call_operand.vmem [shape: f32[32,5], index: 3, kind: input, shape index: {}]
  %s4 = inlined_call_operand.vmem [shape: f32[1,5], index: 4, kind: input, shape index: {}]
  %s5 = inlined_call_operand.vmem [shape: f32[256,17], index: 5, kind: input, shape index: {}]
  %s6 = inlined_call_operand.vmem [shape: f32[2,256,5], index: 6, kind: output, shape index: {}]
  %s7 = sld [smem:[#allocation0]]
  $region57: #{segmenter_forward.7} parent=0
    _
  %s9 = ssub.s32 1, %s7
  %s10 = scalar_select 0, %s9, %s7
  loop: start=0, step=1, limit=4
  $region2: #{segmenter_forward.7} parent=0 // loop_pre_header
    _
  $region3: #{segmenter_forward.7} parent=0 // loop_header
    %s12 = sphi 0, %s16
    %p13 = scmp.ge.s32.totalorder %s12, 4
    %s22 = sphi 0, %s24
    %s25 = sphi 0, %s22
    %s26 = sphi 0, %s25
    %s42 = sphi 0, %s26
    %s46 = sphi 0, %s46
    %s48 = sphi 0, %s46
    %s49 = sphi 0, %s48
    %s63 = sphi 0, %s49
    %s67 = sphi 0, %s67
    %s69 = sphi 0, %s67
    %s70 = sphi 0, %s69
    %s84 = sphi 0, %s70
    %s88 = sphi 0, %s88
    %s90 = sphi 0, %s88
    %s91 = sphi 0, %s90
    %s105 = sphi 0, %s91
    %s109 = sphi 0, %s109
    %s111 = sphi 0, %s109
    %s112 = sphi 0, %s111
    %s126 = sphi 0, %s112
    %s130 = sphi 0, %s130
    %s132 = sphi 0, %s130
    %s133 = sphi 0, %s132
    %s147 = sphi 0, %s133
    %s153 = sphi 0, %s155
    %s156 = sphi 0, %s153
    %s157 = sphi 0, %s156
    %s173 = sphi 0, %s157
  $region4: #{segmenter_forward.7} parent=0 // loop_header_branch
    %15 = sbr.rel (%p13) target = $region8
  $region5: #{segmenter_forward.7} parent=0 // loop_body
    %s17 = ssub.s32 %s12, 1
    %s18 = ssub.s32 %s12, 2
    %s19 = sadd.s32 %s12, 1
    %s20 = ssub.s32 %s12, %s19
    %p21 = scmp.eq.s32.totalorder %s20, 0
    %s23 = sadd.s32 %s22, 1
    %s24 = scalar_select %p21, %s22, %s23
    %p27 = pneg %p21
    %p28 = scmp.eq.s32.totalorder %s12, 1
    %p29 = por %p27, %p28
    %p30 = scmp.ne.s32.totalorder %s22, %s25
    %p31 = scmp.eq.s32.totalorder %s12, 0
    %p32 = por %p30, %p31
    %p33 = scmp.ne.s32.totalorder %s22, %s25
    %p34 = scmp.eq.s32.totalorder %s17, 1
    %p35 = por %p33, %p34
    %p36 = scmp.ne.s32.totalorder %s25, %s26
    %p37 = scmp.eq.s32.totalorder %s17, 0
    %p38 = por %p36, %p37
    %p39 = scmp.ne.s32.totalorder %s25, %s26
    %p40 = scmp.eq.s32.totalorder %s18, 1
    %p41 = por %p39, %p40
    %p43 = scmp.ne.s32.totalorder %s26, %s42
    %p44 = scmp.eq.s32.totalorder %s18, 0
    %p45 = por %p43, %p44
    %s47 = sadd.s32 %s46, 1
    %p50 = scmp.eq.s32.totalorder %s12, 1
    %p51 = scmp.ne.s32.totalorder %s46, %s48
    %p52 = scmp.eq.s32.totalorder %s12, 0
    %p53 = por %p51, %p52
    %p54 = scmp.ne.s32.totalorder %s46, %s48
    %p55 = scmp.eq.s32.totalorder %s17, 1
    %p56 = por %p54, %p55
    %p57 = scmp.ne.s32.totalorder %s48, %s49
    %p58 = scmp.eq.s32.totalorder %s17, 0
    %p59 = por %p57, %p58
    %p60 = scmp.ne.s32.totalorder %s48, %s49
    %p61 = scmp.eq.s32.totalorder %s18, 1
    %p62 = por %p60, %p61
    %p64 = scmp.ne.s32.totalorder %s49, %s63
    %p65 = scmp.eq.s32.totalorder %s18, 0
    %p66 = por %p64, %p65
    %s68 = sadd.s32 %s67, 1
    %p71 = scmp.eq.s32.totalorder %s12, 1
    %p72 = scmp.ne.s32.totalorder %s67, %s69
    %p73 = scmp.eq.s32.totalorder %s12, 0
    %p74 = por %p72, %p73
    %p75 = scmp.ne.s32.totalorder %s67, %s69
    %p76 = scmp.eq.s32.totalorder %s17, 1
    %p77 = por %p75, %p76
    %p78 = scmp.ne.s32.totalorder %s69, %s70
    %p79 = scmp.eq.s32.totalorder %s17, 0
    %p80 = por %p78, %p79
    %p81 = scmp.ne.s32.totalorder %s69, %s70
    %p82 = scmp.eq.s32.totalorder %s18, 1
    %p83 = por %p81, %p82
    %p85 = scmp.ne.s32.totalorder %s70, %s84
    %p86 = scmp.eq.s32.totalorder %s18, 0
    %p87 = por %p85, %p86
    %s89 = sadd.s32 %s88, 1
    %p92 = scmp.eq.s32.totalorder %s12, 1
    %p93 = scmp.ne.s32.totalorder %s88, %s90
    %p94 = scmp.eq.s32.totalorder %s12, 0
    %p95 = por %p93, %p94
    %p96 = scmp.ne.s32.totalorder %s88, %s90
    %p97 = scmp.eq.s32.totalorder %s17, 1
    %p98 = por %p96, %p97
    %p99 = scmp.ne.s32.totalorder %s90, %s91
    %p100 = scmp.eq.s32.totalorder %s17, 0
    %p101 = por %p99, %p100
    %p102 = scmp.ne.s32.totalorder %s90, %s91
    %p103 = scmp.eq.s32.totalorder %s18, 1
    %p104 = por %p102, %p103
    %p106 = scmp.ne.s32.totalorder %s91, %s105
    %p107 = scmp.eq.s32.totalorder %s18, 0
    %p108 = por %p106, %p107
    %s110 = sadd.s32 %s109, 1
    %p113 = scmp.eq.s32.totalorder %s12, 1
    %p114 = scmp.ne.s32.totalorder %s109, %s111
    %p115 = scmp.eq.s32.totalorder %s12, 0
    %p116 = por %p114, %p115
    %p117 = scmp.ne.s32.totalorder %s109, %s111
    %p118 = scmp.eq.s32.totalorder %s17, 1
    %p119 = por %p117, %p118
    %p120 = scmp.ne.s32.totalorder %s111, %s112
    %p121 = scmp.eq.s32.totalorder %s17, 0
    %p122 = por %p120, %p121
    %p123 = scmp.ne.s32.totalorder %s111, %s112
    %p124 = scmp.eq.s32.totalorder %s18, 1
    %p125 = por %p123, %p124
    %p127 = scmp.ne.s32.totalorder %s112, %s126
    %p128 = scmp.eq.s32.totalorder %s18, 0
    %p129 = por %p127, %p128
    %s131 = sadd.s32 %s130, 1
    %p134 = scmp.eq.s32.totalorder %s12, 1
    %p135 = scmp.ne.s32.totalorder %s130, %s132
    %p136 = scmp.eq.s32.totalorder %s12, 0
    %p137 = por %p135, %p136
    %p138 = scmp.ne.s32.totalorder %s130, %s132
    %p139 = scmp.eq.s32.totalorder %s17, 1
    %p140 = por %p138, %p139
    %p141 = scmp.ne.s32.totalorder %s132, %s133
    %p142 = scmp.eq.s32.totalorder %s17, 0
    %p143 = por %p141, %p142
    %p144 = scmp.ne.s32.totalorder %s132, %s133
    %p145 = scmp.eq.s32.totalorder %s18, 1
    %p146 = por %p144, %p145
    %p148 = scmp.ne.s32.totalorder %s133, %s147
    %p149 = scmp.eq.s32.totalorder %s18, 0
    %p150 = por %p148, %p149
    %s151 = ssub.s32 %s12, %s19
    %p152 = scmp.eq.s32.totalorder %s151, 0
    %s154 = sadd.s32 %s153, 1
    %s155 = scalar_select %p152, %s153, %s154
    %p158 = pneg %p152
    %p159 = scmp.eq.s32.totalorder %s12, 1
    %p160 = por %p158, %p159
    %p161 = scmp.ne.s32.totalorder %s153, %s156
    %p162 = scmp.eq.s32.totalorder %s12, 0
    %p163 = por %p161, %p162
    %p164 = scmp.ne.s32.totalorder %s153, %s156
    %p165 = scmp.eq.s32.totalorder %s17, 1
    %p166 = por %p164, %p165
    %p167 = scmp.ne.s32.totalorder %s156, %s157
    %p168 = scmp.eq.s32.totalorder %s17, 0
    %p169 = por %p167, %p168
    %p170 = scmp.ne.s32.totalorder %s156, %s157
    %p171 = scmp.eq.s32.totalorder %s18, 1
    %p172 = por %p170, %p171
    %p174 = scmp.ne.s32.totalorder %s157, %s173
    %p175 = scmp.eq.s32.totalorder %s18, 0
    %p176 = por %p174, %p175
    %p177 = scmp.le.s32.totalorder 1, %s12
    %p178 = scmp.lt.s32.totalorder %s12, 3
    %p179 = pnand %p177, %p178
    %p180 = pneg %p179
    // Predicated region
    $region9: #{segmenter_forward.7} parent=5 // pred_check
      _
    $region10: #{segmenter_forward.7} parent=5 // pred_check_branch
      %182 = sbr.rel (%p179) target = $region12
    $region11: #{segmenter_forward.7} parent=5 // pred_region
      %s183 = ssub.s32 %s12, 1
      // Predicated region
      $region13: #{segmenter_forward.7} parent=11 // pred_check
        %p184 = pneg %p59
      $region14: #{segmenter_forward.7} parent=11 // pred_check_branch
        %186 = sbr.rel (%p184) target = $region16
      $region15: #{segmenter_forward.7} parent=11 // pred_region
        _
      $region16: #{segmenter_forward.7} parent=11 // pred_fallthru
        _
      // Predicated region
      $region17: #{segmenter_forward.7} parent=11 // pred_check
        %p187 = pneg %p80
      $region18: #{segmenter_forward.7} parent=11 // pred_check_branch
        %189 = sbr.rel (%p187) target = $region20
      $region19: #{segmenter_forward.7} parent=11 // pred_region
        _
      $region20: #{segmenter_forward.7} parent=11 // pred_fallthru
        _
      // Predicated region
      $region21: #{segmenter_forward.7} parent=11 // pred_check
        %p190 = pneg %p101
      $region22: #{segmenter_forward.7} parent=11 // pred_check_branch
        %192 = sbr.rel (%p190) target = $region24
      $region23: #{segmenter_forward.7} parent=11 // pred_region
        _
      $region24: #{segmenter_forward.7} parent=11 // pred_fallthru
        _
      // Predicated region
      $region25: #{segmenter_forward.7} parent=11 // pred_check
        %p193 = pneg %p122
      $region26: #{segmenter_forward.7} parent=11 // pred_check_branch
        %195 = sbr.rel (%p193) target = $region28
      $region27: #{segmenter_forward.7} parent=11 // pred_region
        _
      $region28: #{segmenter_forward.7} parent=11 // pred_fallthru
        _
      // Predicated region
      $region29: #{segmenter_forward.7} parent=11 // pred_check
        %p196 = pneg %p143
      $region30: #{segmenter_forward.7} parent=11 // pred_check_branch
        %198 = sbr.rel (%p196) target = $region32
      $region31: #{segmenter_forward.7} parent=11 // pred_region
        _
      $region32: #{segmenter_forward.7} parent=11 // pred_fallthru
        _
    $region12: #{segmenter_forward.7} parent=5 // pred_fallthru
      _
    %p199 = scmp.lt.s32.totalorder %s12, 2
    // Predicated region
    $region33: #{segmenter_forward.7} parent=5 // pred_check
      %p200 = pneg %p199
    $region34: #{segmenter_forward.7} parent=5 // pred_check_branch
      %202 = sbr.rel (%p200) target = $region36
    $region35: #{segmenter_forward.7} parent=5 // pred_region
      // Predicated region
      $region37: #{segmenter_forward.7} parent=35 // pred_check
        %p203 = pneg %p32
      $region38: #{segmenter_forward.7} parent=35 // pred_check_branch
        %205 = sbr.rel (%p203) target = $region40
      $region39: #{segmenter_forward.7} parent=35 // pred_region
        %p206 = scmp.lt.s32.totalorder %s12, 1
        %s207 = scalar_select %p206, %s12, 1
        %s208 = smul.addr %s207, 3
        %s209 = smul.addr %s208, 8
        %s210 = scalar_lea.vmem %s0, %s209
      $region40: #{segmenter_forward.7} parent=35 // pred_fallthru
        _
    $region36: #{segmenter_forward.7} parent=5 // pred_fallthru
      _
    %p211 = scmp.le.s32.totalorder 1, %s12
    %p212 = scmp.lt.s32.totalorder %s12, 3
    %p213 = pnand %p211, %p212
    %p214 = pneg %p213
    // Predicated region
    $region41: #{segmenter_forward.7} parent=5 // pred_check
      _
    $region42: #{segmenter_forward.7} parent=5 // pred_check_branch
      %216 = sbr.rel (%p213) target = $region44
    $region43: #{segmenter_forward.7} parent=5 // pred_region
      %s217 = ssub.s32 %s12, 1
      %p218 = scmp.lt.s32.totalorder %s17, 1
      %s219 = scalar_select %p218, %s17, 1
      %s220 = smul.addr %s219, 3
      %s221 = smul.addr %s220, 8
      %s222 = scalar_lea.vmem %s0, %s221
      %p223 = pneg %p38
      %p224 = pneg %p35
      %p225 = pneg %p59
      %p226 = pneg %p56
      %p227 = pneg %p80
      %p228 = pneg %p77
      %p229 = pneg %p101
      %p230 = pneg %p98
      %p231 = pneg %p122
      %p232 = pneg %p119
      %p233 = pneg %p143
      %p234 = pneg %p140
      %p235 = pneg %p169
      %p236 = pneg %p166
      %p237 = scmp.lt.s32.totalorder %s17, 1
      %s238 = scalar_select %p237, %s17, 1
      %s239 = smul.addr %s238, 32
      %s240 = smul.addr %s239, 8
      %s241 = scalar_lea.vmem %s6, %s240
      %p242 = scmp.lt.s32.totalorder %s17, 1
      %s243 = scalar_select %p242, %s17, 1
      %s244 = smul.addr %s243, 3
      %s245 = smul.addr %s244, 8
      %s246 = scalar_lea.vmem %s0, %s245
      %p247 = scmp.lt.s32.totalorder %s17, 1
      %s248 = scalar_select %p247, %s17, 1
      %s249 = smul.addr %s248, 32
      %s250 = smul.addr %s249, 8
      %s251 = scalar_lea.vmem %s6, %s250
      %v252 = vld [vmem:[%s246] sm:$0xff]
      %v253 = vld [vmem:[%s246 + $0x8] sm:$0xff]
      %v254 = vld [vmem:[%s246 + $0x10] sm:$0x1]
      %v255 = vld [vmem:[%s1] sm:$0x1]
      %v256 = vld [vmem:[%s2] sm:$0x1]
      %vm257 = vcmask 261120
      %v258 = vsel %vm257, %v252, 0.0
      %259 = vadd.xlane.f32.xlu0 %v258
      %v260 = vpop.xlane.xlu0 %259
      %v261 = vsel %vm257, %v253, 0.0
      %262 = vadd.xlane.f32.xlu0 %v261
      %v263 = vpop.xlane.xlu0 %262
      %vm264 = vcmask 253952
      %v265 = vsel %vm264, %v254, 0.0
      %266 = vadd.xlane.f32.xlu0 %v265
      %v267 = vpop.xlane.xlu0 %266
      %v268 = vrcp.pop 32.0
      %v269 = vmul.f32 %v260, %v268
      %v270 = vmul.f32 %v263, %v268
      %v271 = vmul.f32 %v267, %v268
      %v272 = vsub.f32 %v252, %v269
      %v273 = vsub.f32 %v253, %v270
      %v274 = vsub.f32 %v254, %v271
      %v275 = vmul.f32 %v272, %v272
      %v276 = vmul.f32 %v273, %v273
      %v277 = vmul.f32 %v274, %v274
      %v278 = vsel %vm257, %v275, 0.0
      %279 = vadd.xlane.f32.xlu0 %v278
      %v280 = vpop.xlane.xlu0 %279
      %v281 = vsel %vm257, %v276, 0.0
      %282 = vadd.xlane.f32.xlu0 %v281
      %v283 = vpop.xlane.xlu0 %282
      %v284 = vsel %vm264, %v277, 0.0
      %285 = vadd.xlane.f32.xlu0 %v284
      %v286 = vpop.xlane.xlu0 %285
      %v287 = vmul.f32 %v280, %v268
      %v288 = vmul.f32 %v283, %v268
      %v289 = vmul.f32 %v286, %v268
      %v290 = vadd.f32 %v287, 1e-06
      %v291 = vadd.f32 %v288, 1e-06
      %v292 = vadd.f32 %v289, 1e-06
      %v293 = vrsqrt.pop %v290
      %v294 = vrsqrt.pop %v291
      %v295 = vrsqrt.pop %v292
      %v296 = vmul.f32 %v272, %v293
      %v297 = vmul.f32 %v273, %v294
      %v298 = vmul.f32 %v274, %v295
      %v300 = vlaneseq
      %v301 = vshrl.u32 %v300, 7
      %v302 = vsub.s32 0, %v301
      %v303 = vrot.slane %v255, %v302
      %v305 = vmul.f32 %v296, %v303
      %v306 = vmul.f32 %v297, %v303
      %v307 = vmul.f32 %v298, %v303
      %v309 = vlaneseq
      %v310 = vshrl.u32 %v309, 7
      %v311 = vsub.s32 0, %v310
      %v312 = vrot.slane %v256, %v311
      %v314 = vadd.f32 %v305, %v312
      %v315 = vadd.f32 %v306, %v312
      %v316 = vadd.f32 %v307, %v312
      %v317 = vld [vmem:[%s3] sm:$0xff]
      %v318 = vld [vmem:[%s3 + $0x8] sm:$0xff]
      %v319 = vld [vmem:[%s3 + $0x10] sm:$0xff]
      %v320 = vld [vmem:[%s3 + $0x18] sm:$0xff]
      %v321 = vld [vmem:[%s4] sm:$0x1]
      %v323 = vlaneseq
      %v324 = vshrl.u32 %v323, 7
      %v325 = vsub.s32 0, %v324
      %v326 = vrot.slane %v321, %v325
      %v329 = vsel %vm257, %v314, 0
      %v332 = vsel %vm257, %v315, 0
      %v335 = vsel %vm257, %v316, 0
      %337 = vmatprep.subr.mxu0 0.0
      %338 = vmatpush1.msra.mxu0 %v317
      %339 = vmatprep.subr.mxu0 0.0
      %340 = vmatpush1.msra.mxu0 %v318
      %341 = vmatprep.subr.mxu0 0.0
      %342 = vmatpush1.msra.mxu0 %v319
      %343 = vmatprep.subr.mxu0 0.0
      %344 = vmatpush1.msra.mxu0 %v320
      %345 = vmatprep.subr.mxu0 0.0
      %346 = vmatpush1.msra.mxu0 0.0
      %347 = vmatprep.subr.mxu0 0.0
      %348 = vmatpush1.msra.mxu0 0.0
      %349 = vmatprep.subr.mxu0 0.0
      %350 = vmatpush1.msra.mxu0 0.0
      %351 = vmatprep.subr.mxu0 0.0
      %352 = vmatpush1.msra.mxu0 0.0
      %353 = vmatprep.subr.mxu0 0.0
      %354 = vmatpush1.msra.mxu0 0.0
      %355 = vmatprep.subr.mxu0 0.0
      %356 = vmatpush1.msra.mxu0 0.0
      %357 = vmatprep.subr.mxu0 0.0
      %358 = vmatpush1.msra.mxu0 0.0
      %359 = vmatprep.subr.mxu0 0.0
      %360 = vmatpush1.msra.mxu0 0.0
      %361 = vmatprep.subr.mxu0 0.0
      %362 = vmatpush1.msra.mxu0 0.0
      %363 = vmatprep.subr.mxu0 0.0
      %364 = vmatpush1.msra.mxu0 0.0
      %365 = vmatprep.subr.mxu0 0.0
      %366 = vmatpush1.msra.mxu0 0.0
      %367 = vmatprep.subr.mxu0 0.0
      %368 = vmatpush1.msra.mxu0 0.0
      %369 = vmatprep.subr.mxu0 0.0
      %370 = vmatpush1.msra.mxu0 0.0
      %371 = vmatprep.subr.mxu0 0.0
      %372 = vmatpush1.msra.mxu0 0.0
      %373 = vmatprep.subr.mxu0 0.0
      %374 = vmatpush1.msra.mxu0 0.0
      %375 = vmatprep.subr.mxu0 0.0
      %376 = vmatpush1.msra.mxu0 0.0
      %377 = vmatprep.subr.mxu0 0.0
      %378 = vmatpush1.msra.mxu0 0.0
      %379 = vmatprep.subr.mxu0 0.0
      %380 = vmatpush1.msra.mxu0 0.0
      %381 = vmatprep.subr.mxu0 0.0
      %382 = vmatpush1.msra.mxu0 0.0
      %383 = vmatprep.subr.mxu0 0.0
      %384 = vmatpush1.msra.mxu0 0.0
      %385 = vmatprep.subr.mxu0 0.0
      %386 = vmatpush1.msra.mxu0 0.0
      %387 = vmatprep.subr.mxu0 0.0
      %388 = vmatpush1.msra.mxu0 0.0
      %389 = vmatprep.subr.mxu0 0.0
      %390 = vmatpush1.msra.mxu0 0.0
      %391 = vmatprep.subr.mxu0 0.0
      %392 = vmatpush1.msra.mxu0 0.0
      %393 = vmatprep.subr.mxu0 0.0
      %394 = vmatpush1.msra.mxu0 0.0
      %395 = vmatprep.subr.mxu0 0.0
      %396 = vmatpush1.msra.mxu0 0.0
      %397 = vmatprep.subr.mxu0 0.0
      %398 = vmatpush1.msra.mxu0 0.0
      %399 = vmatprep.subr.mxu0 0.0
      %400 = vmatpush1.msra.mxu0 0.0
      %401 = vmatprep.mubr.f32.mxu0 0.0
      %402 = vmatmul.mubr.f32.gmra.mrb[0].mxu0 %v329
      %v403 = vpop.f32.mrb[0].mxu0
      %v404 = vadd.f32 %v326, %v403
      %v405 = vpop.f32.mrb[0].mxu0
      %406 = vmatprep.mubr.f32.mxu0 0.0
      %407 = vmatmul.mubr.f32.gmra.mrb[0].mxu0 %v332
      %v408 = vpop.f32.mrb[0].mxu0
      %v409 = vadd.f32 %v326, %v408
      %v410 = vpop.f32.mrb[0].mxu0
      %411 = vmatprep.mubr.f32.mxu0 0.0
      %412 = vmatmul.mubr.f32.gmra.mrb[0].mxu0 %v335
      %v413 = vpop.f32.mrb[0].mxu0
      %v414 = vadd.f32 %v326, %v413
      %v415 = vpop.f32.mrb[0].mxu0
      %416 = vdwg.mxu0
      %v417 = vld [vmem:[%s5] sm:$0xff]
      %v418 = vld [vmem:[%s5 + $0x8] sm:$0xff]
      %v419 = vld [vmem:[%s5 + $0x10] sm:$0xff]
      %v420 = vld [vmem:[%s5 + $0x18] sm:$0xff]
      %v421 = vld [vmem:[%s5 + $0x20] sm:$0xff]
      %v422 = vld [vmem:[%s5 + $0x28] sm:$0xff]
      %v423 = vld [vmem:[%s5 + $0x30] sm:$0xff]
      %v424 = vld [vmem:[%s5 + $0x38] sm:$0xff]
      %v425 = vld [vmem:[%s5 + $0x40] sm:$0xff]
      %v426 = vld [vmem:[%s5 + $0x48] sm:$0xff]
      %v427 = vld [vmem:[%s5 + $0x50] sm:$0xff]
      %v428 = vld [vmem:[%s5 + $0x58] sm:$0xff]
      %v429 = vld [vmem:[%s5 + $0x60] sm:$0xff]
      %v430 = vld [vmem:[%s5 + $0x68] sm:$0xff]
      %v431 = vld [vmem:[%s5 + $0x70] sm:$0xff]
      %v432 = vld [vmem:[%s5 + $0x78] sm:$0xff]
      %v433 = vld [vmem:[%s5 + $0x80] sm:$0xff]
      %v434 = vld [vmem:[%s5 + $0x88] sm:$0xff]
      %v435 = vld [vmem:[%s5 + $0x90] sm:$0xff]
      %v436 = vld [vmem:[%s5 + $0x98] sm:$0xff]
      %v437 = vld [vmem:[%s5 + $0xa0] sm:$0xff]
      %v438 = vld [vmem:[%s5 + $0xa8] sm:$0xff]
      %v439 = vld [vmem:[%s5 + $0xb0] sm:$0xff]
      %v440 = vld [vmem:[%s5 + $0xb8] sm:$0xff]
      %v441 = vld [vmem:[%s5 + $0xc0] sm:$0xff]
      %v442 = vld [vmem:[%s5 + $0xc8] sm:$0xff]
      %v443 = vld [vmem:[%s5 + $0xd0] sm:$0xff]
      %v444 = vld [vmem:[%s5 + $0xd8] sm:$0xff]
      %v445 = vld [vmem:[%s5 + $0xe0] sm:$0xff]
      %v446 = vld [vmem:[%s5 + $0xe8] sm:$0xff]
      %v447 = vld [vmem:[%s5 + $0xf0] sm:$0xff]
      %v448 = vld [vmem:[%s5 + $0xf8] sm:$0xff]
      %vm449 = vcmask 138240
      %v451 = vsel %vm449, %v417, 0
      %v454 = vsel %vm449, %v418, 0
      %v457 = vsel %vm449, %v419, 0
      %v460 = vsel %vm449, %v420, 0
      %v463 = vsel %vm449, %v421, 0
      %v466 = vsel %vm449, %v422, 0
      %v469 = vsel %vm449, %v423, 0
      %v472 = vsel %vm449, %v424, 0
      %v475 = vsel %vm449, %v425, 0
      %v478 = vsel %vm449, %v426, 0
      %v481 = vsel %vm449, %v427, 0
      %v484 = vsel %vm449, %v428, 0
      %v487 = vsel %vm449, %v429, 0
      %v490 = vsel %vm449, %v430, 0
      %v493 = vsel %vm449, %v431, 0
      %v496 = vsel %vm449, %v432, 0
      %v499 = vsel %vm449, %v433, 0
      %v502 = vsel %vm449, %v434, 0
      %v505 = vsel %vm449, %v435, 0
      %v508 = vsel %vm449, %v436, 0
      %v511 = vsel %vm449, %v437, 0
      %v514 = vsel %vm449, %v438, 0
      %v517 = vsel %vm449, %v439, 0
      %v520 = vsel %vm449, %v440, 0
      %v523 = vsel %vm449, %v441, 0
      %v526 = vsel %vm449, %v442, 0
      %v529 = vsel %vm449, %v443, 0
      %v532 = vsel %vm449, %v444, 0
      %v535 = vsel %vm449, %v445, 0
      %v538 = vsel %vm449, %v446, 0
      %v541 = vsel %vm449, %v447, 0
      %v544 = vsel %vm449, %v448, 0
      %vm546 = vcmask 1040384
      %v548 = vsel %vm546, %v414, 0
      %550 = vmatprep.subr.mxu0 0.0
      %551 = vmatpush1.msra.mxu0 %v404
      %552 = vmatprep.subr.mxu0 0.0
      %553 = vmatpush1.msra.mxu0 %v409
      %554 = vmatprep.subr.mxu0 0.0
      %555 = vmatpush1.msra.mxu0 %v548
      %556 = vmatprep.subr.mxu0 0.0
      %557 = vmatpush1.msra.mxu0 0.0
      %558 = vmatprep.subr.mxu0 0.0
      %559 = vmatpush1.msra.mxu0 0.0
      %560 = vmatprep.subr.mxu0 0.0
      %561 = vmatpush1.msra.mxu0 0.0
      %562 = vmatprep.subr.mxu0 0.0
      %563 = vmatpush1.msra.mxu0 0.0
      %564 = vmatprep.subr.mxu0 0.0
      %565 = vmatpush1.msra.mxu0 0.0
      %566 = vmatprep.subr.mxu0 0.0
      %567 = vmatpush1.msra.mxu0 0.0
      %568 = vmatprep.subr.mxu0 0.0
      %569 = vmatpush1.msra.mxu0 0.0
      %570 = vmatprep.subr.mxu0 0.0
      %571 = vmatpush1.msra.mxu0 0.0
      %572 = vmatprep.subr.mxu0 0.0
      %573 = vmatpush1.msra.mxu0 0.0
      %574 = vmatprep.subr.mxu0 0.0
      %575 = vmatpush1.msra.mxu0 0.0
      %576 = vmatprep.subr.mxu0 0.0
      %577 = vmatpush1.msra.mxu0 0.0
      %578 = vmatprep.subr.mxu0 0.0
      %579 = vmatpush1.msra.mxu0 0.0
      %580 = vmatprep.subr.mxu0 0.0
      %581 = vmatpush1.msra.mxu0 0.0
      %582 = vmatprep.subr.mxu0 0.0
      %583 = vmatpush1.msra.mxu0 0.0
      %584 = vmatprep.subr.mxu0 0.0
      %585 = vmatpush1.msra.mxu0 0.0
      %586 = vmatprep.subr.mxu0 0.0
      %587 = vmatpush1.msra.mxu0 0.0
      %588 = vmatprep.subr.mxu0 0.0
      %589 = vmatpush1.msra.mxu0 0.0
      %590 = vmatprep.subr.mxu0 0.0
      %591 = vmatpush1.msra.mxu0 0.0
      %592 = vmatprep.subr.mxu0 0.0
      %593 = vmatpush1.msra.mxu0 0.0
      %594 = vmatprep.subr.mxu0 0.0
      %595 = vmatpush1.msra.mxu0 0.0
      %596 = vmatprep.subr.mxu0 0.0
      %597 = vmatpush1.msra.mxu0 0.0
      %598 = vmatprep.subr.mxu0 0.0
      %599 = vmatpush1.msra.mxu0 0.0
      %600 = vmatprep.subr.mxu0 0.0
      %601 = vmatpush1.msra.mxu0 0.0
      %602 = vmatprep.subr.mxu0 0.0
      %603 = vmatpush1.msra.mxu0 0.0
      %604 = vmatprep.subr.mxu0 0.0
      %605 = vmatpush1.msra.mxu0 0.0
      %606 = vmatprep.subr.mxu0 0.0
      %607 = vmatpush1.msra.mxu0 0.0
      %608 = vmatprep.subr.mxu0 0.0
      %609 = vmatpush1.msra.mxu0 0.0
      %610 = vmatprep.subr.mxu0 0.0
      %611 = vmatpush1.msra.mxu0 0.0
      %612 = vmatprep.subr.mxu0 0.0
      %613 = vmatpush1.msra.mxu0 0.0
      %614 = vmatprep.mubr.f32.mxu0 0.0
      %615 = vmatmul.mubr.f32.gmra.mrb[0].mxu0 %v451
      %v616 = vpop.f32.mrb[0].mxu0
      %v617 = vadd.f32 0.0, %v616
      %v618 = vpop.f32.mrb[0].mxu0
      %619 = vmatprep.mubr.f32.mxu0 0.0
      %620 = vmatmul.mubr.f32.gmra.mrb[0].mxu0 %v454
      %v621 = vpop.f32.mrb[0].mxu0
      %v622 = vadd.f32 0.0, %v621
      %v623 = vpop.f32.mrb[0].mxu0
      %624 = vmatprep.mubr.f32.mxu0 0.0
      %625 = vmatmul.mubr.f32.gmra.mrb[0].mxu0 %v457
      %v626 = vpop.f32.mrb[0].mxu0
      %v627 = vadd.f32 0.0, %v626
      %v628 = vpop.f32.mrb[0].mxu0
      %629 = vmatprep.mubr.f32.mxu0 0.0
      %630 = vmatmul.mubr.f32.gmra.mrb[0].mxu0 %v460
      %v631 = vpop.f32.mrb[0].mxu0
      %v632 = vadd.f32 0.0, %v631
      %v633 = vpop.f32.mrb[0].mxu0
      %634 = vmatprep.mubr.f32.mxu0 0.0
      %635 = vmatmul.mubr.f32.gmra.mrb[0].mxu0 %v463
      %v636 = vpop.f32.mrb[0].mxu0
      %v637 = vadd.f32 0.0, %v636
      %v638 = vpop.f32.mrb[0].mxu0
      %639 = vmatprep.mubr.f32.mxu0 0.0
      %640 = vmatmul.mubr.f32.gmra.mrb[0].mxu0 %v466
      %v641 = vpop.f32.mrb[0].mxu0
      %v642 = vadd.f32 0.0, %v641
      %v643 = vpop.f32.mrb[0].mxu0
      %644 = vmatprep.mubr.f32.mxu0 0.0
      %645 = vmatmul.mubr.f32.gmra.mrb[0].mxu0 %v469
      %v646 = vpop.f32.mrb[0].mxu0
      %v647 = vadd.f32 0.0, %v646
      %v648 = vpop.f32.mrb[0].mxu0
      %649 = vmatprep.mubr.f32.mxu0 0.0
      %650 = vmatmul.mubr.f32.gmra.mrb[0].mxu0 %v472
      %v651 = vpop.f32.mrb[0].mxu0
      %v652 = vadd.f32 0.0, %v651
      %v653 = vpop.f32.mrb[0].mxu0
      %654 = vmatprep.mubr.f32.mxu0 0.0
      %655 = vmatmul.mubr.f32.gmra.mrb[0].mxu0 %v475
      %v656 = vpop.f32.mrb[0].mxu0
      %v657 = vadd.f32 0.0, %v656
      %v658 = vpop.f32.mrb[0].mxu0
      %659 = vmatprep.mubr.f32.mxu0 0.0
      %660 = vmatmul.mubr.f32.gmra.mrb[0].mxu0 %v478
      %v661 = vpop.f32.mrb[0].mxu0
      %v662 = vadd.f32 0.0, %v661
      %v663 = vpop.f32.mrb[0].mxu0
      %664 = vmatprep.mubr.f32.mxu0 0.0
      %665 = vmatmul.mubr.f32.gmra.mrb[0].mxu0 %v481
      %v666 = vpop.f32.mrb[0].mxu0
      %v667 = vadd.f32 0.0, %v666
      %v668 = vpop.f32.mrb[0].mxu0
      %669 = vmatprep.mubr.f32.mxu0 0.0
      %670 = vmatmul.mubr.f32.gmra.mrb[0].mxu0 %v484
      %v671 = vpop.f32.mrb[0].mxu0
      %v672 = vadd.f32 0.0, %v671
      %v673 = vpop.f32.mrb[0].mxu0
      %674 = vmatprep.mubr.f32.mxu0 0.0
      %675 = vmatmul.mubr.f32.gmra.mrb[0].mxu0 %v487
      %v676 = vpop.f32.mrb[0].mxu0
      %v677 = vadd.f32 0.0, %v676
      %v678 = vpop.f32.mrb[0].mxu0
      %679 = vmatprep.mubr.f32.mxu0 0.0
      %680 = vmatmul.mubr.f32.gmra.mrb[0].mxu0 %v490
      %v681 = vpop.f32.mrb[0].mxu0
      %v682 = vadd.f32 0.0, %v681
      %v683 = vpop.f32.mrb[0].mxu0
      %684 = vmatprep.mubr.f32.mxu0 0.0
      %685 = vmatmul.mubr.f32.gmra.mrb[0].mxu0 %v493
      %v686 = vpop.f32.mrb[0].mxu0
      %v687 = vadd.f32 0.0, %v686
      %v688 = vpop.f32.mrb[0].mxu0
      %689 = vmatprep.mubr.f32.mxu0 0.0
      %690 = vmatmul.mubr.f32.gmra.mrb[0].mxu0 %v496
      %v691 = vpop.f32.mrb[0].mxu0
      %v692 = vadd.f32 0.0, %v691
      %v693 = vpop.f32.mrb[0].mxu0
      %694 = vmatprep.mubr.f32.mxu0 0.0
      %695 = vmatmul.mubr.f32.gmra.mrb[0].mxu0 %v499
      %v696 = vpop.f32.mrb[0].mxu0
      %v697 = vadd.f32 0.0, %v696
      %v698 = vpop.f32.mrb[0].mxu0
      %699 = vmatprep.mubr.f32.mxu0 0.0
      %700 = vmatmul.mubr.f32.gmra.mrb[0].mxu0 %v502
      %v701 = vpop.f32.mrb[0].mxu0
      %v702 = vadd.f32 0.0, %v701
      %v703 = vpop.f32.mrb[0].mxu0
      %704 = vmatprep.mubr.f32.mxu0 0.0
      %705 = vmatmul.mubr.f32.gmra.mrb[0].mxu0 %v505
      %v706 = vpop.f32.mrb[0].mxu0
      %v707 = vadd.f32 0.0, %v706
      %v708 = vpop.f32.mrb[0].mxu0
      %709 = vmatprep.mubr.f32.mxu0 0.0
      %710 = vmatmul.mubr.f32.gmra.mrb[0].mxu0 %v508
      %v711 = vpop.f32.mrb[0].mxu0
      %v712 = vadd.f32 0.0, %v711
      %v713 = vpop.f32.mrb[0].mxu0
      %714 = vmatprep.mubr.f32.mxu0 0.0
      %715 = vmatmul.mubr.f32.gmra.mrb[0].mxu0 %v511
      %v716 = vpop.f32.mrb[0].mxu0
      %v717 = vadd.f32 0.0, %v716
      %v718 = vpop.f32.mrb[0].mxu0
      %719 = vmatprep.mubr.f32.mxu0 0.0
      %720 = vmatmul.mubr.f32.gmra.mrb[0].mxu0 %v514
      %v721 = vpop.f32.mrb[0].mxu0
      %v722 = vadd.f32 0.0, %v721
      %v723 = vpop.f32.mrb[0].mxu0
      %724 = vmatprep.mubr.f32.mxu0 0.0
      %725 = vmatmul.mubr.f32.gmra.mrb[0].mxu0 %v517
      %v726 = vpop.f32.mrb[0].mxu0
      %v727 = vadd.f32 0.0, %v726
      %v728 = vpop.f32.mrb[0].mxu0
      %729 = vmatprep.mubr.f32.mxu0 0.0
      %730 = vmatmul.mubr.f32.gmra.mrb[0].mxu0 %v520
      %v731 = vpop.f32.mrb[0].mxu0
      %v732 = vadd.f32 0.0, %v731
      %v733 = vpop.f32.mrb[0].mxu0
      %734 = vmatprep.mubr.f32.mxu0 0.0
      %735 = vmatmul.mubr.f32.gmra.mrb[0].mxu0 %v523
      %v736 = vpop.f32.mrb[0].mxu0
      %v737 = vadd.f32 0.0, %v736
      %v738 = vpop.f32.mrb[0].mxu0
      %739 = vmatprep.mubr.f32.mxu0 0.0
      %740 = vmatmul.mubr.f32.gmra.mrb[0].mxu0 %v526
      %v741 = vpop.f32.mrb[0].mxu0
      %v742 = vadd.f32 0.0, %v741
      %v743 = vpop.f32.mrb[0].mxu0
      %744 = vmatprep.mubr.f32.mxu0 0.0
      %745 = vmatmul.mubr.f32.gmra.mrb[0].mxu0 %v529
      %v746 = vpop.f32.mrb[0].mxu0
      %v747 = vadd.f32 0.0, %v746
      %v748 = vpop.f32.mrb[0].mxu0
      %749 = vmatprep.mubr.f32.mxu0 0.0
      %750 = vmatmul.mubr.f32.gmra.mrb[0].mxu0 %v532
      %v751 = vpop.f32.mrb[0].mxu0
      %v752 = vadd.f32 0.0, %v751
      %v753 = vpop.f32.mrb[0].mxu0
      %754 = vmatprep.mubr.f32.mxu0 0.0
      %755 = vmatmul.mubr.f32.gmra.mrb[0].mxu0 %v535
      %v756 = vpop.f32.mrb[0].mxu0
      %v757 = vadd.f32 0.0, %v756
      %v758 = vpop.f32.mrb[0].mxu0
      %759 = vmatprep.mubr.f32.mxu0 0.0
      %760 = vmatmul.mubr.f32.gmra.mrb[0].mxu0 %v538
      %v761 = vpop.f32.mrb[0].mxu0
      %v762 = vadd.f32 0.0, %v761
      %v763 = vpop.f32.mrb[0].mxu0
      %764 = vmatprep.mubr.f32.mxu0 0.0
      %765 = vmatmul.mubr.f32.gmra.mrb[0].mxu0 %v541
      %v766 = vpop.f32.mrb[0].mxu0
      %v767 = vadd.f32 0.0, %v766
      %v768 = vpop.f32.mrb[0].mxu0
      %769 = vmatprep.mubr.f32.mxu0 0.0
      %770 = vmatmul.mubr.f32.gmra.mrb[0].mxu0 %v544
      %v771 = vpop.f32.mrb[0].mxu0
      %v772 = vadd.f32 0.0, %v771
      %v773 = vpop.f32.mrb[0].mxu0
      %774 = vdwg.mxu0
      %vm775 = vcmask 39936
      %776 = vst.msk [vmem:[%s251] sm:$0xff] %vm775, %v617
      %777 = vst.msk [vmem:[%s251 + $0x8] sm:$0xff] %vm775, %v622
      %778 = vst.msk [vmem:[%s251 + $0x10] sm:$0xff] %vm775, %v627
      %779 = vst.msk [vmem:[%s251 + $0x18] sm:$0xff] %vm775, %v632
      %780 = vst.msk [vmem:[%s251 + $0x20] sm:$0xff] %vm775, %v637
      %781 = vst.msk [vmem:[%s251 + $0x28] sm:$0xff] %vm775, %v642
      %782 = vst.msk [vmem:[%s251 + $0x30] sm:$0xff] %vm775, %v647
      %783 = vst.msk [vmem:[%s251 + $0x38] sm:$0xff] %vm775, %v652
      %784 = vst.msk [vmem:[%s251 + $0x40] sm:$0xff] %vm775, %v657
      %785 = vst.msk [vmem:[%s251 + $0x48] sm:$0xff] %vm775, %v662
      %786 = vst.msk [vmem:[%s251 + $0x50] sm:$0xff] %vm775, %v667
      %787 = vst.msk [vmem:[%s251 + $0x58] sm:$0xff] %vm775, %v672
      %788 = vst.msk [vmem:[%s251 + $0x60] sm:$0xff] %vm775, %v677
      %789 = vst.msk [vmem:[%s251 + $0x68] sm:$0xff] %vm775, %v682
      %790 = vst.msk [vmem:[%s251 + $0x70] sm:$0xff] %vm775, %v687
      %791 = vst.msk [vmem:[%s251 + $0x78] sm:$0xff] %vm775, %v692
      %792 = vst.msk [vmem:[%s251 + $0x80] sm:$0xff] %vm775, %v697
      %793 = vst.msk [vmem:[%s251 + $0x88] sm:$0xff] %vm775, %v702
      %794 = vst.msk [vmem:[%s251 + $0x90] sm:$0xff] %vm775, %v707
      %795 = vst.msk [vmem:[%s251 + $0x98] sm:$0xff] %vm775, %v712
      %796 = vst.msk [vmem:[%s251 + $0xa0] sm:$0xff] %vm775, %v717
      %797 = vst.msk [vmem:[%s251 + $0xa8] sm:$0xff] %vm775, %v722
      %798 = vst.msk [vmem:[%s251 + $0xb0] sm:$0xff] %vm775, %v727
      %799 = vst.msk [vmem:[%s251 + $0xb8] sm:$0xff] %vm775, %v732
      %800 = vst.msk [vmem:[%s251 + $0xc0] sm:$0xff] %vm775, %v737
      %801 = vst.msk [vmem:[%s251 + $0xc8] sm:$0xff] %vm775, %v742
      %802 = vst.msk [vmem:[%s251 + $0xd0] sm:$0xff] %vm775, %v747
      %803 = vst.msk [vmem:[%s251 + $0xd8] sm:$0xff] %vm775, %v752
      %804 = vst.msk [vmem:[%s251 + $0xe0] sm:$0xff] %vm775, %v757
      %805 = vst.msk [vmem:[%s251 + $0xe8] sm:$0xff] %vm775, %v762
      %806 = vst.msk [vmem:[%s251 + $0xf0] sm:$0xff] %vm775, %v767
      %807 = vst.msk [vmem:[%s251 + $0xf8] sm:$0xff] %vm775, %v772
      %p808 = scmp.lt.s32.totalorder %s17, 1
      %s809 = scalar_select %p808, %s17, 1
      %s810 = smul.addr %s809, 32
      %s811 = smul.addr %s810, 8
      %s812 = scalar_lea.vmem %s6, %s811
      // Predicated region
      $region45: #{segmenter_forward.7} parent=43 // pred_check
        %p813 = pneg %p166
      $region46: #{segmenter_forward.7} parent=43 // pred_check_branch
        %815 = sbr.rel (%p813) target = $region48
      $region47: #{segmenter_forward.7} parent=43 // pred_region
        _
      $region48: #{segmenter_forward.7} parent=43 // pred_fallthru
        _
    $region44: #{segmenter_forward.7} parent=5 // pred_fallthru
      _
    %p816 = scmp.le.s32.totalorder 2, %s12
    // Predicated region
    $region49: #{segmenter_forward.7} parent=5 // pred_check
      %p817 = pneg %p816
    $region50: #{segmenter_forward.7} parent=5 // pred_check_branch
      %819 = sbr.rel (%p817) target = $region52
    $region51: #{segmenter_forward.7} parent=5 // pred_region
      %s820 = ssub.s32 %s12, 2
      // Predicated region
      $region53: #{segmenter_forward.7} parent=51 // pred_check
        %p821 = pneg %p172
      $region54: #{segmenter_forward.7} parent=51 // pred_check_branch
        %823 = sbr.rel (%p821) target = $region56
      $region55: #{segmenter_forward.7} parent=51 // pred_region
        %p824 = scmp.lt.s32.totalorder %s18, 1
        %s825 = scalar_select %p824, %s18, 1
        %s826 = smul.addr %s825, 32
        %s827 = smul.addr %s826, 8
        %s828 = scalar_lea.vmem %s6, %s827
      $region56: #{segmenter_forward.7} parent=51 // pred_fallthru
        _
    $region52: #{segmenter_forward.7} parent=5 // pred_fallthru
      _
  $region6: #{segmenter_forward.7} parent=0 // loop_footer
    %s16 = sadd.s32 1, %s12
  $region7: #{segmenter_forward.7} parent=0 // loop_footer_branch
    %11 = sbr.rel target = $region3
  $region8: #{segmenter_forward.7} parent=0 // loop_exit
    _

// kernel: segmenter_forward.5
$region0: #{segmenter_forward.5}
  #allocation0 [shape = 'u32[]', space=smem, size = 0x4, offset = 0x4, fixed_abs, tag = 'smem constant byte address 0x4 - core index']
  #allocation1 [shape = 'u32[144,128]{1,0:T(1,128)}', space=vmem, size = 0x12000, scoped, tag = 'internal scratch']
  %s0 = inlined_call_operand.vmem [shape: f32[2,17,32], index: 0, kind: input, shape index: {}]
  %s1 = inlined_call_operand.vmem [shape: f32[1,32], index: 1, kind: input, shape index: {}]
  %s2 = inlined_call_operand.vmem [shape: f32[1,32], index: 2, kind: input, shape index: {}]
  %s3 = inlined_call_operand.vmem [shape: bf16[6,32,16], index: 3, kind: input, shape index: {}]
  %s4 = inlined_call_operand.vmem [shape: f32[6,1,16], index: 4, kind: input, shape index: {}]
  %s5 = inlined_call_operand.vmem [shape: bf16[2,16,32], index: 5, kind: input, shape index: {}]
  %s6 = inlined_call_operand.vmem [shape: f32[1,32], index: 6, kind: input, shape index: {}]
  %s7 = inlined_call_operand.vmem [shape: f32[1,32], index: 7, kind: input, shape index: {}]
  %s8 = inlined_call_operand.vmem [shape: f32[1,32], index: 8, kind: input, shape index: {}]
  %s9 = inlined_call_operand.vmem [shape: bf16[32,64], index: 9, kind: input, shape index: {}]
  %s10 = inlined_call_operand.vmem [shape: f32[1,64], index: 10, kind: input, shape index: {}]
  %s11 = inlined_call_operand.vmem [shape: bf16[64,32], index: 11, kind: input, shape index: {}]
  %s12 = inlined_call_operand.vmem [shape: f32[1,32], index: 12, kind: input, shape index: {}]
  %s13 = inlined_call_operand.vmem [shape: f32[2,17,32], index: 13, kind: output, shape index: {}]
  %s14 = sld [smem:[#allocation0]]
  $region85: #{segmenter_forward.5} parent=0
    _
  %s16 = ssub.s32 1, %s14
  %s17 = scalar_select 0, %s16, %s14
  loop: start=0, step=1, limit=4
  $region2: #{segmenter_forward.5} parent=0 // loop_pre_header
    _
  $region3: #{segmenter_forward.5} parent=0 // loop_header
    %s19 = sphi 0, %s23
    %p20 = scmp.ge.s32.totalorder %s19, 4
    %s29 = sphi 0, %s31
    %s32 = sphi 0, %s29
    %s33 = sphi 0, %s32
    %s49 = sphi 0, %s33
    %s53 = sphi 0, %s53
    %s55 = sphi 0, %s53
    %s56 = sphi 0, %s55
    %s70 = sphi 0, %s56
    %s74 = sphi 0, %s74
    %s76 = sphi 0, %s74
    %s77 = sphi 0, %s76
    %s91 = sphi 0, %s77
    %s95 = sphi 0, %s95
    %s97 = sphi 0, %s95
    %s98 = sphi 0, %s97
    %s112 = sphi 0, %s98
    %s116 = sphi 0, %s116
    %s118 = sphi 0, %s116
    %s119 = sphi 0, %s118
    %s133 = sphi 0, %s119
    %s137 = sphi 0, %s137
    %s139 = sphi 0, %s137
    %s140 = sphi 0, %s139
    %s154 = sphi 0, %s140
    %s158 = sphi 0, %s158
    %s160 = sphi 0, %s158
    %s161 = sphi 0, %s160
    %s175 = sphi 0, %s161
    %s179 = sphi 0, %s179
    %s181 = sphi 0, %s179
    %s182 = sphi 0, %s181
    %s196 = sphi 0, %s182
    %s200 = sphi 0, %s200
    %s202 = sphi 0, %s200
    %s203 = sphi 0, %s202
    %s217 = sphi 0, %s203
    %s221 = sphi 0, %s221
    %s223 = sphi 0, %s221
    %s224 = sphi 0, %s223
    %s238 = sphi 0, %s224
    %s242 = sphi 0, %s242
    %s244 = sphi 0, %s242
    %s245 = sphi 0, %s244
    %s259 = sphi 0, %s245
    %s263 = sphi 0, %s263
    %s265 = sphi 0, %s263
    %s266 = sphi 0, %s265
    %s280 = sphi 0, %s266
    %s284 = sphi 0, %s284
    %s286 = sphi 0, %s284
    %s287 = sphi 0, %s286
    %s301 = sphi 0, %s287
    %s307 = sphi 0, %s309
    %s310 = sphi 0, %s307
    %s311 = sphi 0, %s310
    %s327 = sphi 0, %s311
  $region4: #{segmenter_forward.5} parent=0 // loop_header_branch
    %22 = sbr.rel (%p20) target = $region8
  $region5: #{segmenter_forward.5} parent=0 // loop_body
    %s24 = ssub.s32 %s19, 1
    %s25 = ssub.s32 %s19, 2
    %s26 = sadd.s32 %s19, 1
    %s27 = ssub.s32 %s19, %s26
    %p28 = scmp.eq.s32.totalorder %s27, 0
    %s30 = sadd.s32 %s29, 1
    %s31 = scalar_select %p28, %s29, %s30
    %p34 = pneg %p28
    %p35 = scmp.eq.s32.totalorder %s19, 1
    %p36 = por %p34, %p35
    %p37 = scmp.ne.s32.totalorder %s29, %s32
    %p38 = scmp.eq.s32.totalorder %s19, 0
    %p39 = por %p37, %p38
    %p40 = scmp.ne.s32.totalorder %s29, %s32
    %p41 = scmp.eq.s32.totalorder %s24, 1
    %p42 = por %p40, %p41
    %p43 = scmp.ne.s32.totalorder %s32, %s33
    %p44 = scmp.eq.s32.totalorder %s24, 0
    %p45 = por %p43, %p44
    %p46 = scmp.ne.s32.totalorder %s32, %s33
    %p47 = scmp.eq.s32.totalorder %s25, 1
    %p48 = por %p46, %p47
    %p50 = scmp.ne.s32.totalorder %s33, %s49
    %p51 = scmp.eq.s32.totalorder %s25, 0
    %p52 = por %p50, %p51
    %s54 = sadd.s32 %s53, 1
    %p57 = scmp.eq.s32.totalorder %s19, 1
    %p58 = scmp.ne.s32.totalorder %s53, %s55
    %p59 = scmp.eq.s32.totalorder %s19, 0
    %p60 = por %p58, %p59
    %p61 = scmp.ne.s32.totalorder %s53, %s55
    %p62 = scmp.eq.s32.totalorder %s24, 1
    %p63 = por %p61, %p62
    %p64 = scmp.ne.s32.totalorder %s55, %s56
    %p65 = scmp.eq.s32.totalorder %s24, 0
    %p66 = por %p64, %p65
    %p67 = scmp.ne.s32.totalorder %s55, %s56
    %p68 = scmp.eq.s32.totalorder %s25, 1
    %p69 = por %p67, %p68
    %p71 = scmp.ne.s32.totalorder %s56, %s70
    %p72 = scmp.eq.s32.totalorder %s25, 0
    %p73 = por %p71, %p72
    %s75 = sadd.s32 %s74, 1
    %p78 = scmp.eq.s32.totalorder %s19, 1
    %p79 = scmp.ne.s32.totalorder %s74, %s76
    %p80 = scmp.eq.s32.totalorder %s19, 0
    %p81 = por %p79, %p80
    %p82 = scmp.ne.s32.totalorder %s74, %s76
    %p83 = scmp.eq.s32.totalorder %s24, 1
    %p84 = por %p82, %p83
    %p85 = scmp.ne.s32.totalorder %s76, %s77
    %p86 = scmp.eq.s32.totalorder %s24, 0
    %p87 = por %p85, %p86
    %p88 = scmp.ne.s32.totalorder %s76, %s77
    %p89 = scmp.eq.s32.totalorder %s25, 1
    %p90 = por %p88, %p89
    %p92 = scmp.ne.s32.totalorder %s77, %s91
    %p93 = scmp.eq.s32.totalorder %s25, 0
    %p94 = por %p92, %p93
    %s96 = sadd.s32 %s95, 1
    %p99 = scmp.eq.s32.totalorder %s19, 1
    %p100 = scmp.ne.s32.totalorder %s95, %s97
    %p101 = scmp.eq.s32.totalorder %s19, 0
    %p102 = por %p100, %p101
    %p103 = scmp.ne.s32.totalorder %s95, %s97
    %p104 = scmp.eq.s32.totalorder %s24, 1
    %p105 = por %p103, %p104
    %p106 = scmp.ne.s32.totalorder %s97, %s98
    %p107 = scmp.eq.s32.totalorder %s24, 0
    %p108 = por %p106, %p107
    %p109 = scmp.ne.s32.totalorder %s97, %s98
    %p110 = scmp.eq.s32.totalorder %s25, 1
    %p111 = por %p109, %p110
    %p113 = scmp.ne.s32.totalorder %s98, %s112
    %p114 = scmp.eq.s32.totalorder %s25, 0
    %p115 = por %p113, %p114
    %s117 = sadd.s32 %s116, 1
    %p120 = scmp.eq.s32.totalorder %s19, 1
    %p121 = scmp.ne.s32.totalorder %s116, %s118
    %p122 = scmp.eq.s32.totalorder %s19, 0
    %p123 = por %p121, %p122
    %p124 = scmp.ne.s32.totalorder %s116, %s118
    %p125 = scmp.eq.s32.totalorder %s24, 1
    %p126 = por %p124, %p125
    %p127 = scmp.ne.s32.totalorder %s118, %s119
    %p128 = scmp.eq.s32.totalorder %s24, 0
    %p129 = por %p127, %p128
    %p130 = scmp.ne.s32.totalorder %s118, %s119
    %p131 = scmp.eq.s32.totalorder %s25, 1
    %p132 = por %p130, %p131
    %p134 = scmp.ne.s32.totalorder %s119, %s133
    %p135 = scmp.eq.s32.totalorder %s25, 0
    %p136 = por %p134, %p135
    %s138 = sadd.s32 %s137, 1
    %p141 = scmp.eq.s32.totalorder %s19, 1
    %p142 = scmp.ne.s32.totalorder %s137, %s139
    %p143 = scmp.eq.s32.totalorder %s19, 0
    %p144 = por %p142, %p143
    %p145 = scmp.ne.s32.totalorder %s137, %s139
    %p146 = scmp.eq.s32.totalorder %s24, 1
    %p147 = por %p145, %p146
    %p148 = scmp.ne.s32.totalorder %s139, %s140
    %p149 = scmp.eq.s32.totalorder %s24, 0
    %p150 = por %p148, %p149
    %p151 = scmp.ne.s32.totalorder %s139, %s140
    %p152 = scmp.eq.s32.totalorder %s25, 1
    %p153 = por %p151, %p152
    %p155 = scmp.ne.s32.totalorder %s140, %s154
    %p156 = scmp.eq.s32.totalorder %s25, 0
    %p157 = por %p155, %p156
    %s159 = sadd.s32 %s158, 1
    %p162 = scmp.eq.s32.totalorder %s19, 1
    %p163 = scmp.ne.s32.totalorder %s158, %s160
    %p164 = scmp.eq.s32.totalorder %s19, 0
    %p165 = por %p163, %p164
    %p166 = scmp.ne.s32.totalorder %s158, %s160
    %p167 = scmp.eq.s32.totalorder %s24, 1
    %p168 = por %p166, %p167
    %p169 = scmp.ne.s32.totalorder %s160, %s161
    %p170 = scmp.eq.s32.totalorder %s24, 0
    %p171 = por %p169, %p170
    %p172 = scmp.ne.s32.totalorder %s160, %s161
    %p173 = scmp.eq.s32.totalorder %s25, 1
    %p174 = por %p172, %p173
    %p176 = scmp.ne.s32.totalorder %s161, %s175
    %p177 = scmp.eq.s32.totalorder %s25, 0
    %p178 = por %p176, %p177
    %s180 = sadd.s32 %s179, 1
    %p183 = scmp.eq.s32.totalorder %s19, 1
    %p184 = scmp.ne.s32.totalorder %s179, %s181
    %p185 = scmp.eq.s32.totalorder %s19, 0
    %p186 = por %p184, %p185
    %p187 = scmp.ne.s32.totalorder %s179, %s181
    %p188 = scmp.eq.s32.totalorder %s24, 1
    %p189 = por %p187, %p188
    %p190 = scmp.ne.s32.totalorder %s181, %s182
    %p191 = scmp.eq.s32.totalorder %s24, 0
    %p192 = por %p190, %p191
    %p193 = scmp.ne.s32.totalorder %s181, %s182
    %p194 = scmp.eq.s32.totalorder %s25, 1
    %p195 = por %p193, %p194
    %p197 = scmp.ne.s32.totalorder %s182, %s196
    %p198 = scmp.eq.s32.totalorder %s25, 0
    %p199 = por %p197, %p198
    %s201 = sadd.s32 %s200, 1
    %p204 = scmp.eq.s32.totalorder %s19, 1
    %p205 = scmp.ne.s32.totalorder %s200, %s202
    %p206 = scmp.eq.s32.totalorder %s19, 0
    %p207 = por %p205, %p206
    %p208 = scmp.ne.s32.totalorder %s200, %s202
    %p209 = scmp.eq.s32.totalorder %s24, 1
    %p210 = por %p208, %p209
    %p211 = scmp.ne.s32.totalorder %s202, %s203
    %p212 = scmp.eq.s32.totalorder %s24, 0
    %p213 = por %p211, %p212
    %p214 = scmp.ne.s32.totalorder %s202, %s203
    %p215 = scmp.eq.s32.totalorder %s25, 1
    %p216 = por %p214, %p215
    %p218 = scmp.ne.s32.totalorder %s203, %s217
    %p219 = scmp.eq.s32.totalorder %s25, 0
    %p220 = por %p218, %p219
    %s222 = sadd.s32 %s221, 1
    %p225 = scmp.eq.s32.totalorder %s19, 1
    %p226 = scmp.ne.s32.totalorder %s221, %s223
    %p227 = scmp.eq.s32.totalorder %s19, 0
    %p228 = por %p226, %p227
    %p229 = scmp.ne.s32.totalorder %s221, %s223
    %p230 = scmp.eq.s32.totalorder %s24, 1
    %p231 = por %p229, %p230
    %p232 = scmp.ne.s32.totalorder %s223, %s224
    %p233 = scmp.eq.s32.totalorder %s24, 0
    %p234 = por %p232, %p233
    %p235 = scmp.ne.s32.totalorder %s223, %s224
    %p236 = scmp.eq.s32.totalorder %s25, 1
    %p237 = por %p235, %p236
    %p239 = scmp.ne.s32.totalorder %s224, %s238
    %p240 = scmp.eq.s32.totalorder %s25, 0
    %p241 = por %p239, %p240
    %s243 = sadd.s32 %s242, 1
    %p246 = scmp.eq.s32.totalorder %s19, 1
    %p247 = scmp.ne.s32.totalorder %s242, %s244
    %p248 = scmp.eq.s32.totalorder %s19, 0
    %p249 = por %p247, %p248
    %p250 = scmp.ne.s32.totalorder %s242, %s244
    %p251 = scmp.eq.s32.totalorder %s24, 1
    %p252 = por %p250, %p251
    %p253 = scmp.ne.s32.totalorder %s244, %s245
    %p254 = scmp.eq.s32.totalorder %s24, 0
    %p255 = por %p253, %p254
    %p256 = scmp.ne.s32.totalorder %s244, %s245
    %p257 = scmp.eq.s32.totalorder %s25, 1
    %p258 = por %p256, %p257
    %p260 = scmp.ne.s32.totalorder %s245, %s259
    %p261 = scmp.eq.s32.totalorder %s25, 0
    %p262 = por %p260, %p261
    %s264 = sadd.s32 %s263, 1
    %p267 = scmp.eq.s32.totalorder %s19, 1
    %p268 = scmp.ne.s32.totalorder %s263, %s265
    %p269 = scmp.eq.s32.totalorder %s19, 0
    %p270 = por %p268, %p269
    %p271 = scmp.ne.s32.totalorder %s263, %s265
    %p272 = scmp.eq.s32.totalorder %s24, 1
    %p273 = por %p271, %p272
    %p274 = scmp.ne.s32.totalorder %s265, %s266
    %p275 = scmp.eq.s32.totalorder %s24, 0
    %p276 = por %p274, %p275
    %p277 = scmp.ne.s32.totalorder %s265, %s266
    %p278 = scmp.eq.s32.totalorder %s25, 1
    %p279 = por %p277, %p278
    %p281 = scmp.ne.s32.totalorder %s266, %s280
    %p282 = scmp.eq.s32.totalorder %s25, 0
    %p283 = por %p281, %p282
    %s285 = sadd.s32 %s284, 1
    %p288 = scmp.eq.s32.totalorder %s19, 1
    %p289 = scmp.ne.s32.totalorder %s284, %s286
    %p290 = scmp.eq.s32.totalorder %s19, 0
    %p291 = por %p289, %p290
    %p292 = scmp.ne.s32.totalorder %s284, %s286
    %p293 = scmp.eq.s32.totalorder %s24, 1
    %p294 = por %p292, %p293
    %p295 = scmp.ne.s32.totalorder %s286, %s287
    %p296 = scmp.eq.s32.totalorder %s24, 0
    %p297 = por %p295, %p296
    %p298 = scmp.ne.s32.totalorder %s286, %s287
    %p299 = scmp.eq.s32.totalorder %s25, 1
    %p300 = por %p298, %p299
    %p302 = scmp.ne.s32.totalorder %s287, %s301
    %p303 = scmp.eq.s32.totalorder %s25, 0
    %p304 = por %p302, %p303
    %s305 = ssub.s32 %s19, %s26
    %p306 = scmp.eq.s32.totalorder %s305, 0
    %s308 = sadd.s32 %s307, 1
    %s309 = scalar_select %p306, %s307, %s308
    %p312 = pneg %p306
    %p313 = scmp.eq.s32.totalorder %s19, 1
    %p314 = por %p312, %p313
    %p315 = scmp.ne.s32.totalorder %s307, %s310
    %p316 = scmp.eq.s32.totalorder %s19, 0
    %p317 = por %p315, %p316
    %p318 = scmp.ne.s32.totalorder %s307, %s310
    %p319 = scmp.eq.s32.totalorder %s24, 1
    %p320 = por %p318, %p319
    %p321 = scmp.ne.s32.totalorder %s310, %s311
    %p322 = scmp.eq.s32.totalorder %s24, 0
    %p323 = por %p321, %p322
    %p324 = scmp.ne.s32.totalorder %s310, %s311
    %p325 = scmp.eq.s32.totalorder %s25, 1
    %p326 = por %p324, %p325
    %p328 = scmp.ne.s32.totalorder %s311, %s327
    %p329 = scmp.eq.s32.totalorder %s25, 0
    %p330 = por %p328, %p329
    %p331 = scmp.le.s32.totalorder 1, %s19
    %p332 = scmp.lt.s32.totalorder %s19, 3
    %p333 = pnand %p331, %p332
    %p334 = pneg %p333
    // Predicated region
    $region9: #{segmenter_forward.5} parent=5 // pred_check
      _
    $region10: #{segmenter_forward.5} parent=5 // pred_check_branch
      %336 = sbr.rel (%p333) target = $region12
    $region11: #{segmenter_forward.5} parent=5 // pred_region
      %s337 = ssub.s32 %s19, 1
      // Predicated region
      $region13: #{segmenter_forward.5} parent=11 // pred_check
        %p338 = pneg %p66
      $region14: #{segmenter_forward.5} parent=11 // pred_check_branch
        %340 = sbr.rel (%p338) target = $region16
      $region15: #{segmenter_forward.5} parent=11 // pred_region
        _
      $region16: #{segmenter_forward.5} parent=11 // pred_fallthru
        _
      // Predicated region
      $region17: #{segmenter_forward.5} parent=11 // pred_check
        %p341 = pneg %p87
      $region18: #{segmenter_forward.5} parent=11 // pred_check_branch
        %343 = sbr.rel (%p341) target = $region20
      $region19: #{segmenter_forward.5} parent=11 // pred_region
        _
      $region20: #{segmenter_forward.5} parent=11 // pred_fallthru
        _
      // Predicated region
      $region21: #{segmenter_forward.5} parent=11 // pred_check
        %p344 = pneg %p108
      $region22: #{segmenter_forward.5} parent=11 // pred_check_branch
        %346 = sbr.rel (%p344) target = $region24
      $region23: #{segmenter_forward.5} parent=11 // pred_region
        _
      $region24: #{segmenter_forward.5} parent=11 // pred_fallthru
        _
      // Predicated region
      $region25: #{segmenter_forward.5} parent=11 // pred_check
        %p347 = pneg %p129
      $region26: #{segmenter_forward.5} parent=11 // pred_check_branch
        %349 = sbr.rel (%p347) target = $region28
      $region27: #{segmenter_forward.5} parent=11 // pred_region
        _
      $region28: #{segmenter_forward.5} parent=11 // pred_fallthru
        _
      // Predicated region
      $region29: #{segmenter_forward.5} parent=11 // pred_check
        %p350 = pneg %p150
      $region30: #{segmenter_forward.5} parent=11 // pred_check_branch
        %352 = sbr.rel (%p350) target = $region32
      $region31: #{segmenter_forward.5} parent=11 // pred_region
        _
      $region32: #{segmenter_forward.5} parent=11 // pred_fallthru
        _
      // Predicated region
      $region33: #{segmenter_forward.5} parent=11 // pred_check
        %p353 = pneg %p171
      $region34: #{segmenter_forward.5} parent=11 // pred_check_branch
        %355 = sbr.rel (%p353) target = $region36
      $region35: #{segmenter_forward.5} parent=11 // pred_region
        _
      $region36: #{segmenter_forward.5} parent=11 // pred_fallthru
        _
      // Predicated region
      $region37: #{segmenter_forward.5} parent=11 // pred_check
        %p356 = pneg %p192
      $region38: #{segmenter_forward.5} parent=11 // pred_check_branch
        %358 = sbr.rel (%p356) target = $region40
      $region39: #{segmenter_forward.5} parent=11 // pred_region
        _
      $region40: #{segmenter_forward.5} parent=11 // pred_fallthru
        _
      // Predicated region
      $region41: #{segmenter_forward.5} parent=11 // pred_check
        %p359 = pneg %p213
      $region42: #{segmenter_forward.5} parent=11 // pred_check_branch
        %361 = sbr.rel (%p359) target = $region44
      $region43: #{segmenter_forward.5} parent=11 // pred_region
        _
      $region44: #{segmenter_forward.5} parent=11 // pred_fallthru
        _
      // Predicated region
      $region45: #{segmenter_forward.5} parent=11 // pred_check
        %p362 = pneg %p234
      $region46: #{segmenter_forward.5} parent=11 // pred_check_branch
        %364 = sbr.rel (%p362) target = $region48
      $region47: #{segmenter_forward.5} parent=11 // pred_region
        _
      $region48: #{segmenter_forward.5} parent=11 // pred_fallthru
        _
      // Predicated region
      $region49: #{segmenter_forward.5} parent=11 // pred_check
        %p365 = pneg %p255
      $region50: #{segmenter_forward.5} parent=11 // pred_check_branch
        %367 = sbr.rel (%p365) target = $region52
      $region51: #{segmenter_forward.5} parent=11 // pred_region
        _
      $region52: #{segmenter_forward.5} parent=11 // pred_fallthru
        _
      // Predicated region
      $region53: #{segmenter_forward.5} parent=11 // pred_check
        %p368 = pneg %p276
      $region54: #{segmenter_forward.5} parent=11 // pred_check_branch
        %370 = sbr.rel (%p368) target = $region56
      $region55: #{segmenter_forward.5} parent=11 // pred_region
        _
      $region56: #{segmenter_forward.5} parent=11 // pred_fallthru
        _
      // Predicated region
      $region57: #{segmenter_forward.5} parent=11 // pred_check
        %p371 = pneg %p297
      $region58: #{segmenter_forward.5} parent=11 // pred_check_branch
        %373 = sbr.rel (%p371) target = $region60
      $region59: #{segmenter_forward.5} parent=11 // pred_region
        _
      $region60: #{segmenter_forward.5} parent=11 // pred_fallthru
        _
    $region12: #{segmenter_forward.5} parent=5 // pred_fallthru
      _
    %p374 = scmp.lt.s32.totalorder %s19, 2
    // Predicated region
    $region61: #{segmenter_forward.5} parent=5 // pred_check
      %p375 = pneg %p374
    $region62: #{segmenter_forward.5} parent=5 // pred_check_branch
      %377 = sbr.rel (%p375) target = $region64
    $region63: #{segmenter_forward.5} parent=5 // pred_region
      // Predicated region
      $region65: #{segmenter_forward.5} parent=63 // pred_check
        %p378 = pneg %p39
      $region66: #{segmenter_forward.5} parent=63 // pred_check_branch
        %380 = sbr.rel (%p378) target = $region68
      $region67: #{segmenter_forward.5} parent=63 // pred_region
        %p381 = scmp.lt.s32.totalorder %s19, 1
        %s382 = scalar_select %p381, %s19, 1
        %s383 = smul.addr %s382, 3
        %s384 = smul.addr %s383, 8
        %s385 = scalar_lea.vmem %s0, %s384
      $region68: #{segmenter_forward.5} parent=63 // pred_fallthru
        _
    $region64: #{segmenter_forward.5} parent=5 // pred_fallthru
      _
    %p386 = scmp.le.s32.totalorder 1, %s19
    %p387 = scmp.lt.s32.totalorder %s19, 3
    %p388 = pnand %p386, %p387
    %p389 = pneg %p388
    // Predicated region
    $region69: #{segmenter_forward.5} parent=5 // pred_check
      _
    $region70: #{segmenter_forward.5} parent=5 // pred_check_branch
      %391 = sbr.rel (%p388) target = $region72
    $region71: #{segmenter_forward.5} parent=5 // pred_region
      %s392 = ssub.s32 %s19, 1
      %p393 = scmp.lt.s32.totalorder %s24, 1
      %s394 = scalar_select %p393, %s24, 1
      %s395 = smul.addr %s394, 3
      %s396 = smul.addr %s395, 8
      %s397 = scalar_lea.vmem %s0, %s396
      %p398 = pneg %p45
      %p399 = pneg %p42
      %p400 = pneg %p66
      %p401 = pneg %p63
      %p402 = pneg %p87
      %p403 = pneg %p84
      %p404 = pneg %p108
      %p405 = pneg %p105
      %p406 = pneg %p129
      %p407 = pneg %p126
      %p408 = pneg %p150
      %p409 = pneg %p147
      %p410 = pneg %p171
      %p411 = pneg %p168
      %p412 = pneg %p192
      %p413 = pneg %p189
      %p414 = pneg %p213
      %p415 = pneg %p210
      %p416 = pneg %p234
      %p417 = pneg %p231
      %p418 = pneg %p255
      %p419 = pneg %p252
      %p420 = pneg %p276
      %p421 = pneg %p273
      %p422 = pneg %p297
      %p423 = pneg %p294
      %p424 = pneg %p323
      %p425 = pneg %p320
      %p426 = scmp.lt.s32.totalorder %s24, 1
      %s427 = scalar_select %p426, %s24, 1
      %s428 = smul.addr %s427, 3
      %s429 = smul.addr %s428, 8
      %s430 = scalar_lea.vmem %s13, %s429
      %p431 = scmp.lt.s32.totalorder %s24, 1
      %s432 = scalar_select %p431, %s24, 1
      %s433 = smul.addr %s432, 3
      %s434 = smul.addr %s433, 8
      %s435 = scalar_lea.vmem %s0, %s434
      %p436 = scmp.lt.s32.totalorder %s24, 1
      %s437 = scalar_select %p436, %s24, 1
      %s438 = smul.addr %s437, 3
      %s439 = smul.addr %s438, 8
      %s440 = scalar_lea.vmem %s13, %s439
      %v442 = vld [vmem:[%s435] sm:$0xff]
      %v443 = vld [vmem:[%s435 + $0x8] sm:$0xff]
      %v444 = vld [vmem:[%s435 + $0x10] sm:$0x1]
      %v445 = vld [vmem:[%s1] sm:$0x1]
      %v446 = vld [vmem:[%s2] sm:$0x1]
      %vm447 = vcmask 261120
      %v448 = vsel %vm447, %v442, 0.0
      %449 = vadd.xlane.f32.xlu0 %v448
      %v450 = vpop.xlane.xlu0 %449
      %v451 = vsel %vm447, %v443, 0.0
      %452 = vadd.xlane.f32.xlu0 %v451
      %v453 = vpop.xlane.xlu0 %452
      %vm454 = vcmask 253952
      %v455 = vsel %vm454, %v444, 0.0
      %456 = vadd.xlane.f32.xlu0 %v455
      %v457 = vpop.xlane.xlu0 %456
      %v458 = vrcp.pop 32.0
      %v459 = vmul.f32 %v450, %v458
      %v460 = vmul.f32 %v453, %v458
      %v461 = vmul.f32 %v457, %v458
      %v462 = vsub.f32 %v442, %v459
      %v463 = vsub.f32 %v443, %v460
      %v464 = vsub.f32 %v444, %v461
      %v465 = vmul.f32 %v462, %v462
      %v466 = vmul.f32 %v463, %v463
      %v467 = vmul.f32 %v464, %v464
      %v468 = vsel %vm447, %v465, 0.0
      %469 = vadd.xlane.f32.xlu0 %v468
      %v470 = vpop.xlane.xlu0 %469
      %v471 = vsel %vm447, %v466, 0.0
      %472 = vadd.xlane.f32.xlu0 %v471
      %v473 = vpop.xlane.xlu0 %472
      %v474 = vsel %vm454, %v467, 0.0
      %475 = vadd.xlane.f32.xlu0 %v474
      %v476 = vpop.xlane.xlu0 %475
      %v477 = vmul.f32 %v470, %v458
      %v478 = vmul.f32 %v473, %v458
      %v479 = vmul.f32 %v476, %v458
      %v480 = vadd.f32 %v477, 1e-06
      %v481 = vadd.f32 %v478, 1e-06
      %v482 = vadd.f32 %v479, 1e-06
      %v483 = vrsqrt.pop %v480
      %v484 = vrsqrt.pop %v481
      %v485 = vrsqrt.pop %v482
      %v486 = vmul.f32 %v462, %v483
      %v487 = vmul.f32 %v463, %v484
      %v488 = vmul.f32 %v464, %v485
      %v490 = vlaneseq
      %v491 = vshrl.u32 %v490, 7
      %v492 = vsub.s32 0, %v491
      %v493 = vrot.slane %v445, %v492
      %v495 = vmul.f32 %v486, %v493
      %v496 = vmul.f32 %v487, %v493
      %v497 = vmul.f32 %v488, %v493
      %v499 = vlaneseq
      %v500 = vshrl.u32 %v499, 7
      %v501 = vsub.s32 0, %v500
      %v502 = vrot.slane %v446, %v501
      %v504 = vadd.f32 %v495, %v502
      %v505 = vadd.f32 %v496, %v502
      %v506 = vadd.f32 %v497, %v502
      %v507 = vpack.c.bf16 %v505, %v504
      %v508 = vpack.c.bf16 %v506, %v506
      %v509 = vld [vmem:[%s3] sm:$0xf]
      %v510 = vld [vmem:[%s3 + $0x4] sm:$0xf]
      %v511 = vld [vmem:[%s3 + $0x8] sm:$0xf]
      %v512 = vld [vmem:[%s3 + $0xc] sm:$0xf]
      %v513 = vld [vmem:[%s4] sm:$0x1]
      %v515 = vlaneseq
      %v516 = vshrl.u32 %v515, 7
      %v517 = vsub.s32 0, %v516
      %v518 = vrot.slane %v513, %v517
      %v524 = vunpack.c.l.b16 %v509
      %v525 = vunpack.c.l.b16 %v510
      %v526 = vunpack.c.l.b16 %v511
      %v527 = vunpack.c.l.b16 %v512
      %v528 = vpack.c.b16 %v525, %v524
      %v529 = vpack.c.b16 %v527, %v526
      %v533 = vsel %vm447, %v507, 0
      %v536 = vsel %vm447, %v508, 0
      %538 = vmatprep.subr.bf16.mxu0 0
      %539 = vmatpush1.bf16.msra.mxu0 %v528
      %540 = vmatprep.subr.bf16.mxu0 0
      %541 = vmatpush1.bf16.msra.mxu0 %v529
      %542 = vmatprep.subr.bf16.mxu0 0
      %543 = vmatpush1.bf16.msra.mxu0 0
      %544 = vmatprep.subr.bf16.mxu0 0
      %545 = vmatpush1.bf16.msra.mxu0 0
      %546 = vmatprep.subr.bf16.mxu0 0
      %547 = vmatpush1.bf16.msra.mxu0 0
      %548 = vmatprep.subr.bf16.mxu0 0
      %549 = vmatpush1.bf16.msra.mxu0 0
      %550 = vmatprep.subr.bf16.mxu0 0
      %551 = vmatpush1.bf16.msra.mxu0 0
      %552 = vmatprep.subr.bf16.mxu0 0
      %553 = vmatpush1.bf16.msra.mxu0 0
      %554 = vmatprep.subr.bf16.mxu0 0
      %555 = vmatpush1.bf16.msra.mxu0 0
      %556 = vmatprep.subr.bf16.mxu0 0
      %557 = vmatpush1.bf16.msra.mxu0 0
      %558 = vmatprep.subr.bf16.mxu0 0
      %559 = vmatpush1.bf16.msra.mxu0 0
      %560 = vmatprep.subr.bf16.mxu0 0
      %561 = vmatpush1.bf16.msra.mxu0 0
      %562 = vmatprep.subr.bf16.mxu0 0
      %563 = vmatpush1.bf16.msra.mxu0 0
      %564 = vmatprep.subr.bf16.mxu0 0
      %565 = vmatpush1.bf16.msra.mxu0 0
      %566 = vmatprep.subr.bf16.mxu0 0
      %567 = vmatpush1.bf16.msra.mxu0 0
      %568 = vmatprep.subr.bf16.mxu0 0
      %569 = vmatpush1.bf16.msra.mxu0 0
      %570 = vmatprep.mubr.bf16.mxu0 0
      %571 = vmatmul.mubr.bf16.gmra.mrb[0].mxu0 %v533
      %v572 = vpop.f32.mrb[0].mxu0
      %v573 = vadd.f32 %v518, %v572
      %v574 = vpop.f32.mrb[0].mxu0
      %v575 = vpop.f32.mrb[0].mxu0
      %v576 = vadd.f32 %v518, %v575
      %v577 = vpop.f32.mrb[0].mxu0
      %578 = vmatprep.mubr.bf16.mxu0 0
      %579 = vmatmul.mubr.bf16.gmra.mrb[0].mxu0 %v536
      %v580 = vpop.f32.mrb[0].mxu0
      %v581 = vadd.f32 %v518, %v580
      %v582 = vpop.f32.mrb[0].mxu0
      %v583 = vpop.f32.mrb[0].mxu0
      %v584 = vpop.f32.mrb[0].mxu0
      %585 = vdwg.mxu0
      %s586 = scalar_lea.vmem %s3, 32
      %v587 = vld [vmem:[%s586] sm:$0xf]
      %v588 = vld [vmem:[%s586 + $0x4] sm:$0xf]
      %v589 = vld [vmem:[%s586 + $0x8] sm:$0xf]
      %v590 = vld [vmem:[%s586 + $0xc] sm:$0xf]
      %s591 = scalar_lea.vmem %s4, 2
      %v592 = vld [vmem:[%s591] sm:$0x1]
      %v594 = vlaneseq
      %v595 = vshrl.u32 %v594, 7
      %v596 = vsub.s32 0, %v595
      %v597 = vrot.slane %v592, %v596
      %v603 = vunpack.c.l.b16 %v587
      %v604 = vunpack.c.l.b16 %v588
      %v605 = vunpack.c.l.b16 %v589
      %v606 = vunpack.c.l.b16 %v590
      %v607 = vpack.c.b16 %v604, %v603
      %v608 = vpack.c.b16 %v606, %v605
      %611 = vmatprep.subr.bf16.mxu0 0
      %612 = vmatpush1.bf16.msra.mxu0 %v607
      %613 = vmatprep.subr.bf16.mxu0 0
      %614 = vmatpush1.bf16.msra.mxu0 %v608
      %615 = vmatprep.subr.bf16.mxu0 0
      %616 = vmatpush1.bf16.msra.mxu0 0
      %617 = vmatprep.subr.bf16.mxu0 0
      %618 = vmatpush1.bf16.msra.mxu0 0
      %619 = vmatprep.subr.bf16.mxu0 0
      %620 = vmatpush1.bf16.msra.mxu0 0
      %621 = vmatprep.subr.bf16.mxu0 0
      %622 = vmatpush1.bf16.msra.mxu0 0
      %623 = vmatprep.subr.bf16.mxu0 0
      %624 = vmatpush1.bf16.msra.mxu0 0
      %625 = vmatprep.subr.bf16.mxu0 0
      %626 = vmatpush1.bf16.msra.mxu0 0
      %627 = vmatprep.subr.bf16.mxu0 0
      %628 = vmatpush1.bf16.msra.mxu0 0
      %629 = vmatprep.subr.bf16.mxu0 0
      %630 = vmatpush1.bf16.msra.mxu0 0
      %631 = vmatprep.subr.bf16.mxu0 0
      %632 = vmatpush1.bf16.msra.mxu0 0
      %633 = vmatprep.subr.bf16.mxu0 0
      %634 = vmatpush1.bf16.msra.mxu0 0
      %635 = vmatprep.subr.bf16.mxu0 0
      %636 = vmatpush1.bf16.msra.mxu0 0
      %637 = vmatprep.subr.bf16.mxu0 0
      %638 = vmatpush1.bf16.msra.mxu0 0
      %639 = vmatprep.subr.bf16.mxu0 0
      %640 = vmatpush1.bf16.msra.mxu0 0
      %641 = vmatprep.subr.bf16.mxu0 0
      %642 = vmatpush1.bf16.msra.mxu0 0
      %643 = vmatprep.mubr.bf16.mxu0 0
      %644 = vmatmul.mubr.bf16.gmra.mrb[0].mxu0 %v533
      %v645 = vpop.f32.mrb[0].mxu0
      %v646 = vadd.f32 %v597, %v645
      %v647 = vpop.f32.mrb[0].mxu0
      %v648 = vpop.f32.mrb[0].mxu0
      %v649 = vadd.f32 %v597, %v648
      %v650 = vpop.f32.mrb[0].mxu0
      %651 = vmatprep.mubr.bf16.mxu0 0
      %652 = vmatmul.mubr.bf16.gmra.mrb[0].mxu0 %v536
      %v653 = vpop.f32.mrb[0].mxu0
      %v654 = vadd.f32 %v597, %v653
      %v655 = vpop.f32.mrb[0].mxu0
      %v656 = vpop.f32.mrb[0].mxu0
      %v657 = vpop.f32.mrb[0].mxu0
      %658 = vdwg.mxu0
      %s659 = scalar_lea.vmem %s3, 64
      %v660 = vld [vmem:[%s659] sm:$0xf]
      %v661 = vld [vmem:[%s659 + $0x4] sm:$0xf]
      %v662 = vld [vmem:[%s659 + $0x8] sm:$0xf]
      %v663 = vld [vmem:[%s659 + $0xc] sm:$0xf]
      %s664 = scalar_lea.vmem %s4, 4
      %v665 = vld [vmem:[%s664] sm:$0x1]
      %v667 = vlaneseq
      %v668 = vshrl.u32 %v667, 7
      %v669 = vsub.s32 0, %v668
      %v670 = vrot.slane %v665, %v669
      %v676 = vunpack.c.l.b16 %v660
      %v677 = vunpack.c.l.b16 %v661
      %v678 = vunpack.c.l.b16 %v662
      %v679 = vunpack.c.l.b16 %v663
      %v680 = vpack.c.b16 %v677, %v676
      %v681 = vpack.c.b16 %v679, %v678
      %684 = vmatprep.subr.bf16.mxu0 0
      %685 = vmatpush1.bf16.msra.mxu0 %v680
      %686 = vmatprep.subr.bf16.mxu0 0
      %687 = vmatpush1.bf16.msra.mxu0 %v681
      %688 = vmatprep.subr.bf16.mxu0 0
      %689 = vmatpush1.bf16.msra.mxu0 0
      %690 = vmatprep.subr.bf16.mxu0 0
      %691 = vmatpush1.bf16.msra.mxu0 0
      %692 = vmatprep.subr.bf16.mxu0 0
      %693 = vmatpush1.bf16.msra.mxu0 0
      %694 = vmatprep.subr.bf16.mxu0 0
      %695 = vmatpush1.bf16.msra.mxu0 0
      %696 = vmatprep.subr.bf16.mxu0 0
      %697 = vmatpush1.bf16.msra.mxu0 0
      %698 = vmatprep.subr.bf16.mxu0 0
      %699 = vmatpush1.bf16.msra.mxu0 0
      %700 = vmatprep.subr.bf16.mxu0 0
      %701 = vmatpush1.bf16.msra.mxu0 0
      %702 = vmatprep.subr.bf16.mxu0 0
      %703 = vmatpush1.bf16.msra.mxu0 0
      %704 = vmatprep.subr.bf16.mxu0 0
      %705 = vmatpush1.bf16.msra.mxu0 0
      %706 = vmatprep.subr.bf16.mxu0 0
      %707 = vmatpush1.bf16.msra.mxu0 0
      %708 = vmatprep.subr.bf16.mxu0 0
      %709 = vmatpush1.bf16.msra.mxu0 0
      %710 = vmatprep.subr.bf16.mxu0 0
      %711 = vmatpush1.bf16.msra.mxu0 0
      %712 = vmatprep.subr.bf16.mxu0 0
      %713 = vmatpush1.bf16.msra.mxu0 0
      %714 = vmatprep.subr.bf16.mxu0 0
      %715 = vmatpush1.bf16.msra.mxu0 0
      %716 = vmatprep.mubr.bf16.mxu0 0
      %717 = vmatmul.mubr.bf16.gmra.mrb[0].mxu0 %v533
      %v718 = vpop.f32.mrb[0].mxu0
      %v719 = vadd.f32 %v670, %v718
      %v720 = vpop.f32.mrb[0].mxu0
      %v721 = vpop.f32.mrb[0].mxu0
      %v722 = vadd.f32 %v670, %v721
      %v723 = vpop.f32.mrb[0].mxu0
      %724 = vmatprep.mubr.bf16.mxu0 0
      %725 = vmatmul.mubr.bf16.gmra.mrb[0].mxu0 %v536
      %v726 = vpop.f32.mrb[0].mxu0
      %v727 = vadd.f32 %v670, %v726
      %v728 = vpop.f32.mrb[0].mxu0
      %v729 = vpop.f32.mrb[0].mxu0
      %v730 = vpop.f32.mrb[0].mxu0
      %731 = vdwg.mxu0
      %v732 = vpack.c.bf16 %v576, %v573
      %v733 = vpack.c.bf16 %v581, %v581
      %v734 = vpack.c.bf16 %v649, %v646
      %v735 = vpack.c.bf16 %v654, %v654
      %vm736 = vcmask 130048
      %v738 = vsel %vm736, %v732, 0
      %v741 = vsel %vm736, %v733, 0
      %v744 = vsel %vm736, %v734, 0
      %v747 = vsel %vm736, %v735, 0
      %749 = vmatprep.subr.bf16.mxu0 0
      %750 = vmatpush1.bf16.xpose.msra.mxu0 %v744
      %751 = vmatprep.subr.bf16.mxu0 0
      %752 = vmatpush1.bf16.xpose.msra.mxu0 %v747
      %753 = vmatprep.subr.bf16.mxu0 0
      %754 = vmatpush1.bf16.xpose.msra.mxu0 0
      %755 = vmatprep.subr.bf16.mxu0 0
      %756 = vmatpush1.bf16.xpose.msra.mxu0 0
      %757 = vmatprep.subr.bf16.mxu0 0
      %758 = vmatpush1.bf16.xpose.msra.mxu0 0
      %759 = vmatprep.subr.bf16.mxu0 0
      %760 = vmatpush1.bf16.xpose.msra.mxu0 0
      %761 = vmatprep.subr.bf16.mxu0 0
      %762 = vmatpush1.bf16.xpose.msra.mxu0 0
      %763 = vmatprep.subr.bf16.mxu0 0
      %764 = vmatpush1.bf16.xpose.msra.mxu0 0
      %765 = vmatprep.subr.bf16.mxu0 0
      %766 = vmatpush1.bf16.xpose.msra.mxu0 0
      %767 = vmatprep.subr.bf16.mxu0 0
      %768 = vmatpush1.bf16.xpose.msra.mxu0 0
      %769 = vmatprep.subr.bf16.mxu0 0
      %770 = vmatpush1.bf16.xpose.msra.mxu0 0
      %771 = vmatprep.subr.bf16.mxu0 0
      %772 = vmatpush1.bf16.xpose.msra.mxu0 0
      %773 = vmatprep.subr.bf16.mxu0 0
      %774 = vmatpush1.bf16.xpose.msra.mxu0 0
      %775 = vmatprep.subr.bf16.mxu0 0
      %776 = vmatpush1.bf16.xpose.msra.mxu0 0
      %777 = vmatprep.subr.bf16.mxu0 0
      %778 = vmatpush1.bf16.xpose.msra.mxu0 0
      %779 = vmatprep.subr.bf16.mxu0 0
      %780 = vmatpush1.bf16.xpose.msra.mxu0 0
      %781 = vmatprep.mubr.bf16.mxu0 0
      %782 = vmatmul.mubr.bf16.gmra.mrb[0].mxu0 %v738
      %v783 = vpop.f32.mrb[0].mxu0
      %v784 = vadd.f32 0.0, %v783
      %v785 = vpop.f32.mrb[0].mxu0
      %v786 = vpop.f32.mrb[0].mxu0
      %v787 = vadd.f32 0.0, %v786
      %v788 = vpop.f32.mrb[0].mxu0
      %789 = vmatprep.mubr.bf16.mxu0 0
      %790 = vmatmul.mubr.bf16.gmra.mrb[0].mxu0 %v741
      %v791 = vpop.f32.mrb[0].mxu0
      %v792 = vadd.f32 0.0, %v791
      %v793 = vpop.f32.mrb[0].mxu0
      %v794 = vpop.f32.mrb[0].mxu0
      %v795 = vpop.f32.mrb[0].mxu0
      %796 = vdwg.mxu0
      %v797 = vmul.f32 %v784, 0.25
      %v798 = vmul.f32 %v787, 0.25
      %v799 = vmul.f32 %v792, 0.25
      %vm800 = vcmask 138240
      %v801 = vsel %vm800, %v797, -inf
      %802 = vmax.xlane.f32.xlu0 %v801
      %v803 = vpop.xlane.xlu0 %802
      %v804 = vsel %vm800, %v798, -inf
      %805 = vmax.xlane.f32.xlu0 %v804
      %v806 = vpop.xlane.xlu0 %805
      %vm807 = vcmask 131072
      %v808 = vsel %vm807, %v799, -inf
      %809 = vmax.xlane.f32.xlu0 %v808
      %v810 = vpop.xlane.xlu0 %809
      %v811 = vsub.f32 %v797, %v803
      %v812 = vsub.f32 %v798, %v806
      %v813 = vsub.f32 %v799, %v810
      %v814 = vmul.f32 %v811, 1.442695
      %v815 = vpow.pop %v814
      %v816 = vmul.f32 %v812, 1.442695
      %v817 = vpow.pop %v816
      %v818 = vmul.f32 %v813, 1.442695
      %v819 = vpow.pop %v818
      %v820 = vsel %vm800, %v815, 0.0
      %821 = vadd.xlane.f32.xlu0 %v820
      %v822 = vpop.xlane.xlu0 %821
      %v823 = vsel %vm800, %v817, 0.0
      %824 = vadd.xlane.f32.xlu0 %v823
      %v825 = vpop.xlane.xlu0 %824
      %v826 = vsel %vm807, %v819, 0.0
      %827 = vadd.xlane.f32.xlu0 %v826
      %v828 = vpop.xlane.xlu0 %827
      %v829 = vrcp.pop %v822
      %v830 = vrcp.pop %v825
      %v831 = vrcp.pop %v828
      %v832 = vmul.f32 %v815, %v829
      %v833 = vmul.f32 %v817, %v830
      %v834 = vmul.f32 %v819, %v831
      %v835 = vpack.c.bf16 %v833, %v832
      %v836 = vpack.c.bf16 %v834, %v834
      %v837 = vpack.c.bf16 %v722, %v719
      %v838 = vpack.c.bf16 %v727, %v727
      %v840 = vsel %vm800, %v835, 0
      %v843 = vsel %vm800, %v836, 0
      %vm845 = vcmask 1040384
      %v846 = vsel 0, 4294967295, 65535
      %v847 = vsel %vm845, %v846, 0
      %v849 = vand.u32 %v838, %v847
      %851 = vmatprep.subr.bf16.mxu0 0
      %852 = vmatpush1.bf16.msra.mxu0 %v837
      %853 = vmatprep.subr.bf16.mxu0 0
      %854 = vmatpush1.bf16.msra.mxu0 %v849
      %855 = vmatprep.subr.bf16.mxu0 0
      %856 = vmatpush1.bf16.msra.mxu0 0
      %857 = vmatprep.subr.bf16.mxu0 0
      %858 = vmatpush1.bf16.msra.mxu0 0
      %859 = vmatprep.subr.bf16.mxu0 0
      %860 = vmatpush1.bf16.msra.mxu0 0
      %861 = vmatprep.subr.bf16.mxu0 0
      %862 = vmatpush1.bf16.msra.mxu0 0
      %863 = vmatprep.subr.bf16.mxu0 0
      %864 = vmatpush1.bf16.msra.mxu0 0
      %865 = vmatprep.subr.bf16.mxu0 0
      %866 = vmatpush1.bf16.msra.mxu0 0
      %867 = vmatprep.subr.bf16.mxu0 0
      %868 = vmatpush1.bf16.msra.mxu0 0
      %869 = vmatprep.subr.bf16.mxu0 0
      %870 = vmatpush1.bf16.msra.mxu0 0
      %871 = vmatprep.subr.bf16.mxu0 0
      %872 = vmatpush1.bf16.msra.mxu0 0
      %873 = vmatprep.subr.bf16.mxu0 0
      %874 = vmatpush1.bf16.msra.mxu0 0
      %875 = vmatprep.subr.bf16.mxu0 0
      %876 = vmatpush1.bf16.msra.mxu0 0
      %877 = vmatprep.subr.bf16.mxu0 0
      %878 = vmatpush1.bf16.msra.mxu0 0
      %879 = vmatprep.subr.bf16.mxu0 0
      %880 = vmatpush1.bf16.msra.mxu0 0
      %881 = vmatprep.subr.bf16.mxu0 0
      %882 = vmatpush1.bf16.msra.mxu0 0
      %883 = vmatprep.mubr.bf16.mxu0 0
      %884 = vmatmul.mubr.bf16.gmra.mrb[0].mxu0 %v840
      %v885 = vpop.f32.mrb[0].mxu0
      %v886 = vadd.f32 0.0, %v885
      %v887 = vpop.f32.mrb[0].mxu0
      %v888 = vpop.f32.mrb[0].mxu0
      %v889 = vadd.f32 0.0, %v888
      %v890 = vpop.f32.mrb[0].mxu0
      %891 = vmatprep.mubr.bf16.mxu0 0
      %892 = vmatmul.mubr.bf16.gmra.mrb[0].mxu0 %v843
      %v893 = vpop.f32.mrb[0].mxu0
      %v894 = vadd.f32 0.0, %v893
      %v895 = vpop.f32.mrb[0].mxu0
      %v896 = vpop.f32.mrb[0].mxu0
      %v897 = vpop.f32.mrb[0].mxu0
      %898 = vdwg.mxu0
      %v899 = vpack.c.bf16 %v889, %v886
      %v900 = vpack.c.bf16 %v894, %v894
      %v901 = vld [vmem:[%s5] sm:$0xf]
      %v902 = vld [vmem:[%s5 + $0x4] sm:$0xf]
      %s903 = scalar_lea.vmem %s3, 16
      %v904 = vld [vmem:[%s903] sm:$0xf]
      %v905 = vld [vmem:[%s903 + $0x4] sm:$0xf]
      %v906 = vld [vmem:[%s903 + $0x8] sm:$0xf]
      %v907 = vld [vmem:[%s903 + $0xc] sm:$0xf]
      %s908 = scalar_lea.vmem %s4, 1
      %v909 = vld [vmem:[%s908] sm:$0x1]
      %v911 = vlaneseq
      %v912 = vshrl.u32 %v911, 7
      %v913 = vsub.s32 0, %v912
      %v914 = vrot.slane %v909, %v913
      %v920 = vunpack.c.l.b16 %v904
      %v921 = vunpack.c.l.b16 %v905
      %v922 = vunpack.c.l.b16 %v906
      %v923 = vunpack.c.l.b16 %v907
      %v924 = vpack.c.b16 %v921, %v920
      %v925 = vpack.c.b16 %v923, %v922
      %928 = vmatprep.subr.bf16.mxu0 0
      %929 = vmatpush1.bf16.msra.mxu0 %v924
      %930 = vmatprep.subr.bf16.mxu0 0
      %931 = vmatpush1.bf16.msra.mxu0 %v925
      %932 = vmatprep.subr.bf16.mxu0 0
      %933 = vmatpush1.bf16.msra.mxu0 0
      %934 = vmatprep.subr.bf16.mxu0 0
      %935 = vmatpush1.bf16.msra.mxu0 0
      %936 = vmatprep.subr.bf16.mxu0 0
      %937 = vmatpush1.bf16.msra.mxu0 0
      %938 = vmatprep.subr.bf16.mxu0 0
      %939 = vmatpush1.bf16.msra.mxu0 0
      %940 = vmatprep.subr.bf16.mxu0 0
      %941 = vmatpush1.bf16.msra.mxu0 0
      %942 = vmatprep.subr.bf16.mxu0 0
      %943 = vmatpush1.bf16.msra.mxu0 0
      %944 = vmatprep.subr.bf16.mxu0 0
      %945 = vmatpush1.bf16.msra.mxu0 0
      %946 = vmatprep.subr.bf16.mxu0 0
      %947 = vmatpush1.bf16.msra.mxu0 0
      %948 = vmatprep.subr.bf16.mxu0 0
      %949 = vmatpush1.bf16.msra.mxu0 0
      %950 = vmatprep.subr.bf16.mxu0 0
      %951 = vmatpush1.bf16.msra.mxu0 0
      %952 = vmatprep.subr.bf16.mxu0 0
      %953 = vmatpush1.bf16.msra.mxu0 0
      %954 = vmatprep.subr.bf16.mxu0 0
      %955 = vmatpush1.bf16.msra.mxu0 0
      %956 = vmatprep.subr.bf16.mxu0 0
      %957 = vmatpush1.bf16.msra.mxu0 0
      %958 = vmatprep.subr.bf16.mxu0 0
      %959 = vmatpush1.bf16.msra.mxu0 0
      %960 = vmatprep.mubr.bf16.mxu0 0
      %961 = vmatmul.mubr.bf16.gmra.mrb[0].mxu0 %v533
      %v962 = vpop.f32.mrb[0].mxu0
      %v963 = vadd.f32 %v914, %v962
      %v964 = vpop.f32.mrb[0].mxu0
      %v965 = vpop.f32.mrb[0].mxu0
      %v966 = vadd.f32 %v914, %v965
      %v967 = vpop.f32.mrb[0].mxu0
      %968 = vmatprep.mubr.bf16.mxu0 0
      %969 = vmatmul.mubr.bf16.gmra.mrb[0].mxu0 %v536
      %v970 = vpop.f32.mrb[0].mxu0
      %v971 = vadd.f32 %v914, %v970
      %v972 = vpop.f32.mrb[0].mxu0
      %v973 = vpop.f32.mrb[0].mxu0
      %v974 = vpop.f32.mrb[0].mxu0
      %975 = vdwg.mxu0
      %s976 = scalar_lea.vmem %s3, 48
      %v977 = vld [vmem:[%s976] sm:$0xf]
      %v978 = vld [vmem:[%s976 + $0x4] sm:$0xf]
      %v979 = vld [vmem:[%s976 + $0x8] sm:$0xf]
      %v980 = vld [vmem:[%s976 + $0xc] sm:$0xf]
      %s981 = scalar_lea.vmem %s4, 3
      %v982 = vld [vmem:[%s981] sm:$0x1]
      %v984 = vlaneseq
      %v985 = vshrl.u32 %v984, 7
      %v986 = vsub.s32 0, %v985
      %v987 = vrot.slane %v982, %v986
      %v993 = vunpack.c.l.b16 %v977
      %v994 = vunpack.c.l.b16 %v978
      %v995 = vunpack.c.l.b16 %v979
      %v996 = vunpack.c.l.b16 %v980
      %v997 = vpack.c.b16 %v994, %v993
      %v998 = vpack.c.b16 %v996, %v995
      %1001 = vmatprep.subr.bf16.mxu0 0
      %1002 = vmatpush1.bf16.msra.mxu0 %v997
      %1003 = vmatprep.subr.bf16.mxu0 0
      %1004 = vmatpush1.bf16.msra.mxu0 %v998
      %1005 = vmatprep.subr.bf16.mxu0 0
      %1006 = vmatpush1.bf16.msra.mxu0 0
      %1007 = vmatprep.subr.bf16.mxu0 0
      %1008 = vmatpush1.bf16.msra.mxu0 0
      %1009 = vmatprep.subr.bf16.mxu0 0
      %1010 = vmatpush1.bf16.msra.mxu0 0
      %1011 = vmatprep.subr.bf16.mxu0 0
      %1012 = vmatpush1.bf16.msra.mxu0 0
      %1013 = vmatprep.subr.bf16.mxu0 0
      %1014 = vmatpush1.bf16.msra.mxu0 0
      %1015 = vmatprep.subr.bf16.mxu0 0
      %1016 = vmatpush1.bf16.msra.mxu0 0
      %1017 = vmatprep.subr.bf16.mxu0 0
      %1018 = vmatpush1.bf16.msra.mxu0 0
      %1019 = vmatprep.subr.bf16.mxu0 0
      %1020 = vmatpush1.bf16.msra.mxu0 0
      %1021 = vmatprep.subr.bf16.mxu0 0
      %1022 = vmatpush1.bf16.msra.mxu0 0
      %1023 = vmatprep.subr.bf16.mxu0 0
      %1024 = vmatpush1.bf16.msra.mxu0 0
      %1025 = vmatprep.subr.bf16.mxu0 0
      %1026 = vmatpush1.bf16.msra.mxu0 0
      %1027 = vmatprep.subr.bf16.mxu0 0
      %1028 = vmatpush1.bf16.msra.mxu0 0
      %1029 = vmatprep.subr.bf16.mxu0 0
      %1030 = vmatpush1.bf16.msra.mxu0 0
      %1031 = vmatprep.subr.bf16.mxu0 0
      %1032 = vmatpush1.bf16.msra.mxu0 0
      %1033 = vmatprep.mubr.bf16.mxu0 0
      %1034 = vmatmul.mubr.bf16.gmra.mrb[0].mxu0 %v533
      %v1035 = vpop.f32.mrb[0].mxu0
      %v1036 = vadd.f32 %v987, %v1035
      %v1037 = vpop.f32.mrb[0].mxu0
      %v1038 = vpop.f32.mrb[0].mxu0
      %v1039 = vadd.f32 %v987, %v1038
      %v1040 = vpop.f32.mrb[0].mxu0
      %1041 = vmatprep.mubr.bf16.mxu0 0
      %1042 = vmatmul.mubr.bf16.gmra.mrb[0].mxu0 %v536
      %v1043 = vpop.f32.mrb[0].mxu0
      %v1044 = vadd.f32 %v987, %v1043
      %v1045 = vpop.f32.mrb[0].mxu0
      %v1046 = vpop.f32.mrb[0].mxu0
      %v1047 = vpop.f32.mrb[0].mxu0
      %1048 = vdwg.mxu0
      %s1049 = scalar_lea.vmem %s3, 80
      %v1050 = vld [vmem:[%s1049] sm:$0xf]
      %v1051 = vld [vmem:[%s1049 + $0x4] sm:$0xf]
      %v1052 = vld [vmem:[%s1049 + $0x8] sm:$0xf]
      %v1053 = vld [vmem:[%s1049 + $0xc] sm:$0xf]
      %s1054 = scalar_lea.vmem %s4, 5
      %v1055 = vld [vmem:[%s1054] sm:$0x1]
      %v1057 = vlaneseq
      %v1058 = vshrl.u32 %v1057, 7
      %v1059 = vsub.s32 0, %v1058
      %v1060 = vrot.slane %v1055, %v1059
      %v1066 = vunpack.c.l.b16 %v1050
      %v1067 = vunpack.c.l.b16 %v1051
      %v1068 = vunpack.c.l.b16 %v1052
      %v1069 = vunpack.c.l.b16 %v1053
      %v1070 = vpack.c.b16 %v1067, %v1066
      %v1071 = vpack.c.b16 %v1069, %v1068
      %1074 = vmatprep.subr.bf16.mxu0 0
      %1075 = vmatpush1.bf16.msra.mxu0 %v1070
      %1076 = vmatprep.subr.bf16.mxu0 0
      %1077 = vmatpush1.bf16.msra.mxu0 %v1071
      %1078 = vmatprep.subr.bf16.mxu0 0
      %1079 = vmatpush1.bf16.msra.mxu0 0
      %1080 = vmatprep.subr.bf16.mxu0 0
      %1081 = vmatpush1.bf16.msra.mxu0 0
      %1082 = vmatprep.subr.bf16.mxu0 0
      %1083 = vmatpush1.bf16.msra.mxu0 0
      %1084 = vmatprep.subr.bf16.mxu0 0
      %1085 = vmatpush1.bf16.msra.mxu0 0
      %1086 = vmatprep.subr.bf16.mxu0 0
      %1087 = vmatpush1.bf16.msra.mxu0 0
      %1088 = vmatprep.subr.bf16.mxu0 0
      %1089 = vmatpush1.bf16.msra.mxu0 0
      %1090 = vmatprep.subr.bf16.mxu0 0
      %1091 = vmatpush1.bf16.msra.mxu0 0
      %1092 = vmatprep.subr.bf16.mxu0 0
      %1093 = vmatpush1.bf16.msra.mxu0 0
      %1094 = vmatprep.subr.bf16.mxu0 0
      %1095 = vmatpush1.bf16.msra.mxu0 0
      %1096 = vmatprep.subr.bf16.mxu0 0
      %1097 = vmatpush1.bf16.msra.mxu0 0
      %1098 = vmatprep.subr.bf16.mxu0 0
      %1099 = vmatpush1.bf16.msra.mxu0 0
      %1100 = vmatprep.subr.bf16.mxu0 0
      %1101 = vmatpush1.bf16.msra.mxu0 0
      %1102 = vmatprep.subr.bf16.mxu0 0
      %1103 = vmatpush1.bf16.msra.mxu0 0
      %1104 = vmatprep.subr.bf16.mxu0 0
      %1105 = vmatpush1.bf16.msra.mxu0 0
      %1106 = vmatprep.mubr.bf16.mxu0 0
      %1107 = vmatmul.mubr.bf16.gmra.mrb[0].mxu0 %v533
      %v1108 = vpop.f32.mrb[0].mxu0
      %v1109 = vadd.f32 %v1060, %v1108
      %v1110 = vpop.f32.mrb[0].mxu0
      %v1111 = vpop.f32.mrb[0].mxu0
      %v1112 = vadd.f32 %v1060, %v1111
      %v1113 = vpop.f32.mrb[0].mxu0
      %1114 = vmatprep.mubr.bf16.mxu0 0
      %1115 = vmatmul.mubr.bf16.gmra.mrb[0].mxu0 %v536
      %v1116 = vpop.f32.mrb[0].mxu0
      %v1117 = vadd.f32 %v1060, %v1116
      %v1118 = vpop.f32.mrb[0].mxu0
      %v1119 = vpop.f32.mrb[0].mxu0
      %v1120 = vpop.f32.mrb[0].mxu0
      %1121 = vdwg.mxu0
      %v1122 = vpack.c.bf16 %v966, %v963
      %v1123 = vpack.c.bf16 %v971, %v971
      %v1124 = vpack.c.bf16 %v1039, %v1036
      %v1125 = vpack.c.bf16 %v1044, %v1044
      %v1127 = vsel %vm736, %v1122, 0
      %v1130 = vsel %vm736, %v1123, 0
      %v1133 = vsel %vm736, %v1124, 0
      %v1136 = vsel %vm736, %v1125, 0
      %1138 = vmatprep.subr.bf16.mxu0 0
      %1139 = vmatpush1.bf16.xpose.msra.mxu0 %v1133
      %1140 = vmatprep.subr.bf16.mxu0 0
      %1141 = vmatpush1.bf16.xpose.msra.mxu0 %v1136
      %1142 = vmatprep.subr.bf16.mxu0 0
      %1143 = vmatpush1.bf16.xpose.msra.mxu0 0
      %1144 = vmatprep.subr.bf16.mxu0 0
      %1145 = vmatpush1.bf16.xpose.msra.mxu0 0
      %1146 = vmatprep.subr.bf16.mxu0 0
      %1147 = vmatpush1.bf16.xpose.msra.mxu0 0
      %1148 = vmatprep.subr.bf16.mxu0 0
      %1149 = vmatpush1.bf16.xpose.msra.mxu0 0
      %1150 = vmatprep.subr.bf16.mxu0 0
      %1151 = vmatpush1.bf16.xpose.msra.mxu0 0
      %1152 = vmatprep.subr.bf16.mxu0 0
      %1153 = vmatpush1.bf16.xpose.msra.mxu0 0
      %1154 = vmatprep.subr.bf16.mxu0 0
      %1155 = vmatpush1.bf16.xpose.msra.mxu0 0
      %1156 = vmatprep.subr.bf16.mxu0 0
      %1157 = vmatpush1.bf16.xpose.msra.mxu0 0
      %1158 = vmatprep.subr.bf16.mxu0 0
      %1159 = vmatpush1.bf16.xpose.msra.mxu0 0
      %1160 = vmatprep.subr.bf16.mxu0 0
      %1161 = vmatpush1.bf16.xpose.msra.mxu0 0
      %1162 = vmatprep.subr.bf16.mxu0 0
      %1163 = vmatpush1.bf16.xpose.msra.mxu0 0
      %1164 = vmatprep.subr.bf16.mxu0 0
      %1165 = vmatpush1.bf16.xpose.msra.mxu0 0
      %1166 = vmatprep.subr.bf16.mxu0 0
      %1167 = vmatpush1.bf16.xpose.msra.mxu0 0
      %1168 = vmatprep.subr.bf16.mxu0 0
      %1169 = vmatpush1.bf16.xpose.msra.mxu0 0
      %1170 = vmatprep.mubr.bf16.mxu0 0
      %1171 = vmatmul.mubr.bf16.gmra.mrb[0].mxu0 %v1127
      %v1172 = vpop.f32.mrb[0].mxu0
      %v1173 = vadd.f32 0.0, %v1172
      %v1174 = vpop.f32.mrb[0].mxu0
      %v1175 = vpop.f32.mrb[0].mxu0
      %v1176 = vadd.f32 0.0, %v1175
      %v1177 = vpop.f32.mrb[0].mxu0
      %1178 = vmatprep.mubr.bf16.mxu0 0
      %1179 = vmatmul.mubr.bf16.gmra.mrb[0].mxu0 %v1130
      %v1180 = vpop.f32.mrb[0].mxu0
      %v1181 = vadd.f32 0.0, %v1180
      %v1182 = vpop.f32.mrb[0].mxu0
      %v1183 = vpop.f32.mrb[0].mxu0
      %v1184 = vpop.f32.mrb[0].mxu0
      %1185 = vdwg.mxu0
      %v1186 = vmul.f32 %v1173, 0.25
      %v1187 = vmul.f32 %v1176, 0.25
      %v1188 = vmul.f32 %v1181, 0.25
      %v1189 = vsel %vm800, %v1186, -inf
      %1190 = vmax.xlane.f32.xlu0 %v1189
      %v1191 = vpop.xlane.xlu0 %1190
      %v1192 = vsel %vm800, %v1187, -inf
      %1193 = vmax.xlane.f32.xlu0 %v1192
      %v1194 = vpop.xlane.xlu0 %1193
      %v1195 = vsel %vm807, %v1188, -inf
      %1196 = vmax.xlane.f32.xlu0 %v1195
      %v1197 = vpop.xlane.xlu0 %1196
      %v1198 = vsub.f32 %v1186, %v1191
      %v1199 = vsub.f32 %v1187, %v1194
      %v1200 = vsub.f32 %v1188, %v1197
      %v1201 = vmul.f32 %v1198, 1.442695
      %v1202 = vpow.pop %v1201
      %v1203 = vmul.f32 %v1199, 1.442695
      %v1204 = vpow.pop %v1203
      %v1205 = vmul.f32 %v1200, 1.442695
      %v1206 = vpow.pop %v1205
      %v1207 = vsel %vm800, %v1202, 0.0
      %1208 = vadd.xlane.f32.xlu0 %v1207
      %v1209 = vpop.xlane.xlu0 %1208
      %v1210 = vsel %vm800, %v1204, 0.0
      %1211 = vadd.xlane.f32.xlu0 %v1210
      %v1212 = vpop.xlane.xlu0 %1211
      %v1213 = vsel %vm807, %v1206, 0.0
      %1214 = vadd.xlane.f32.xlu0 %v1213
      %v1215 = vpop.xlane.xlu0 %1214
      %v1216 = vrcp.pop %v1209
      %v1217 = vrcp.pop %v1212
      %v1218 = vrcp.pop %v1215
      %v1219 = vmul.f32 %v1202, %v1216
      %v1220 = vmul.f32 %v1204, %v1217
      %v1221 = vmul.f32 %v1206, %v1218
      %v1222 = vpack.c.bf16 %v1220, %v1219
      %v1223 = vpack.c.bf16 %v1221, %v1221
      %v1224 = vpack.c.bf16 %v1112, %v1109
      %v1225 = vpack.c.bf16 %v1117, %v1117
      %v1227 = vsel %vm800, %v1222, 0
      %v1230 = vsel %vm800, %v1223, 0
      %v1233 = vand.u32 %v1225, %v847
      %1235 = vmatprep.subr.bf16.mxu0 0
      %1236 = vmatpush1.bf16.msra.mxu0 %v1224
      %1237 = vmatprep.subr.bf16.mxu0 0
      %1238 = vmatpush1.bf16.msra.mxu0 %v1233
      %1239 = vmatprep.subr.bf16.mxu0 0
      %1240 = vmatpush1.bf16.msra.mxu0 0
      %1241 = vmatprep.subr.bf16.mxu0 0
      %1242 = vmatpush1.bf16.msra.mxu0 0
      %1243 = vmatprep.subr.bf16.mxu0 0
      %1244 = vmatpush1.bf16.msra.mxu0 0
      %1245 = vmatprep.subr.bf16.mxu0 0
      %1246 = vmatpush1.bf16.msra.mxu0 0
      %1247 = vmatprep.subr.bf16.mxu0 0
      %1248 = vmatpush1.bf16.msra.mxu0 0
      %1249 = vmatprep.subr.bf16.mxu0 0
      %1250 = vmatpush1.bf16.msra.mxu0 0
      %1251 = vmatprep.subr.bf16.mxu0 0
      %1252 = vmatpush1.bf16.msra.mxu0 0
      %1253 = vmatprep.subr.bf16.mxu0 0
      %1254 = vmatpush1.bf16.msra.mxu0 0
      %1255 = vmatprep.subr.bf16.mxu0 0
      %1256 = vmatpush1.bf16.msra.mxu0 0
      %1257 = vmatprep.subr.bf16.mxu0 0
      %1258 = vmatpush1.bf16.msra.mxu0 0
      %1259 = vmatprep.subr.bf16.mxu0 0
      %1260 = vmatpush1.bf16.msra.mxu0 0
      %1261 = vmatprep.subr.bf16.mxu0 0
      %1262 = vmatpush1.bf16.msra.mxu0 0
      %1263 = vmatprep.subr.bf16.mxu0 0
      %1264 = vmatpush1.bf16.msra.mxu0 0
      %1265 = vmatprep.subr.bf16.mxu0 0
      %1266 = vmatpush1.bf16.msra.mxu0 0
      %1267 = vmatprep.mubr.bf16.mxu0 0
      %1268 = vmatmul.mubr.bf16.gmra.mrb[0].mxu0 %v1227
      %v1269 = vpop.f32.mrb[0].mxu0
      %v1270 = vadd.f32 0.0, %v1269
      %v1271 = vpop.f32.mrb[0].mxu0
      %v1272 = vpop.f32.mrb[0].mxu0
      %v1273 = vadd.f32 0.0, %v1272
      %v1274 = vpop.f32.mrb[0].mxu0
      %1275 = vmatprep.mubr.bf16.mxu0 0
      %1276 = vmatmul.mubr.bf16.gmra.mrb[0].mxu0 %v1230
      %v1277 = vpop.f32.mrb[0].mxu0
      %v1278 = vadd.f32 0.0, %v1277
      %v1279 = vpop.f32.mrb[0].mxu0
      %v1280 = vpop.f32.mrb[0].mxu0
      %v1281 = vpop.f32.mrb[0].mxu0
      %1282 = vdwg.mxu0
      %v1283 = vpack.c.bf16 %v1273, %v1270
      %v1284 = vpack.c.bf16 %v1278, %v1278
      %s1285 = scalar_lea.vmem %s5, 8
      %v1286 = vld [vmem:[%s1285] sm:$0xf]
      %v1287 = vld [vmem:[%s1285 + $0x4] sm:$0xf]
      %v1290 = vunpack.c.l.b16 %v1286
      %v1291 = vunpack.c.l.b16 %v1287
      %v1292 = vpack.c.b16 %v1291, %v1290
      %v1295 = vsel %vm736, %v1283, 0
      %v1298 = vsel %vm736, %v1284, 0
      %1300 = vmatprep.subr.bf16.mxu0 0
      %1301 = vmatpush1.bf16.msra.mxu0 %v1292
      %1302 = vmatprep.subr.bf16.mxu0 0
      %1303 = vmatpush1.bf16.msra.mxu0 0
      %1304 = vmatprep.subr.bf16.mxu0 0
      %1305 = vmatpush1.bf16.msra.mxu0 0
      %1306 = vmatprep.subr.bf16.mxu0 0
      %1307 = vmatpush1.bf16.msra.mxu0 0
      %1308 = vmatprep.subr.bf16.mxu0 0
      %1309 = vmatpush1.bf16.msra.mxu0 0
      %1310 = vmatprep.subr.bf16.mxu0 0
      %1311 = vmatpush1.bf16.msra.mxu0 0
      %1312 = vmatprep.subr.bf16.mxu0 0
      %1313 = vmatpush1.bf16.msra.mxu0 0
      %1314 = vmatprep.subr.bf16.mxu0 0
      %1315 = vmatpush1.bf16.msra.mxu0 0
      %1316 = vmatprep.subr.bf16.mxu0 0
      %1317 = vmatpush1.bf16.msra.mxu0 0
      %1318 = vmatprep.subr.bf16.mxu0 0
      %1319 = vmatpush1.bf16.msra.mxu0 0
      %1320 = vmatprep.subr.bf16.mxu0 0
      %1321 = vmatpush1.bf16.msra.mxu0 0
      %1322 = vmatprep.subr.bf16.mxu0 0
      %1323 = vmatpush1.bf16.msra.mxu0 0
      %1324 = vmatprep.subr.bf16.mxu0 0
      %1325 = vmatpush1.bf16.msra.mxu0 0
      %1326 = vmatprep.subr.bf16.mxu0 0
      %1327 = vmatpush1.bf16.msra.mxu0 0
      %1328 = vmatprep.subr.bf16.mxu0 0
      %1329 = vmatpush1.bf16.msra.mxu0 0
      %1330 = vmatprep.subr.bf16.mxu0 0
      %1331 = vmatpush1.bf16.msra.mxu0 0
      %1332 = vmatprep.mubr.bf16.mxu0 0
      %1333 = vmatmul.mubr.bf16.gmra.mrb[0].mxu0 %v1295
      %v1334 = vpop.f32.mrb[0].mxu0
      %v1335 = vadd.f32 0.0, %v1334
      %v1336 = vpop.f32.mrb[0].mxu0
      %v1337 = vpop.f32.mrb[0].mxu0
      %v1338 = vadd.f32 0.0, %v1337
      %v1339 = vpop.f32.mrb[0].mxu0
      %1340 = vmatprep.mubr.bf16.mxu0 0
      %1341 = vmatmul.mubr.bf16.gmra.mrb[0].mxu0 %v1298
      %v1342 = vpop.f32.mrb[0].mxu0
      %v1343 = vadd.f32 0.0, %v1342
      %v1344 = vpop.f32.mrb[0].mxu0
      %v1345 = vpop.f32.mrb[0].mxu0
      %v1346 = vpop.f32.mrb[0].mxu0
      %1347 = vdwg.mxu0
      %v1350 = vunpack.c.l.b16 %v901
      %v1351 = vunpack.c.l.b16 %v902
      %v1352 = vpack.c.b16 %v1351, %v1350
      %v1355 = vsel %vm736, %v899, 0
      %v1358 = vsel %vm736, %v900, 0
      %1360 = vmatprep.subr.bf16.mxu0 0
      %1361 = vmatpush1.bf16.msra.mxu0 %v1352
      %1362 = vmatprep.subr.bf16.mxu0 0
      %1363 = vmatpush1.bf16.msra.mxu0 0
      %1364 = vmatprep.subr.bf16.mxu0 0
      %1365 = vmatpush1.bf16.msra.mxu0 0
      %1366 = vmatprep.subr.bf16.mxu0 0
      %1367 = vmatpush1.bf16.msra.mxu0 0
      %1368 = vmatprep.subr.bf16.mxu0 0
      %1369 = vmatpush1.bf16.msra.mxu0 0
      %1370 = vmatprep.subr.bf16.mxu0 0
      %1371 = vmatpush1.bf16.msra.mxu0 0
      %1372 = vmatprep.subr.bf16.mxu0 0
      %1373 = vmatpush1.bf16.msra.mxu0 0
      %1374 = vmatprep.subr.bf16.mxu0 0
      %1375 = vmatpush1.bf16.msra.mxu0 0
      %1376 = vmatprep.subr.bf16.mxu0 0
      %1377 = vmatpush1.bf16.msra.mxu0 0
      %1378 = vmatprep.subr.bf16.mxu0 0
      %1379 = vmatpush1.bf16.msra.mxu0 0
      %1380 = vmatprep.subr.bf16.mxu0 0
      %1381 = vmatpush1.bf16.msra.mxu0 0
      %1382 = vmatprep.subr.bf16.mxu0 0
      %1383 = vmatpush1.bf16.msra.mxu0 0
      %1384 = vmatprep.subr.bf16.mxu0 0
      %1385 = vmatpush1.bf16.msra.mxu0 0
      %1386 = vmatprep.subr.bf16.mxu0 0
      %1387 = vmatpush1.bf16.msra.mxu0 0
      %1388 = vmatprep.subr.bf16.mxu0 0
      %1389 = vmatpush1.bf16.msra.mxu0 0
      %1390 = vmatprep.subr.bf16.mxu0 0
      %1391 = vmatpush1.bf16.msra.mxu0 0
      %1392 = vmatprep.mubr.bf16.mxu0 0
      %1393 = vmatmul.mubr.bf16.gmra.mrb[0].mxu0 %v1355
      %v1394 = vpop.f32.mrb[0].mxu0
      %v1395 = vadd.f32 %v1335, %v1394
      %v1396 = vpop.f32.mrb[0].mxu0
      %v1397 = vpop.f32.mrb[0].mxu0
      %v1398 = vadd.f32 %v1338, %v1397
      %v1399 = vpop.f32.mrb[0].mxu0
      %1400 = vmatprep.mubr.bf16.mxu0 0
      %1401 = vmatmul.mubr.bf16.gmra.mrb[0].mxu0 %v1358
      %v1402 = vpop.f32.mrb[0].mxu0
      %v1403 = vadd.f32 %v1343, %v1402
      %v1404 = vpop.f32.mrb[0].mxu0
      %v1405 = vpop.f32.mrb[0].mxu0
      %v1406 = vpop.f32.mrb[0].mxu0
      %1407 = vdwg.mxu0
      %v1408 = vadd.f32 %v442, %v1395
      %v1409 = vadd.f32 %v443, %v1398
      %v1410 = vadd.f32 %v444, %v1403
      %v1411 = vld [vmem:[%s6] sm:$0x1]
      %v1413 = vlaneseq
      %v1414 = vshrl.u32 %v1413, 7
      %v1415 = vsub.s32 0, %v1414
      %v1416 = vrot.slane %v1411, %v1415
      %v1418 = vadd.f32 %v1408, %v1416
      %v1419 = vadd.f32 %v1409, %v1416
      %v1420 = vadd.f32 %v1410, %v1416
      %v1421 = vld [vmem:[%s7] sm:$0x1]
      %v1422 = vld [vmem:[%s8] sm:$0x1]
      %v1423 = vsel %vm447, %v1418, 0.0
      %1424 = vadd.xlane.f32.xlu0 %v1423
      %v1425 = vpop.xlane.xlu0 %1424
      %v1426 = vsel %vm447, %v1419, 0.0
      %1427 = vadd.xlane.f32.xlu0 %v1426
      %v1428 = vpop.xlane.xlu0 %1427
      %v1429 = vsel %vm454, %v1420, 0.0
      %1430 = vadd.xlane.f32.xlu0 %v1429
      %v1431 = vpop.xlane.xlu0 %1430
      %v1432 = vmul.f32 %v1425, %v458
      %v1433 = vmul.f32 %v1428, %v458
      %v1434 = vmul.f32 %v1431, %v458
      %v1435 = vsub.f32 %v1418, %v1432
      %v1436 = vsub.f32 %v1419, %v1433
      %v1437 = vsub.f32 %v1420, %v1434
      %v1438 = vmul.f32 %v1435, %v1435
      %v1439 = vmul.f32 %v1436, %v1436
      %v1440 = vmul.f32 %v1437, %v1437
      %v1441 = vsel %vm447, %v1438, 0.0
      %1442 = vadd.xlane.f32.xlu0 %v1441
      %v1443 = vpop.xlane.xlu0 %1442
      %v1444 = vsel %vm447, %v1439, 0.0
      %1445 = vadd.xlane.f32.xlu0 %v1444
      %v1446 = vpop.xlane.xlu0 %1445
      %v1447 = vsel %vm454, %v1440, 0.0
      %1448 = vadd.xlane.f32.xlu0 %v1447
      %v1449 = vpop.xlane.xlu0 %1448
      %v1450 = vmul.f32 %v1443, %v458
      %v1451 = vmul.f32 %v1446, %v458
      %v1452 = vmul.f32 %v1449, %v458
      %v1453 = vadd.f32 %v1450, 1e-06
      %v1454 = vadd.f32 %v1451, 1e-06
      %v1455 = vadd.f32 %v1452, 1e-06
      %v1456 = vrsqrt.pop %v1453
      %v1457 = vrsqrt.pop %v1454
      %v1458 = vrsqrt.pop %v1455
      %v1459 = vmul.f32 %v1435, %v1456
      %v1460 = vmul.f32 %v1436, %v1457
      %v1461 = vmul.f32 %v1437, %v1458
      %v1463 = vlaneseq
      %v1464 = vshrl.u32 %v1463, 7
      %v1465 = vsub.s32 0, %v1464
      %v1466 = vrot.slane %v1421, %v1465
      %v1468 = vmul.f32 %v1459, %v1466
      %v1469 = vmul.f32 %v1460, %v1466
      %v1470 = vmul.f32 %v1461, %v1466
      %v1472 = vlaneseq
      %v1473 = vshrl.u32 %v1472, 7
      %v1474 = vsub.s32 0, %v1473
      %v1475 = vrot.slane %v1422, %v1474
      %v1477 = vadd.f32 %v1468, %v1475
      %v1478 = vadd.f32 %v1469, %v1475
      %v1479 = vadd.f32 %v1470, %v1475
      %v1480 = vpack.c.bf16 %v1478, %v1477
      %v1481 = vpack.c.bf16 %v1479, %v1479
      %v1482 = vld [vmem:[%s9] sm:$0xf]
      %v1483 = vld [vmem:[%s9 + $0x4] sm:$0xf]
      %v1484 = vld [vmem:[%s9 + $0x8] sm:$0xf]
      %v1485 = vld [vmem:[%s9 + $0xc] sm:$0xf]
      %v1486 = vld [vmem:[%s10] sm:$0x1]
      %v1488 = vlaneseq
      %v1489 = vshrl.u32 %v1488, 7
      %v1490 = vsub.s32 0, %v1489
      %v1491 = vrot.slane %v1486, %v1490
      %v1497 = vunpack.c.l.b16 %v1482
      %v1498 = vunpack.c.l.b16 %v1483
      %v1499 = vunpack.c.l.b16 %v1484
      %v1500 = vunpack.c.l.b16 %v1485
      %v1501 = vpack.c.b16 %v1498, %v1497
      %v1502 = vpack.c.b16 %v1500, %v1499
      %v1506 = vsel %vm447, %v1480, 0
      %v1509 = vsel %vm447, %v1481, 0
      %1511 = vmatprep.subr.bf16.mxu0 0
      %1512 = vmatpush1.bf16.msra.mxu0 %v1501
      %1513 = vmatprep.subr.bf16.mxu0 0
      %1514 = vmatpush1.bf16.msra.mxu0 %v1502
      %1515 = vmatprep.subr.bf16.mxu0 0
      %1516 = vmatpush1.bf16.msra.mxu0 0
      %1517 = vmatprep.subr.bf16.mxu0 0
      %1518 = vmatpush1.bf16.msra.mxu0 0
      %1519 = vmatprep.subr.bf16.mxu0 0
      %1520 = vmatpush1.bf16.msra.mxu0 0
      %1521 = vmatprep.subr.bf16.mxu0 0
      %1522 = vmatpush1.bf16.msra.mxu0 0
      %1523 = vmatprep.subr.bf16.mxu0 0
      %1524 = vmatpush1.bf16.msra.mxu0 0
      %1525 = vmatprep.subr.bf16.mxu0 0
      %1526 = vmatpush1.bf16.msra.mxu0 0
      %1527 = vmatprep.subr.bf16.mxu0 0
      %1528 = vmatpush1.bf16.msra.mxu0 0
      %1529 = vmatprep.subr.bf16.mxu0 0
      %1530 = vmatpush1.bf16.msra.mxu0 0
      %1531 = vmatprep.subr.bf16.mxu0 0
      %1532 = vmatpush1.bf16.msra.mxu0 0
      %1533 = vmatprep.subr.bf16.mxu0 0
      %1534 = vmatpush1.bf16.msra.mxu0 0
      %1535 = vmatprep.subr.bf16.mxu0 0
      %1536 = vmatpush1.bf16.msra.mxu0 0
      %1537 = vmatprep.subr.bf16.mxu0 0
      %1538 = vmatpush1.bf16.msra.mxu0 0
      %1539 = vmatprep.subr.bf16.mxu0 0
      %1540 = vmatpush1.bf16.msra.mxu0 0
      %1541 = vmatprep.subr.bf16.mxu0 0
      %1542 = vmatpush1.bf16.msra.mxu0 0
      %1543 = vmatprep.mubr.bf16.mxu0 0
      %1544 = vmatmul.mubr.bf16.gmra.mrb[0].mxu0 %v1506
      %v1545 = vpop.f32.mrb[0].mxu0
      %v1546 = vadd.f32 %v1491, %v1545
      %v1547 = vpop.f32.mrb[0].mxu0
      %v1548 = vpop.f32.mrb[0].mxu0
      %v1549 = vadd.f32 %v1491, %v1548
      %v1550 = vpop.f32.mrb[0].mxu0
      %1551 = vmatprep.mubr.bf16.mxu0 0
      %1552 = vmatmul.mubr.bf16.gmra.mrb[0].mxu0 %v1509
      %v1553 = vpop.f32.mrb[0].mxu0
      %v1554 = vadd.f32 %v1491, %v1553
      %v1555 = vpop.f32.mrb[0].mxu0
      %v1556 = vpop.f32.mrb[0].mxu0
      %v1557 = vpop.f32.mrb[0].mxu0
      %1558 = vdwg.mxu0
      %v1559 = vmul.f32 %v1546, 0.5
      %v1560 = vmul.f32 %v1549, 0.5
      %v1561 = vmul.f32 %v1554, 0.5
      %v1562 = vmul.f32 %v1546, 0.70710677
      %v1563 = vmul.f32 %v1549, 0.70710677
      %v1564 = vmul.f32 %v1554, 0.70710677
      %vm1565 = vcmp.ge.f32.partialorder %v1562, 0.0
      %vm1566 = vcmp.ge.f32.partialorder %v1563, 0.0
      %vm1567 = vcmp.ge.f32.partialorder %v1564, 0.0
      %v1568 = vsel %vm1565, 1.0, -1.0
      %v1569 = vsel %vm1566, 1.0, -1.0
      %v1570 = vsel %vm1567, 1.0, -1.0
      %v1571 = vand.u32 2147483647, %v1562
      %v1572 = vand.u32 2147483647, %v1563
      %v1573 = vand.u32 2147483647, %v1564
      %v1574 = vmul.f32 %v1571, 0.3275911
      %v1575 = vmul.f32 %v1572, 0.3275911
      %v1576 = vmul.f32 %v1573, 0.3275911
      %v1577 = vadd.f32 %v1574, 1.0
      %v1578 = vadd.f32 %v1575, 1.0
      %v1579 = vadd.f32 %v1576, 1.0
      %v1580 = vrcp.pop %v1577
      %v1581 = vmul.f32 1.0, %v1580
      %v1582 = vrcp.pop %v1578
      %v1583 = vmul.f32 1.0, %v1582
      %v1584 = vrcp.pop %v1579
      %v1585 = vmul.f32 1.0, %v1584
      %v1586 = vmul.f32 %v1581, 1.0614054
      %v1587 = vmul.f32 %v1583, 1.0614054
      %v1588 = vmul.f32 %v1585, 1.0614054
      %v1589 = vadd.f32 %v1586, -1.4531521
      %v1590 = vadd.f32 %v1587, -1.4531521
      %v1591 = vadd.f32 %v1588, -1.4531521
      %v1592 = vmul.f32 %v1589, %v1581
      %v1593 = vmul.f32 %v1590, %v1583
      %v1594 = vmul.f32 %v1591, %v1585
      %v1595 = vadd.f32 %v1592, 1.4214138
      %v1596 = vadd.f32 %v1593, 1.4214138
      %v1597 = vadd.f32 %v1594, 1.4214138
      %v1598 = vmul.f32 %v1595, %v1581
      %v1599 = vmul.f32 %v1596, %v1583
      %v1600 = vmul.f32 %v1597, %v1585
      %v1601 = vadd.f32 %v1598, -0.28449672
      %v1602 = vadd.f32 %v1599, -0.28449672
      %v1603 = vadd.f32 %v1600, -0.28449672
      %v1604 = vmul.f32 %v1601, %v1581
      %v1605 = vmul.f32 %v1602, %v1583
      %v1606 = vmul.f32 %v1603, %v1585
      %v1607 = vadd.f32 %v1604, 0.2548296
      %v1608 = vadd.f32 %v1605, 0.2548296
      %v1609 = vadd.f32 %v1606, 0.2548296
      %v1610 = vmul.f32 %v1607, %v1581
      %v1611 = vmul.f32 %v1608, %v1583
      %v1612 = vmul.f32 %v1609, %v1585
      %v1613 = vsub.f32 0.0, %v1571
      %v1614 = vsub.f32 0.0, %v1572
      %v1615 = vsub.f32 0.0, %v1573
      %v1616 = vmul.f32 %v1613, %v1571
      %v1617 = vmul.f32 %v1614, %v1572
      %v1618 = vmul.f32 %v1615, %v1573
      %v1619 = vmul.f32 %v1616, 1.442695
      %v1620 = vpow.pop %v1619
      %v1621 = vmul.f32 %v1617, 1.442695
      %v1622 = vpow.pop %v1621
      %v1623 = vmul.f32 %v1618, 1.442695
      %v1624 = vpow.pop %v1623
      %v1625 = vmul.f32 %v1610, %v1620
      %v1626 = vmul.f32 %v1611, %v1622
      %v1627 = vmul.f32 %v1612, %v1624
      %v1628 = vsub.f32 1.0, %v1625
      %v1629 = vsub.f32 1.0, %v1626
      %v1630 = vsub.f32 1.0, %v1627
      %v1631 = vmul.f32 %v1568, %v1628
      %v1632 = vmul.f32 %v1569, %v1629
      %v1633 = vmul.f32 %v1570, %v1630
      %v1634 = vadd.f32 %v1631, 1.0
      %v1635 = vadd.f32 %v1632, 1.0
      %v1636 = vadd.f32 %v1633, 1.0
      %v1637 = vmul.f32 %v1559, %v1634
      %v1638 = vmul.f32 %v1560, %v1635
      %v1639 = vmul.f32 %v1561, %v1636
      %v1640 = vpack.c.bf16 %v1638, %v1637
      %v1641 = vpack.c.bf16 %v1639, %v1639
      %v1642 = vld [vmem:[%s11] sm:$0xf]
      %v1643 = vld [vmem:[%s11 + $0x4] sm:$0xf]
      %v1644 = vld [vmem:[%s11 + $0x8] sm:$0xf]
      %v1645 = vld [vmem:[%s11 + $0xc] sm:$0xf]
      %v1646 = vld [vmem:[%s11 + $0x10] sm:$0xf]
      %v1647 = vld [vmem:[%s11 + $0x14] sm:$0xf]
      %v1648 = vld [vmem:[%s11 + $0x18] sm:$0xf]
      %v1649 = vld [vmem:[%s11 + $0x1c] sm:$0xf]
      %v1650 = vld [vmem:[%s12] sm:$0x1]
      %v1652 = vlaneseq
      %v1653 = vshrl.u32 %v1652, 7
      %v1654 = vsub.s32 0, %v1653
      %v1655 = vrot.slane %v1650, %v1654
      %v1665 = vunpack.c.l.b16 %v1642
      %v1666 = vunpack.c.l.b16 %v1643
      %v1667 = vunpack.c.l.b16 %v1644
      %v1668 = vunpack.c.l.b16 %v1645
      %v1669 = vunpack.c.l.b16 %v1646
      %v1670 = vunpack.c.l.b16 %v1647
      %v1671 = vunpack.c.l.b16 %v1648
      %v1672 = vunpack.c.l.b16 %v1649
      %v1673 = vpack.c.b16 %v1666, %v1665
      %v1674 = vpack.c.b16 %v1668, %v1667
      %v1675 = vpack.c.b16 %v1670, %v1669
      %v1676 = vpack.c.b16 %v1672, %v1671
      %vm1681 = vcmask 523264
      %v1683 = vsel %vm1681, %v1640, 0
      %v1686 = vsel %vm1681, %v1641, 0
      %1688 = vmatprep.subr.bf16.mxu0 0
      %1689 = vmatpush1.bf16.msra.mxu0 %v1673
      %1690 = vmatprep.subr.bf16.mxu0 0
      %1691 = vmatpush1.bf16.msra.mxu0 %v1674
      %1692 = vmatprep.subr.bf16.mxu0 0
      %1693 = vmatpush1.bf16.msra.mxu0 %v1675
      %1694 = vmatprep.subr.bf16.mxu0 0
      %1695 = vmatpush1.bf16.msra.mxu0 %v1676
      %1696 = vmatprep.subr.bf16.mxu0 0
      %1697 = vmatpush1.bf16.msra.mxu0 0
      %1698 = vmatprep.subr.bf16.mxu0 0
      %1699 = vmatpush1.bf16.msra.mxu0 0
      %1700 = vmatprep.subr.bf16.mxu0 0
      %1701 = vmatpush1.bf16.msra.mxu0 0
      %1702 = vmatprep.subr.bf16.mxu0 0
      %1703 = vmatpush1.bf16.msra.mxu0 0
      %1704 = vmatprep.subr.bf16.mxu0 0
      %1705 = vmatpush1.bf16.msra.mxu0 0
      %1706 = vmatprep.subr.bf16.mxu0 0
      %1707 = vmatpush1.bf16.msra.mxu0 0
      %1708 = vmatprep.subr.bf16.mxu0 0
      %1709 = vmatpush1.bf16.msra.mxu0 0
      %1710 = vmatprep.subr.bf16.mxu0 0
      %1711 = vmatpush1.bf16.msra.mxu0 0
      %1712 = vmatprep.subr.bf16.mxu0 0
      %1713 = vmatpush1.bf16.msra.mxu0 0
      %1714 = vmatprep.subr.bf16.mxu0 0
      %1715 = vmatpush1.bf16.msra.mxu0 0
      %1716 = vmatprep.subr.bf16.mxu0 0
      %1717 = vmatpush1.bf16.msra.mxu0 0
      %1718 = vmatprep.subr.bf16.mxu0 0
      %1719 = vmatpush1.bf16.msra.mxu0 0
      %1720 = vmatprep.mubr.bf16.mxu0 0
      %1721 = vmatmul.mubr.bf16.gmra.mrb[0].mxu0 %v1683
      %v1722 = vpop.f32.mrb[0].mxu0
      %v1723 = vadd.f32 %v1655, %v1722
      %v1724 = vpop.f32.mrb[0].mxu0
      %v1725 = vpop.f32.mrb[0].mxu0
      %v1726 = vadd.f32 %v1655, %v1725
      %v1727 = vpop.f32.mrb[0].mxu0
      %1728 = vmatprep.mubr.bf16.mxu0 0
      %1729 = vmatmul.mubr.bf16.gmra.mrb[0].mxu0 %v1686
      %v1730 = vpop.f32.mrb[0].mxu0
      %v1731 = vadd.f32 %v1655, %v1730
      %v1732 = vpop.f32.mrb[0].mxu0
      %v1733 = vpop.f32.mrb[0].mxu0
      %v1734 = vpop.f32.mrb[0].mxu0
      %1735 = vdwg.mxu0
      %v1736 = vadd.f32 %v1418, %v1723
      %v1737 = vadd.f32 %v1419, %v1726
      %v1738 = vadd.f32 %v1420, %v1731
      %1739 = vst.msk [vmem:[%s440] sm:$0xff] %vm447, %v1736
      %1740 = vst.msk [vmem:[%s440 + $0x8] sm:$0xff] %vm447, %v1737
      %1741 = vst.msk [vmem:[%s440 + $0x10] sm:$0x1] %vm454, %v1738
      %p1742 = scmp.lt.s32.totalorder %s24, 1
      %s1743 = scalar_select %p1742, %s24, 1
      %s1744 = smul.addr %s1743, 3
      %s1745 = smul.addr %s1744, 8
      %s1746 = scalar_lea.vmem %s13, %s1745
      // Predicated region
      $region73: #{segmenter_forward.5} parent=71 // pred_check
        %p1747 = pneg %p320
      $region74: #{segmenter_forward.5} parent=71 // pred_check_branch
        %1749 = sbr.rel (%p1747) target = $region76
      $region75: #{segmenter_forward.5} parent=71 // pred_region
        _
      $region76: #{segmenter_forward.5} parent=71 // pred_fallthru
        _
    $region72: #{segmenter_forward.5} parent=5 // pred_fallthru
      _
    %p1750 = scmp.le.s32.totalorder 2, %s19
    // Predicated region
    $region77: #{segmenter_forward.5} parent=5 // pred_check
      %p1751 = pneg %p1750
    $region78: #{segmenter_forward.5} parent=5 // pred_check_branch
      %1753 = sbr.rel (%p1751) target = $region80
    $region79: #{segmenter_forward.5} parent=5 // pred_region
      %s1754 = ssub.s32 %s19, 2
      // Predicated region
      $region81: #{segmenter_forward.5} parent=79 // pred_check
        %p1755 = pneg %p326
      $region82: #{segmenter_forward.5} parent=79 // pred_check_branch
        %1757 = sbr.rel (%p1755) target = $region84
      $region83: #{segmenter_forward.5} parent=79 // pred_region
        %p1758 = scmp.lt.s32.totalorder %s25, 1
        %s1759 = scalar_select %p1758, %s25, 1
        %s1760 = smul.addr %s1759, 3
        %s1761 = smul.addr %s1760, 8
        %s1762 = scalar_lea.vmem %s13, %s1761
      $region84: #{segmenter_forward.5} parent=79 // pred_fallthru
        _
    $region80: #{segmenter_forward.5} parent=5 // pred_fallthru
      _
  $region6: #{segmenter_forward.5} parent=0 // loop_footer
    %s23 = sadd.s32 1, %s19
  $region7: #{segmenter_forward.5} parent=0 // loop_footer_branch
    %18 = sbr.rel target = $region3
  $region8: #{segmenter_forward.5} parent=0 // loop_exit
    _

</llo_original>
